<compile_context>
chip_gen: v5e
topology: v5e:2x2
jax: 0.10.0
libtpu: 0.0.40
codegen_flags: <defaults>
</compile_context>

<pallas_src>
import jax
import jax.numpy as jnp
from jax.experimental import pallas as pl
from jax.experimental.pallas import tpu as pltpu

FEAT_DIM = 1920          # ReXNet feature channels feeding the heads
AGE_CLASSES = 101
GENDER_CLASSES = 2
ETH_CLASSES = 5
TOTAL_CLASSES = AGE_CLASSES + GENDER_CLASSES + ETH_CLASSES   # 108
NPAD = 128               # pad fused head dim to one full lane tile (do NOT pad to 256)


def multitask_head_kernel(feat_ref, w_ref, b_ref, out_ref):
    """feat_ref: (TB, HW, C) bf16; w_ref: (C, 128) bf16; b_ref: (1, 128) f32;
    out_ref: (TB, 128) f32.  Computes mean-pool over HW fused with the head matmul."""
    tb, hw, c = feat_ref.shape
    npad = out_ref.shape[-1]
    inv_hw = jnp.float32(1.0 / hw)          # mean-pool scale applied on the f32 accumulator
    w = w_ref[...]                          # hoisted: (C, 128) bf16, VMEM-resident
    bias = b_ref[...]                       # (1, 128) f32

    if hw % 16 == 0:
        # Fast path: pool folded into the matmul.  Chunk the batch so each MXU pass has
        # ~128 M-rows and the (cb*hw, 128) f32 intermediate stays a few vregs instead of
        # a VMEM-staged slab (matters once TB grows to 32-128).
        cb = max(1, min(tb, max(1, 128 // hw)))
        for b0 in range(0, tb, cb):                                   # static Python loop
            cbi = min(cb, tb - b0)
            chunk = feat_ref[b0:b0 + cbi].reshape(cbi * hw, c)        # layout no-op (hw%16==0, bf16)
            part = jnp.dot(chunk, w, preferred_element_type=jnp.float32)   # (cbi*hw, 128) f32
            pooled = part.reshape(cbi, hw, npad).sum(axis=1)          # tiny sublane reduce
            out_ref[b0:b0 + cbi, :] = pooled * inv_hw + bias          # f32 scale + bias
    else:
        # Fallback for bf16-unaligned HW: sum-pool in f32 first, then one matmul per chunk.
        w32 = w.astype(jnp.float32)
        for b0 in range(0, tb, 8):
            cbi = min(8, tb - b0)
            s = jnp.sum(feat_ref[b0:b0 + cbi].astype(jnp.float32), axis=1)    # (cbi, C)
            out_ref[b0:b0 + cbi, :] = (
                jnp.dot(s, w32, preferred_element_type=jnp.float32) * inv_hw + bias)


def fuse_head_params(wa, ba, wg, bg, we, be):
    """Concatenate + zero-pad the three heads into one lane-dense slab.
    Call ONCE (outside the per-inference path) and reuse the result.
    Returns ((1920, 128) bf16 weight, (1, 128) f32 bias).  No 1/HW folding here:
    the kernel applies the mean-pool scale on the f32 accumulator instead."""
    w = jnp.concatenate([wa, wg, we], axis=1)                          # (1920, 108)
    b = jnp.concatenate([ba.reshape(1, -1), bg.reshape(1, -1), be.reshape(1, -1)], axis=1)
    w = jnp.pad(w, ((0, 0), (0, NPAD - TOTAL_CLASSES))).astype(jnp.bfloat16)
    b = jnp.pad(b, ((0, 0), (0, NPAD - TOTAL_CLASSES))).astype(jnp.float32)
    return w, b


def _vmem_limit_bytes(tb, hw):
    """Generation-aware VMEM limit: actual double-buffered footprint + headroom,
    clamped to 75% of the chip's physical VMEM (64 MiB/TC on v7x, 128 MiB on v5e/v6e)."""
    feat_bytes = 2 * tb * hw * FEAT_DIM * 2                 # double-buffered bf16 feature tiles
    fixed = FEAT_DIM * NPAD * 2 + NPAD * 4 + 2 * tb * NPAD * 4   # weight + bias + out buffers
    need = feat_bytes + fixed + (4 << 20)                   # + compiler scratch headroom
    try:
        cap = pltpu.get_tpu_info().vmem_capacity_bytes
    except Exception:
        cap = 64 << 20                                      # conservative (v7x per-TC physical)
    return int(min(max(need, 32 << 20), int(cap * 0.75)))


def multitask_rexnet_heads(features_nhwc, w_fused, b_fused, *, batch_tile=64):
    """features_nhwc: (B, H, W, 1920) bf16 (or f32) backbone features.
    w_fused / b_fused: output of fuse_head_params (hoisted out of the hot path).
    Returns (age, gender, ethnicity) f32 logits.

    Pick batch_tile in 32-128 for production batches so the per-step DMA is >= 2-4 MiB;
    on v7x also keep cdiv(B, batch_tile) >= 8 so each of the 2 TensorCores gets >= 4
    pipelined steps."""
    B, H, W, C = features_nhwc.shape
    assert C == FEAT_DIM
    hw = H * W
    feat = features_nhwc.reshape(B, hw, C)                             # layout no-op
    if feat.dtype != jnp.bfloat16:
        feat = feat.astype(jnp.bfloat16)                               # halve HBM read; f32 acc in kernel

    tb = min(batch_tile, B)
    grid = (pl.cdiv(B, tb),)

    logits = pl.pallas_call(
        multitask_head_kernel,
        out_shape=jax.ShapeDtypeStruct((B, NPAD), jnp.float32),
        grid=grid,
        in_specs=[
            pl.BlockSpec((tb, hw, C), lambda i: (i, 0, 0)),            # pipelined over batch tiles
            pl.BlockSpec((C, NPAD), lambda i: (0, 0)),                 # weight: VMEM-resident
            pl.BlockSpec((1, NPAD), lambda i: (0, 0)),                 # bias: VMEM-resident
        ],
        out_specs=pl.BlockSpec((tb, NPAD), lambda i: (i, 0)),          # lane-dense (128-wide) store
        compiler_params=pltpu.CompilerParams(
            dimension_semantics=("parallel",),                          # shard batch tiles across TCs (v7x)
            vmem_limit_bytes=_vmem_limit_bytes(tb, hw),
        ),
    )(feat, w_fused, b_fused)

    age = logits[:, :AGE_CLASSES]
    gender = logits[:, AGE_CLASSES:AGE_CLASSES + GENDER_CLASSES]
    ethnicity = logits[:, AGE_CLASSES + GENDER_CLASSES:TOTAL_CLASSES]
    return age, gender, ethnicity


def synthetic_backbone_features(x_nchw, w_stem):
    # TODO(synk): the real timm ReXNet backbone (backbone.forward_features) is an external
    # module; a deterministic 1x1-conv stride-4 + relu6 stand-in producing 1920-channel
    # NHWC bf16 feature maps is used here instead (plain-JAX glue).
    # TODO(synk): biggest structural lever (per review) is fusing the mean-pool into the
    # backbone's final stage so the head reads HW x less HBM; kept spatial here because
    # the module spec pools inside MultiTaskRexNet.forward.
    feats = jax.lax.conv_general_dilated(
        x_nchw, w_stem, window_strides=(4, 4), padding="VALID",
        dimension_numbers=("NCHW", "OIHW", "NHWC"))
    return jnp.clip(feats, 0.0, 6.0).astype(jnp.bfloat16)             # (B, H, W, 1920)


if __name__ == "__main__":
    key = jax.random.PRNGKey(0)
    ks = jax.random.split(key, 8)

    # Backbone stand-in reduces 16x16 -> 4x4 spatial (HW=16, bf16-aligned), 3 -> 1920 channels.
    # B=40 with batch_tile=16 gives a 3-step pipelined grid whose LAST block is partial
    # (covers the B % tb != 0 masked-writeback case from the review).
    B, Cin, Himg, Wimg = 40, 3, 16, 16
    x = jax.random.normal(ks[0], (B, Cin, Himg, Wimg), jnp.float32)
    w_stem = jax.random.normal(ks[1], (FEAT_DIM, Cin, 1, 1), jnp.float32) * 0.05

    # Head parameters stored as (in, out) == torch weight transposed.
    wa = jax.random.normal(ks[2], (FEAT_DIM, AGE_CLASSES), jnp.float32) * 0.02
    ba = jax.random.normal(ks[3], (1, AGE_CLASSES), jnp.float32) * 0.02
    wg = jax.random.normal(ks[4], (FEAT_DIM, GENDER_CLASSES), jnp.float32) * 0.02
    bg = jax.random.normal(ks[5], (1, GENDER_CLASSES), jnp.float32) * 0.02
    we = jax.random.normal(ks[6], (FEAT_DIM, ETH_CLASSES), jnp.float32) * 0.02
    be = jax.random.normal(ks[7], (1, ETH_CLASSES), jnp.float32) * 0.02

    feats = synthetic_backbone_features(x, w_stem)                     # (40, 4, 4, 1920) bf16

    # Fuse/pad head params ONCE (hoisted out of the per-inference path).
    w_fused, b_fused = fuse_head_params(wa, ba, wg, bg, we, be)

    # Multi-step grid with a partial last tile.
    age, gender, eth = multitask_rexnet_heads(feats, w_fused, b_fused, batch_tile=16)
    # Default (large) batch_tile path: single full-batch tile.
    age2, gender2, eth2 = multitask_rexnet_heads(feats, w_fused, b_fused)
    jax.block_until_ready((age, gender, eth, age2, gender2, eth2))

    # Pure-JAX reference (mean pool + 3 linears) from the same backbone features.
    feats_f32 = feats.astype(jnp.float32)
    pooled_ref = feats_f32.mean(axis=(1, 2))                           # (B, 1920)
    age_ref = pooled_ref @ wa + ba
    gen_ref = pooled_ref @ wg + bg
    eth_ref = pooled_ref @ we + be

    assert age.shape == (B, AGE_CLASSES)
    assert gender.shape == (B, GENDER_CLASSES)
    assert eth.shape == (B, ETH_CLASSES)
    # bf16 feature/weight rounding (f32 accumulation) -> slightly loosened tolerance.
    for got, ref in ((age, age_ref), (gender, gen_ref), (eth, eth_ref),
                     (age2, age_ref), (gender2, gen_ref), (eth2, eth_ref)):
        assert jnp.allclose(got, ref, atol=2e-2, rtol=2e-2)

    print("KERNEL_OK")
</pallas_src>

<mosaic_0001>
module attributes {stable_mosaic.version = 11 : i64} {
  func.func @multitask_head_kernel(%arg0: i32, %arg1: memref<16x16x1920xbf16, #tpu.memory_space<vmem>>, %arg2: memref<1920x128xbf16, #tpu.memory_space<vmem>>, %arg3: memref<1x128xf32, #tpu.memory_space<vmem>>, %arg4: memref<16x128xf32, #tpu.memory_space<vmem>>) attributes {dimension_semantics = [#tpu.dimension_semantics<parallel>], iteration_bounds = array<i64: 3>, scalar_prefetch = 0 : i64, scratch_operands = 0 : i64, tpu.core_type = #tpu.core_type<tc>, window_params = [{transform_indices = @transform_0, window_bounds = array<i64: 16, 16, 1920>}, {pipeline_mode = #tpu.pipeline_mode<synchronous>, transform_indices = @transform_1, window_bounds = array<i64: 1920, 128>}, {pipeline_mode = #tpu.pipeline_mode<synchronous>, transform_indices = @transform_2, window_bounds = array<i64: 1, 128>}, {transform_indices = @transform_3, window_bounds = array<i64: 16, 128>}]} {
    %c0 = arith.constant 0 : index
    %c0_0 = arith.constant 0 : index
    %0 = vector.load %arg2[%c0, %c0_0] : memref<1920x128xbf16, #tpu.memory_space<vmem>>, vector<1920x128xbf16>
    %c0_1 = arith.constant 0 : index
    %c0_2 = arith.constant 0 : index
    %1 = vector.load %arg3[%c0_1, %c0_2] : memref<1x128xf32, #tpu.memory_space<vmem>>, vector<1x128xf32>
    %c0_3 = arith.constant 0 : index
    %c0_4 = arith.constant 0 : index
    %c0_5 = arith.constant 0 : index
    %2 = vector.load %arg1[%c0_3, %c0_4, %c0_5] : memref<16x16x1920xbf16, #tpu.memory_space<vmem>>, vector<8x16x1920xbf16>
    %3 = vector.shape_cast %2 : vector<8x16x1920xbf16> to vector<128x1920xbf16>
    %cst = arith.constant dense<0.000000e+00> : vector<128x128xf32>
    %4 = tpu.matmul %3, %0, %cst {dimension_numbers = #tpu.dot_dimension_numbers<[1], [0], [0], [1], [0, 0, 1, 1], [], []>} : vector<128x1920xbf16>, vector<1920x128xbf16>, vector<128x128xf32> -> vector<128x128xf32>
    %5 = vector.shape_cast %4 : vector<128x128xf32> to vector<8x16x128xf32>
    %cst_6 = arith.constant dense<0.000000e+00> : vector<8x128xf32>
    %6 = vector.multi_reduction <add>, %5, %cst_6 [1] : vector<8x16x128xf32> to vector<8x128xf32>
    %cst_7 = arith.constant 6.250000e-02 : f32
    %7 = vector.broadcast %cst_7 : f32 to vector<8x128xf32>
    %8 = arith.mulf %6, %7 : vector<8x128xf32>
    %9 = vector.broadcast %1 : vector<1x128xf32> to vector<8x128xf32>
    %10 = arith.addf %8, %9 : vector<8x128xf32>
    %c0_8 = arith.constant 0 : index
    %c0_9 = arith.constant 0 : index
    %11 = vector.load %arg4[%c0_8, %c0_9] : memref<16x128xf32, #tpu.memory_space<vmem>>, vector<8x128xf32>
    tpu.vector_store %arg4[%c0_8, %c0_9], %10 {strides = array<i32>} : memref<16x128xf32, #tpu.memory_space<vmem>>, vector<8x128xf32>,
    %c8 = arith.constant 8 : index
    %c0_10 = arith.constant 0 : index
    %c0_11 = arith.constant 0 : index
    %12 = vector.load %arg1[%c8, %c0_10, %c0_11] : memref<16x16x1920xbf16, #tpu.memory_space<vmem>>, vector<8x16x1920xbf16>
    %13 = vector.shape_cast %12 : vector<8x16x1920xbf16> to vector<128x1920xbf16>
    %cst_12 = arith.constant dense<0.000000e+00> : vector<128x128xf32>
    %14 = tpu.matmul %13, %0, %cst_12 {dimension_numbers = #tpu.dot_dimension_numbers<[1], [0], [0], [1], [0, 0, 1, 1], [], []>} : vector<128x1920xbf16>, vector<1920x128xbf16>, vector<128x128xf32> -> vector<128x128xf32>
    %15 = vector.shape_cast %14 : vector<128x128xf32> to vector<8x16x128xf32>
    %cst_13 = arith.constant dense<0.000000e+00> : vector<8x128xf32>
    %16 = vector.multi_reduction <add>, %15, %cst_13 [1] : vector<8x16x128xf32> to vector<8x128xf32>
    %cst_14 = arith.constant 6.250000e-02 : f32
    %17 = vector.broadcast %cst_14 : f32 to vector<8x128xf32>
    %18 = arith.mulf %16, %17 : vector<8x128xf32>
    %19 = vector.broadcast %1 : vector<1x128xf32> to vector<8x128xf32>
    %20 = arith.addf %18, %19 : vector<8x128xf32>
    %c8_15 = arith.constant 8 : index
    %c0_16 = arith.constant 0 : index
    %21 = vector.load %arg4[%c8_15, %c0_16] : memref<16x128xf32, #tpu.memory_space<vmem>>, vector<8x128xf32>
    tpu.vector_store %arg4[%c8_15, %c0_16], %20 {strides = array<i32>} : memref<16x128xf32, #tpu.memory_space<vmem>>, vector<8x128xf32>,
    return
  }
  func.func @transform_0(%arg0: i32) -> (i32, i32, i32) {
    %c0_i32 = arith.constant 0 : i32
    %c0_i32_0 = arith.constant 0 : i32
    %c0_i32_1 = arith.constant 0 : i32
    return %arg0, %c0_i32, %c0_i32_0 : i32, i32, i32
  }
  func.func @transform_1(%arg0: i32) -> (i32, i32) {
    %c0_i32 = arith.constant 0 : i32
    %c0_i32_0 = arith.constant 0 : i32
    %c0_i32_1 = arith.constant 0 : i32
    return %c0_i32, %c0_i32_0 : i32, i32
  }
  func.func @transform_2(%arg0: i32) -> (i32, i32) {
    %c0_i32 = arith.constant 0 : i32
    %c0_i32_0 = arith.constant 0 : i32
    %c0_i32_1 = arith.constant 0 : i32
    return %c0_i32, %c0_i32_0 : i32, i32
  }
  func.func @transform_3(%arg0: i32) -> (i32, i32) {
    %c0_i32 = arith.constant 0 : i32
    %c0_i32_0 = arith.constant 0 : i32
    return %arg0, %c0_i32 : i32, i32
  }
}

</mosaic_0001>

<llo_original>
// kernel: tpu_custom_call.1
$region0: #{tpu_custom_call.1}
  #allocation0 [shape = 'u32[]', space=smem, size = 0x4, offset = 0x4, fixed_abs, tag = 'smem constant byte address 0x4 - core index']
  #allocation1 [shape = 'u32[72,128]{1,0:T(1,128)}', space=vmem, size = 0x9000, scoped, tag = 'internal scratch']
  %s0 = inlined_call_operand.hbm [shape: bf16[40,16,1920], index: 0, kind: input, shape index: {}]
  %s1 = inlined_call_operand.hbm [shape: bf16[1920,128], index: 1, kind: input, shape index: {}]
  %s2 = inlined_call_operand.hbm [shape: f32[1,128], index: 2, kind: input, shape index: {}]
  %s3 = inlined_call_operand.hbm [shape: f32[40,128], index: 3, kind: output, shape index: {}]
  %s4 = sld [smem:[#allocation0]]
  $region57: #{tpu_custom_call.1} parent=0
    _
  %s6 = ssub.s32 1, %s4
  %s7 = scalar_select 0, %s6, %s4
  $region1: #{tpu_custom_call.1} parent=0
    #allocation2 [shape = 'u8[1966080]{0}', space=vmem, size = 0x1e0000, scoped, tag = 'input window, operand 0']
    #allocation3 [shape = 's32[2]{0}', space=sflag, size = 0x8, scoped, tag = 'scoped memory for tpu_custom_call.1']
    #allocation4 [shape = 's32[2]{0}', space=sflag, size = 0x8, scoped, tag = 'scoped memory for tpu_custom_call.1']
    #allocation5 [shape = 'u8[491520]{0}', space=vmem, size = 0x78000, scoped, tag = 'input window, operand 1, single buffered']
    #allocation6 [shape = 's32[1]{0}', space=sflag, size = 0x4, scoped, tag = 'scoped memory for tpu_custom_call.1']
    #allocation7 [shape = 'u8[512]{0}', space=vmem, size = 0x400, scoped, tag = 'input window, operand 2, single buffered']
    #allocation8 [shape = 'u8[16384]{0}', space=vmem, size = 0x4000, scoped, tag = 'output window, operand 0']
    %8 = vsyncpa [#allocation3], 0
    %s9 = scalar_lea.sflag [#allocation3], 1
    %10 = vsyncpa %s9, 0
    %11 = vsyncpa [#allocation6], 0
    %12 = vsyncpa [#allocation4], 0
    %s13 = scalar_lea.sflag [#allocation4], 1
    %14 = vsyncpa %s13, 0
    loop: start=0, step=1, limit=5
    $region2: #{tpu_custom_call.1} parent=1 // loop_pre_header
      _
    $region3: #{tpu_custom_call.1} parent=1 // loop_header
      %s16 = sphi 0, %s20
      %p17 = scmp.ge.s32.totalorder %s16, 5
      %s26 = sphi 0, %s28
      %s29 = sphi 0, %s26
      %s30 = sphi 0, %s29
      %s46 = sphi 0, %s30
      %s50 = sphi 0, %s50
      %s52 = sphi 0, %s50
      %s53 = sphi 0, %s52
      %s67 = sphi 0, %s53
      %s71 = sphi 0, %s71
      %s73 = sphi 0, %s71
      %s74 = sphi 0, %s73
      %s88 = sphi 0, %s74
      %s94 = sphi 0, %s96
      %s97 = sphi 0, %s94
      %s98 = sphi 0, %s97
      %s114 = sphi 0, %s98
    $region4: #{tpu_custom_call.1} parent=1 // loop_header_branch
      %19 = sbr.rel (%p17) target = $region8
    $region5: #{tpu_custom_call.1} parent=1 // loop_body
      %s21 = ssub.s32 %s16, 1
      %s22 = ssub.s32 %s16, 2
      %s23 = sadd.s32 %s16, 1
      %s24 = ssub.s32 %s16, %s23
      %p25 = scmp.eq.s32.totalorder %s24, 0
      %s27 = sadd.s32 %s26, 1
      %s28 = scalar_select %p25, %s26, %s27
      %p31 = pneg %p25
      %p32 = scmp.eq.s32.totalorder %s16, 2
      %p33 = por %p31, %p32
      %p34 = scmp.ne.s32.totalorder %s26, %s29
      %p35 = scmp.eq.s32.totalorder %s16, 0
      %p36 = por %p34, %p35
      %p37 = scmp.ne.s32.totalorder %s26, %s29
      %p38 = scmp.eq.s32.totalorder %s21, 2
      %p39 = por %p37, %p38
      %p40 = scmp.ne.s32.totalorder %s29, %s30
      %p41 = scmp.eq.s32.totalorder %s21, 0
      %p42 = por %p40, %p41
      %p43 = scmp.ne.s32.totalorder %s29, %s30
      %p44 = scmp.eq.s32.totalorder %s22, 2
      %p45 = por %p43, %p44
      %p47 = scmp.ne.s32.totalorder %s30, %s46
      %p48 = scmp.eq.s32.totalorder %s22, 0
      %p49 = por %p47, %p48
      %s51 = sadd.s32 %s50, 1
      %p54 = scmp.eq.s32.totalorder %s16, 2
      %p55 = scmp.ne.s32.totalorder %s50, %s52
      %p56 = scmp.eq.s32.totalorder %s16, 0
      %p57 = por %p55, %p56
      %p58 = scmp.ne.s32.totalorder %s50, %s52
      %p59 = scmp.eq.s32.totalorder %s21, 2
      %p60 = por %p58, %p59
      %p61 = scmp.ne.s32.totalorder %s52, %s53
      %p62 = scmp.eq.s32.totalorder %s21, 0
      %p63 = por %p61, %p62
      %p64 = scmp.ne.s32.totalorder %s52, %s53
      %p65 = scmp.eq.s32.totalorder %s22, 2
      %p66 = por %p64, %p65
      %p68 = scmp.ne.s32.totalorder %s53, %s67
      %p69 = scmp.eq.s32.totalorder %s22, 0
      %p70 = por %p68, %p69
      %s72 = sadd.s32 %s71, 1
      %p75 = scmp.eq.s32.totalorder %s16, 2
      %p76 = scmp.ne.s32.totalorder %s71, %s73
      %p77 = scmp.eq.s32.totalorder %s16, 0
      %p78 = por %p76, %p77
      %p79 = scmp.ne.s32.totalorder %s71, %s73
      %p80 = scmp.eq.s32.totalorder %s21, 2
      %p81 = por %p79, %p80
      %p82 = scmp.ne.s32.totalorder %s73, %s74
      %p83 = scmp.eq.s32.totalorder %s21, 0
      %p84 = por %p82, %p83
      %p85 = scmp.ne.s32.totalorder %s73, %s74
      %p86 = scmp.eq.s32.totalorder %s22, 2
      %p87 = por %p85, %p86
      %p89 = scmp.ne.s32.totalorder %s74, %s88
      %p90 = scmp.eq.s32.totalorder %s22, 0
      %p91 = por %p89, %p90
      %s92 = ssub.s32 %s16, %s23
      %p93 = scmp.eq.s32.totalorder %s92, 0
      %s95 = sadd.s32 %s94, 1
      %s96 = scalar_select %p93, %s94, %s95
      %p99 = pneg %p93
      %p100 = scmp.eq.s32.totalorder %s16, 2
      %p101 = por %p99, %p100
      %p102 = scmp.ne.s32.totalorder %s94, %s97
      %p103 = scmp.eq.s32.totalorder %s16, 0
      %p104 = por %p102, %p103
      %p105 = scmp.ne.s32.totalorder %s94, %s97
      %p106 = scmp.eq.s32.totalorder %s21, 2
      %p107 = por %p105, %p106
      %p108 = scmp.ne.s32.totalorder %s97, %s98
      %p109 = scmp.eq.s32.totalorder %s21, 0
      %p110 = por %p108, %p109
      %p111 = scmp.ne.s32.totalorder %s97, %s98
      %p112 = scmp.eq.s32.totalorder %s22, 2
      %p113 = por %p111, %p112
      %p115 = scmp.ne.s32.totalorder %s98, %s114
      %p116 = scmp.eq.s32.totalorder %s22, 0
      %p117 = por %p115, %p116
      %p118 = scmp.le.s32.totalorder 1, %s16
      %p119 = scmp.lt.s32.totalorder %s16, 4
      %p120 = pnand %p118, %p119
      %p121 = pneg %p120
      // Predicated region
      $region9: #{tpu_custom_call.1} parent=5 // pred_check
        _
      $region10: #{tpu_custom_call.1} parent=5 // pred_check_branch
        %123 = sbr.rel (%p120) target = $region12
      $region11: #{tpu_custom_call.1} parent=5 // pred_region
        %s124 = ssub.s32 %s16, 1
        // Predicated region
        $region13: #{tpu_custom_call.1} parent=11 // pred_check
          %p125 = pneg %p63
        $region14: #{tpu_custom_call.1} parent=11 // pred_check_branch
          %127 = sbr.rel (%p125) target = $region16
        $region15: #{tpu_custom_call.1} parent=11 // pred_region
          %129 = vsyncadd [#allocation6], 0
          %s130 = sshll.u32 %s1, 4
          %s131 = int_to_ptr.hbm [resolvable:$true] %s130
          %s132 = sshll.u32 [#allocation5], 4
          %s133 = int_to_ptr.vmem [resolvable:$true] %s132
          %138 = dma.hbm_to_vmem [thread:$0]  %s131, 15360, %s133, [#allocation6], 64, 64, 4
        $region16: #{tpu_custom_call.1} parent=11 // pred_fallthru
          _
        // Predicated region
        $region17: #{tpu_custom_call.1} parent=11 // pred_check
          %p139 = pneg %p84
        $region18: #{tpu_custom_call.1} parent=11 // pred_check_branch
          %141 = sbr.rel (%p139) target = $region20
        $region19: #{tpu_custom_call.1} parent=11 // pred_region
          %143 = vsyncadd [#allocation6], 0
          %s145 = sshll.u32 %s2, 4
          %s146 = int_to_ptr.hbm [resolvable:$true] %s145
          %s147 = sshll.u32 [#allocation7], 4
          %s148 = int_to_ptr.vmem [resolvable:$true] %s147
          %150 = dma.hbm_to_vmem [thread:$0]  %s146, 16, %s148, [#allocation6]
        $region20: #{tpu_custom_call.1} parent=11 // pred_fallthru
          _
      $region12: #{tpu_custom_call.1} parent=5 // pred_fallthru
        _
      %p151 = scmp.lt.s32.totalorder %s16, 3
      // Predicated region
      $region21: #{tpu_custom_call.1} parent=5 // pred_check
        %p152 = pneg %p151
      $region22: #{tpu_custom_call.1} parent=5 // pred_check_branch
        %154 = sbr.rel (%p152) target = $region24
      $region23: #{tpu_custom_call.1} parent=5 // pred_region
        // Predicated region
        $region25: #{tpu_custom_call.1} parent=23 // pred_check
          %p155 = pneg %p36
        $region26: #{tpu_custom_call.1} parent=23 // pred_check_branch
          %157 = sbr.rel (%p155) target = $region28
        $region27: #{tpu_custom_call.1} parent=23 // pred_region
          %s158 = sand.u32 %s26, 1
          %s159 = scalar_lea.sflag [#allocation3], %s158
          %s160 = sand.u32 %s26, 1
          %s161 = smul.addr %s160, 1920
          %s162 = scalar_lea.vmem [#allocation2], %s161
          %s163 = smul.u32 16, %s16
          %s164 = ssub.s32 40, %s163
          %p165 = scmp.lt.s32.totalorder %s164, 16
          %s166 = scalar_select %p165, %s164, 16
          %s167 = smul.u32 4, %s166
          %s168 = smul.u32 %s167, 2
          %s169 = smul.u32 %s168, 15
          %s170 = ssub.s32 1920, %s169
          %s171 = sshll.u32 %s170, 4
          %172 = vsyncadd %s159, %s171
          %p173 = scmp.ne.s32.totalorder 0, %s169
          %s174 = smul.addr %s163, 30
          %s175 = smul.addr %s174, 4
          %s176 = scalar_lea.hbm %s0, %s175
          %s177 = smul.u32 %s166, 2
          %s178 = smul.u32 60, %s177
          %s179 = sshll.u32 %s176, 4
          %s180 = int_to_ptr.hbm [resolvable:$true] %s179
          %s181 = sshll.u32 %s162, 4
          %s182 = int_to_ptr.vmem [resolvable:$true] %s181
          %s183 = sshll.u32 %s178, 4
          %187 = dma.hbm_to_vmem [thread:$0]  (%p173), %s180, %s183, %s182, %s159, 960, 960, 60
        $region28: #{tpu_custom_call.1} parent=23 // pred_fallthru
          _
      $region24: #{tpu_custom_call.1} parent=5 // pred_fallthru
        _
      %p188 = scmp.le.s32.totalorder 1, %s16
      %p189 = scmp.lt.s32.totalorder %s16, 4
      %p190 = pnand %p188, %p189
      %p191 = pneg %p190
      // Predicated region
      $region29: #{tpu_custom_call.1} parent=5 // pred_check
        _
      $region30: #{tpu_custom_call.1} parent=5 // pred_check_branch
        %193 = sbr.rel (%p190) target = $region32
      $region31: #{tpu_custom_call.1} parent=5 // pred_region
        %s194 = ssub.s32 %s16, 1
        %s195 = sand.u32 %s29, 1
        %s196 = scalar_lea.sflag [#allocation3], %s195
        %s197 = sand.u32 %s29, 1
        %s198 = smul.addr %s197, 1920
        %s199 = scalar_lea.vmem [#allocation2], %s198
        // Predicated region
        $region33: #{tpu_custom_call.1} parent=31 // pred_check
          %p200 = pneg %p42
        $region34: #{tpu_custom_call.1} parent=31 // pred_check_branch
          %202 = sbr.rel (%p200) target = $region36
        $region35: #{tpu_custom_call.1} parent=31 // pred_region
          %204 = dma.done %s196, 30720
        $region36: #{tpu_custom_call.1} parent=31 // pred_fallthru
          _
        // Predicated region
        $region37: #{tpu_custom_call.1} parent=31 // pred_check
          %p205 = pneg %p63
        $region38: #{tpu_custom_call.1} parent=31 // pred_check_branch
          %207 = sbr.rel (%p205) target = $region40
        $region39: #{tpu_custom_call.1} parent=31 // pred_region
          %209 = dma.done [#allocation6], 15360
        $region40: #{tpu_custom_call.1} parent=31 // pred_fallthru
          _
        // Predicated region
        $region41: #{tpu_custom_call.1} parent=31 // pred_check
          %p210 = pneg %p84
        $region42: #{tpu_custom_call.1} parent=31 // pred_check_branch
          %212 = sbr.rel (%p210) target = $region44
        $region43: #{tpu_custom_call.1} parent=31 // pred_region
          %214 = dma.done [#allocation6], 16
        $region44: #{tpu_custom_call.1} parent=31 // pred_fallthru
          _
        %s215 = sand.u32 %s29, 1
        %s216 = scalar_lea.sflag [#allocation3], %s215
        %s217 = sand.u32 %s29, 1
        %s218 = smul.addr %s217, 1920
        %s219 = scalar_lea.vmem [#allocation2], %s218
        %p220 = pneg %p42
        %p221 = pneg %p39
        %p222 = pneg %p63
        %p223 = pneg %p60
        %p224 = pneg %p84
        %p225 = pneg %p81
        %p226 = pneg %p110
        %p227 = pneg %p107
        %s228 = sand.u32 %s97, 1
        %s229 = scalar_lea.sflag [#allocation4], %s228
        %s230 = sand.u32 %s97, 1
        %s231 = smul.addr %s230, 16
        %s232 = scalar_lea.vmem [#allocation8], %s231
        %s233 = smul.u32 16, %s21
        %s234 = ssub.s32 40, %s233
        %p235 = scmp.lt.s32.totalorder %s234, 16
        %s236 = scalar_select %p235, %s234, 16
        %s237 = smul.u32 4, %s236
        %s238 = smul.u32 %s237, 2
        %s239 = smul.u32 %s238, 15
        %s240 = smul.u32 2, %s21
        %s241 = ssub.s32 5, %s240
        %p242 = scmp.lt.s32.totalorder %s241, 2
        %s243 = scalar_select %p242, %s241, 2
        %s244 = smul.u32 8, %s243
        %v245 = vld [vmem:[#allocation5] sm:$0xf]
        %v246 = vld [vmem:[#allocation5 + $0x4] sm:$0xf]
        %v247 = vld [vmem:[#allocation5 + $0x8] sm:$0xf]
        %v248 = vld [vmem:[#allocation5 + $0xc] sm:$0xf]
        %v249 = vld [vmem:[#allocation5 + $0x10] sm:$0xf]
        %v250 = vld [vmem:[#allocation5 + $0x14] sm:$0xf]
        %v251 = vld [vmem:[#allocation5 + $0x18] sm:$0xf]
        %v252 = vld [vmem:[#allocation5 + $0x1c] sm:$0xf]
        %v253 = vld [vmem:[#allocation5 + $0x20] sm:$0xf]
        %v254 = vld [vmem:[#allocation5 + $0x24] sm:$0xf]
        %v255 = vld [vmem:[#allocation5 + $0x28] sm:$0xf]
        %v256 = vld [vmem:[#allocation5 + $0x2c] sm:$0xf]
        %v257 = vld [vmem:[#allocation5 + $0x30] sm:$0xf]
        %v258 = vld [vmem:[#allocation5 + $0x34] sm:$0xf]
        %v259 = vld [vmem:[#allocation5 + $0x38] sm:$0xf]
        %v260 = vld [vmem:[#allocation5 + $0x3c] sm:$0xf]
        %v261 = vld [vmem:[#allocation5 + $0x40] sm:$0xf]
        %v262 = vld [vmem:[#allocation5 + $0x44] sm:$0xf]
        %v263 = vld [vmem:[#allocation5 + $0x48] sm:$0xf]
        %v264 = vld [vmem:[#allocation5 + $0x4c] sm:$0xf]
        %v265 = vld [vmem:[#allocation5 + $0x50] sm:$0xf]
        %v266 = vld [vmem:[#allocation5 + $0x54] sm:$0xf]
        %v267 = vld [vmem:[#allocation5 + $0x58] sm:$0xf]
        %v268 = vld [vmem:[#allocation5 + $0x5c] sm:$0xf]
        %v269 = vld [vmem:[#allocation5 + $0x60] sm:$0xf]
        %v270 = vld [vmem:[#allocation5 + $0x64] sm:$0xf]
        %v271 = vld [vmem:[#allocation5 + $0x68] sm:$0xf]
        %v272 = vld [vmem:[#allocation5 + $0x6c] sm:$0xf]
        %v273 = vld [vmem:[#allocation5 + $0x70] sm:$0xf]
        %v274 = vld [vmem:[#allocation5 + $0x74] sm:$0xf]
        %v275 = vld [vmem:[#allocation5 + $0x78] sm:$0xf]
        %v276 = vld [vmem:[#allocation5 + $0x7c] sm:$0xf]
        %v277 = vld [vmem:[#allocation5 + $0x80] sm:$0xf]
        %v278 = vld [vmem:[#allocation5 + $0x84] sm:$0xf]
        %v279 = vld [vmem:[#allocation5 + $0x88] sm:$0xf]
        %v280 = vld [vmem:[#allocation5 + $0x8c] sm:$0xf]
        %v281 = vld [vmem:[#allocation5 + $0x90] sm:$0xf]
        %v282 = vld [vmem:[#allocation5 + $0x94] sm:$0xf]
        %v283 = vld [vmem:[#allocation5 + $0x98] sm:$0xf]
        %v284 = vld [vmem:[#allocation5 + $0x9c] sm:$0xf]
        %v285 = vld [vmem:[#allocation5 + $0xa0] sm:$0xf]
        %v286 = vld [vmem:[#allocation5 + $0xa4] sm:$0xf]
        %v287 = vld [vmem:[#allocation5 + $0xa8] sm:$0xf]
        %v288 = vld [vmem:[#allocation5 + $0xac] sm:$0xf]
        %v289 = vld [vmem:[#allocation5 + $0xb0] sm:$0xf]
        %v290 = vld [vmem:[#allocation5 + $0xb4] sm:$0xf]
        %v291 = vld [vmem:[#allocation5 + $0xb8] sm:$0xf]
        %v292 = vld [vmem:[#allocation5 + $0xbc] sm:$0xf]
        %v293 = vld [vmem:[#allocation5 + $0xc0] sm:$0xf]
        %v294 = vld [vmem:[#allocation5 + $0xc4] sm:$0xf]
        %v295 = vld [vmem:[#allocation5 + $0xc8] sm:$0xf]
        %v296 = vld [vmem:[#allocation5 + $0xcc] sm:$0xf]
        %v297 = vld [vmem:[#allocation5 + $0xd0] sm:$0xf]
        %v298 = vld [vmem:[#allocation5 + $0xd4] sm:$0xf]
        %v299 = vld [vmem:[#allocation5 + $0xd8] sm:$0xf]
        %v300 = vld [vmem:[#allocation5 + $0xdc] sm:$0xf]
        %v301 = vld [vmem:[#allocation5 + $0xe0] sm:$0xf]
        %v302 = vld [vmem:[#allocation5 + $0xe4] sm:$0xf]
        %v303 = vld [vmem:[#allocation5 + $0xe8] sm:$0xf]
        %v304 = vld [vmem:[#allocation5 + $0xec] sm:$0xf]
        %v305 = vld [vmem:[#allocation5 + $0xf0] sm:$0xf]
        %v306 = vld [vmem:[#allocation5 + $0xf4] sm:$0xf]
        %v307 = vld [vmem:[#allocation5 + $0xf8] sm:$0xf]
        %v308 = vld [vmem:[#allocation5 + $0xfc] sm:$0xf]
        %v309 = vld [vmem:[#allocation5 + $0x100] sm:$0xf]
        %v310 = vld [vmem:[#allocation5 + $0x104] sm:$0xf]
        %v311 = vld [vmem:[#allocation5 + $0x108] sm:$0xf]
        %v312 = vld [vmem:[#allocation5 + $0x10c] sm:$0xf]
        %v313 = vld [vmem:[#allocation5 + $0x110] sm:$0xf]
        %v314 = vld [vmem:[#allocation5 + $0x114] sm:$0xf]
        %v315 = vld [vmem:[#allocation5 + $0x118] sm:$0xf]
        %v316 = vld [vmem:[#allocation5 + $0x11c] sm:$0xf]
        %v317 = vld [vmem:[#allocation5 + $0x120] sm:$0xf]
        %v318 = vld [vmem:[#allocation5 + $0x124] sm:$0xf]
        %v319 = vld [vmem:[#allocation5 + $0x128] sm:$0xf]
        %v320 = vld [vmem:[#allocation5 + $0x12c] sm:$0xf]
        %v321 = vld [vmem:[#allocation5 + $0x130] sm:$0xf]
        %v322 = vld [vmem:[#allocation5 + $0x134] sm:$0xf]
        %v323 = vld [vmem:[#allocation5 + $0x138] sm:$0xf]
        %v324 = vld [vmem:[#allocation5 + $0x13c] sm:$0xf]
        %v325 = vld [vmem:[#allocation5 + $0x140] sm:$0xf]
        %v326 = vld [vmem:[#allocation5 + $0x144] sm:$0xf]
        %v327 = vld [vmem:[#allocation5 + $0x148] sm:$0xf]
        %v328 = vld [vmem:[#allocation5 + $0x14c] sm:$0xf]
        %v329 = vld [vmem:[#allocation5 + $0x150] sm:$0xf]
        %v330 = vld [vmem:[#allocation5 + $0x154] sm:$0xf]
        %v331 = vld [vmem:[#allocation5 + $0x158] sm:$0xf]
        %v332 = vld [vmem:[#allocation5 + $0x15c] sm:$0xf]
        %v333 = vld [vmem:[#allocation5 + $0x160] sm:$0xf]
        %v334 = vld [vmem:[#allocation5 + $0x164] sm:$0xf]
        %v335 = vld [vmem:[#allocation5 + $0x168] sm:$0xf]
        %v336 = vld [vmem:[#allocation5 + $0x16c] sm:$0xf]
        %v337 = vld [vmem:[#allocation5 + $0x170] sm:$0xf]
        %v338 = vld [vmem:[#allocation5 + $0x174] sm:$0xf]
        %v339 = vld [vmem:[#allocation5 + $0x178] sm:$0xf]
        %v340 = vld [vmem:[#allocation5 + $0x17c] sm:$0xf]
        %v341 = vld [vmem:[#allocation5 + $0x180] sm:$0xf]
        %v342 = vld [vmem:[#allocation5 + $0x184] sm:$0xf]
        %v343 = vld [vmem:[#allocation5 + $0x188] sm:$0xf]
        %v344 = vld [vmem:[#allocation5 + $0x18c] sm:$0xf]
        %v345 = vld [vmem:[#allocation5 + $0x190] sm:$0xf]
        %v346 = vld [vmem:[#allocation5 + $0x194] sm:$0xf]
        %v347 = vld [vmem:[#allocation5 + $0x198] sm:$0xf]
        %v348 = vld [vmem:[#allocation5 + $0x19c] sm:$0xf]
        %v349 = vld [vmem:[#allocation5 + $0x1a0] sm:$0xf]
        %v350 = vld [vmem:[#allocation5 + $0x1a4] sm:$0xf]
        %v351 = vld [vmem:[#allocation5 + $0x1a8] sm:$0xf]
        %v352 = vld [vmem:[#allocation5 + $0x1ac] sm:$0xf]
        %v353 = vld [vmem:[#allocation5 + $0x1b0] sm:$0xf]
        %v354 = vld [vmem:[#allocation5 + $0x1b4] sm:$0xf]
        %v355 = vld [vmem:[#allocation5 + $0x1b8] sm:$0xf]
        %v356 = vld [vmem:[#allocation5 + $0x1bc] sm:$0xf]
        %v357 = vld [vmem:[#allocation5 + $0x1c0] sm:$0xf]
        %v358 = vld [vmem:[#allocation5 + $0x1c4] sm:$0xf]
        %v359 = vld [vmem:[#allocation5 + $0x1c8] sm:$0xf]
        %v360 = vld [vmem:[#allocation5 + $0x1cc] sm:$0xf]
        %v361 = vld [vmem:[#allocation5 + $0x1d0] sm:$0xf]
        %v362 = vld [vmem:[#allocation5 + $0x1d4] sm:$0xf]
        %v363 = vld [vmem:[#allocation5 + $0x1d8] sm:$0xf]
        %v364 = vld [vmem:[#allocation5 + $0x1dc] sm:$0xf]
        %v365 = vld [vmem:[#allocation5 + $0x1e0] sm:$0xf]
        %v366 = vld [vmem:[#allocation5 + $0x1e4] sm:$0xf]
        %v367 = vld [vmem:[#allocation5 + $0x1e8] sm:$0xf]
        %v368 = vld [vmem:[#allocation5 + $0x1ec] sm:$0xf]
        %v369 = vld [vmem:[#allocation5 + $0x1f0] sm:$0xf]
        %v370 = vld [vmem:[#allocation5 + $0x1f4] sm:$0xf]
        %v371 = vld [vmem:[#allocation5 + $0x1f8] sm:$0xf]
        %v372 = vld [vmem:[#allocation5 + $0x1fc] sm:$0xf]
        %v373 = vld [vmem:[#allocation5 + $0x200] sm:$0xf]
        %v374 = vld [vmem:[#allocation5 + $0x204] sm:$0xf]
        %v375 = vld [vmem:[#allocation5 + $0x208] sm:$0xf]
        %v376 = vld [vmem:[#allocation5 + $0x20c] sm:$0xf]
        %v377 = vld [vmem:[#allocation5 + $0x210] sm:$0xf]
        %v378 = vld [vmem:[#allocation5 + $0x214] sm:$0xf]
        %v379 = vld [vmem:[#allocation5 + $0x218] sm:$0xf]
        %v380 = vld [vmem:[#allocation5 + $0x21c] sm:$0xf]
        %v381 = vld [vmem:[#allocation5 + $0x220] sm:$0xf]
        %v382 = vld [vmem:[#allocation5 + $0x224] sm:$0xf]
        %v383 = vld [vmem:[#allocation5 + $0x228] sm:$0xf]
        %v384 = vld [vmem:[#allocation5 + $0x22c] sm:$0xf]
        %v385 = vld [vmem:[#allocation5 + $0x230] sm:$0xf]
        %v386 = vld [vmem:[#allocation5 + $0x234] sm:$0xf]
        %v387 = vld [vmem:[#allocation5 + $0x238] sm:$0xf]
        %v388 = vld [vmem:[#allocation5 + $0x23c] sm:$0xf]
        %v389 = vld [vmem:[#allocation5 + $0x240] sm:$0xf]
        %v390 = vld [vmem:[#allocation5 + $0x244] sm:$0xf]
        %v391 = vld [vmem:[#allocation5 + $0x248] sm:$0xf]
        %v392 = vld [vmem:[#allocation5 + $0x24c] sm:$0xf]
        %v393 = vld [vmem:[#allocation5 + $0x250] sm:$0xf]
        %v394 = vld [vmem:[#allocation5 + $0x254] sm:$0xf]
        %v395 = vld [vmem:[#allocation5 + $0x258] sm:$0xf]
        %v396 = vld [vmem:[#allocation5 + $0x25c] sm:$0xf]
        %v397 = vld [vmem:[#allocation5 + $0x260] sm:$0xf]
        %v398 = vld [vmem:[#allocation5 + $0x264] sm:$0xf]
        %v399 = vld [vmem:[#allocation5 + $0x268] sm:$0xf]
        %v400 = vld [vmem:[#allocation5 + $0x26c] sm:$0xf]
        %v401 = vld [vmem:[#allocation5 + $0x270] sm:$0xf]
        %v402 = vld [vmem:[#allocation5 + $0x274] sm:$0xf]
        %v403 = vld [vmem:[#allocation5 + $0x278] sm:$0xf]
        %v404 = vld [vmem:[#allocation5 + $0x27c] sm:$0xf]
        %v405 = vld [vmem:[#allocation5 + $0x280] sm:$0xf]
        %v406 = vld [vmem:[#allocation5 + $0x284] sm:$0xf]
        %v407 = vld [vmem:[#allocation5 + $0x288] sm:$0xf]
        %v408 = vld [vmem:[#allocation5 + $0x28c] sm:$0xf]
        %v409 = vld [vmem:[#allocation5 + $0x290] sm:$0xf]
        %v410 = vld [vmem:[#allocation5 + $0x294] sm:$0xf]
        %v411 = vld [vmem:[#allocation5 + $0x298] sm:$0xf]
        %v412 = vld [vmem:[#allocation5 + $0x29c] sm:$0xf]
        %v413 = vld [vmem:[#allocation5 + $0x2a0] sm:$0xf]
        %v414 = vld [vmem:[#allocation5 + $0x2a4] sm:$0xf]
        %v415 = vld [vmem:[#allocation5 + $0x2a8] sm:$0xf]
        %v416 = vld [vmem:[#allocation5 + $0x2ac] sm:$0xf]
        %v417 = vld [vmem:[#allocation5 + $0x2b0] sm:$0xf]
        %v418 = vld [vmem:[#allocation5 + $0x2b4] sm:$0xf]
        %v419 = vld [vmem:[#allocation5 + $0x2b8] sm:$0xf]
        %v420 = vld [vmem:[#allocation5 + $0x2bc] sm:$0xf]
        %v421 = vld [vmem:[#allocation5 + $0x2c0] sm:$0xf]
        %v422 = vld [vmem:[#allocation5 + $0x2c4] sm:$0xf]
        %v423 = vld [vmem:[#allocation5 + $0x2c8] sm:$0xf]
        %v424 = vld [vmem:[#allocation5 + $0x2cc] sm:$0xf]
        %v425 = vld [vmem:[#allocation5 + $0x2d0] sm:$0xf]
        %v426 = vld [vmem:[#allocation5 + $0x2d4] sm:$0xf]
        %v427 = vld [vmem:[#allocation5 + $0x2d8] sm:$0xf]
        %v428 = vld [vmem:[#allocation5 + $0x2dc] sm:$0xf]
        %v429 = vld [vmem:[#allocation5 + $0x2e0] sm:$0xf]
        %v430 = vld [vmem:[#allocation5 + $0x2e4] sm:$0xf]
        %v431 = vld [vmem:[#allocation5 + $0x2e8] sm:$0xf]
        %v432 = vld [vmem:[#allocation5 + $0x2ec] sm:$0xf]
        %v433 = vld [vmem:[#allocation5 + $0x2f0] sm:$0xf]
        %v434 = vld [vmem:[#allocation5 + $0x2f4] sm:$0xf]
        %v435 = vld [vmem:[#allocation5 + $0x2f8] sm:$0xf]
        %v436 = vld [vmem:[#allocation5 + $0x2fc] sm:$0xf]
        %v437 = vld [vmem:[#allocation5 + $0x300] sm:$0xf]
        %v438 = vld [vmem:[#allocation5 + $0x304] sm:$0xf]
        %v439 = vld [vmem:[#allocation5 + $0x308] sm:$0xf]
        %v440 = vld [vmem:[#allocation5 + $0x30c] sm:$0xf]
        %v441 = vld [vmem:[#allocation5 + $0x310] sm:$0xf]
        %v442 = vld [vmem:[#allocation5 + $0x314] sm:$0xf]
        %v443 = vld [vmem:[#allocation5 + $0x318] sm:$0xf]
        %v444 = vld [vmem:[#allocation5 + $0x31c] sm:$0xf]
        %v445 = vld [vmem:[#allocation5 + $0x320] sm:$0xf]
        %v446 = vld [vmem:[#allocation5 + $0x324] sm:$0xf]
        %v447 = vld [vmem:[#allocation5 + $0x328] sm:$0xf]
        %v448 = vld [vmem:[#allocation5 + $0x32c] sm:$0xf]
        %v449 = vld [vmem:[#allocation5 + $0x330] sm:$0xf]
        %v450 = vld [vmem:[#allocation5 + $0x334] sm:$0xf]
        %v451 = vld [vmem:[#allocation5 + $0x338] sm:$0xf]
        %v452 = vld [vmem:[#allocation5 + $0x33c] sm:$0xf]
        %v453 = vld [vmem:[#allocation5 + $0x340] sm:$0xf]
        %v454 = vld [vmem:[#allocation5 + $0x344] sm:$0xf]
        %v455 = vld [vmem:[#allocation5 + $0x348] sm:$0xf]
        %v456 = vld [vmem:[#allocation5 + $0x34c] sm:$0xf]
        %v457 = vld [vmem:[#allocation5 + $0x350] sm:$0xf]
        %v458 = vld [vmem:[#allocation5 + $0x354] sm:$0xf]
        %v459 = vld [vmem:[#allocation5 + $0x358] sm:$0xf]
        %v460 = vld [vmem:[#allocation5 + $0x35c] sm:$0xf]
        %v461 = vld [vmem:[#allocation5 + $0x360] sm:$0xf]
        %v462 = vld [vmem:[#allocation5 + $0x364] sm:$0xf]
        %v463 = vld [vmem:[#allocation5 + $0x368] sm:$0xf]
        %v464 = vld [vmem:[#allocation5 + $0x36c] sm:$0xf]
        %v465 = vld [vmem:[#allocation5 + $0x370] sm:$0xf]
        %v466 = vld [vmem:[#allocation5 + $0x374] sm:$0xf]
        %v467 = vld [vmem:[#allocation5 + $0x378] sm:$0xf]
        %v468 = vld [vmem:[#allocation5 + $0x37c] sm:$0xf]
        %v469 = vld [vmem:[#allocation5 + $0x380] sm:$0xf]
        %v470 = vld [vmem:[#allocation5 + $0x384] sm:$0xf]
        %v471 = vld [vmem:[#allocation5 + $0x388] sm:$0xf]
        %v472 = vld [vmem:[#allocation5 + $0x38c] sm:$0xf]
        %v473 = vld [vmem:[#allocation5 + $0x390] sm:$0xf]
        %v474 = vld [vmem:[#allocation5 + $0x394] sm:$0xf]
        %v475 = vld [vmem:[#allocation5 + $0x398] sm:$0xf]
        %v476 = vld [vmem:[#allocation5 + $0x39c] sm:$0xf]
        %v477 = vld [vmem:[#allocation5 + $0x3a0] sm:$0xf]
        %v478 = vld [vmem:[#allocation5 + $0x3a4] sm:$0xf]
        %v479 = vld [vmem:[#allocation5 + $0x3a8] sm:$0xf]
        %v480 = vld [vmem:[#allocation5 + $0x3ac] sm:$0xf]
        %v481 = vld [vmem:[#allocation5 + $0x3b0] sm:$0xf]
        %v482 = vld [vmem:[#allocation5 + $0x3b4] sm:$0xf]
        %v483 = vld [vmem:[#allocation5 + $0x3b8] sm:$0xf]
        %v484 = vld [vmem:[#allocation5 + $0x3bc] sm:$0xf]
        %v485 = vld [vmem:[#allocation7] sm:$0x1]
        %v486 = vld [vmem:[%s199] sm:$0xff]
        %v487 = vld [vmem:[%s199 + $0x8] sm:$0xff]
        %v488 = vld [vmem:[%s199 + $0x10] sm:$0xff]
        %v489 = vld [vmem:[%s199 + $0x18] sm:$0xff]
        %v490 = vld [vmem:[%s199 + $0x20] sm:$0xff]
        %v491 = vld [vmem:[%s199 + $0x28] sm:$0xff]
        %v492 = vld [vmem:[%s199 + $0x30] sm:$0xff]
        %v493 = vld [vmem:[%s199 + $0x38] sm:$0xf]
        %v494 = vld [vmem:[%s199 + $0x3c] sm:$0xff]
        %v495 = vld [vmem:[%s199 + $0x44] sm:$0xff]
        %v496 = vld [vmem:[%s199 + $0x4c] sm:$0xff]
        %v497 = vld [vmem:[%s199 + $0x54] sm:$0xff]
        %v498 = vld [vmem:[%s199 + $0x5c] sm:$0xff]
        %v499 = vld [vmem:[%s199 + $0x64] sm:$0xff]
        %v500 = vld [vmem:[%s199 + $0x6c] sm:$0xff]
        %v501 = vld [vmem:[%s199 + $0x74] sm:$0xf]
        %v502 = vld [vmem:[%s199 + $0x78] sm:$0xff]
        %v503 = vld [vmem:[%s199 + $0x80] sm:$0xff]
        %v504 = vld [vmem:[%s199 + $0x88] sm:$0xff]
        %v505 = vld [vmem:[%s199 + $0x90] sm:$0xff]
        %v506 = vld [vmem:[%s199 + $0x98] sm:$0xff]
        %v507 = vld [vmem:[%s199 + $0xa0] sm:$0xff]
        %v508 = vld [vmem:[%s199 + $0xa8] sm:$0xff]
        %v509 = vld [vmem:[%s199 + $0xb0] sm:$0xf]
        %v510 = vld [vmem:[%s199 + $0xb4] sm:$0xff]
        %v511 = vld [vmem:[%s199 + $0xbc] sm:$0xff]
        %v512 = vld [vmem:[%s199 + $0xc4] sm:$0xff]
        %v513 = vld [vmem:[%s199 + $0xcc] sm:$0xff]
        %v514 = vld [vmem:[%s199 + $0xd4] sm:$0xff]
        %v515 = vld [vmem:[%s199 + $0xdc] sm:$0xff]
        %v516 = vld [vmem:[%s199 + $0xe4] sm:$0xff]
        %v517 = vld [vmem:[%s199 + $0xec] sm:$0xf]
        %v518 = vld [vmem:[%s199 + $0xf0] sm:$0xff]
        %v519 = vld [vmem:[%s199 + $0xf8] sm:$0xff]
        %v520 = vld [vmem:[%s199 + $0x100] sm:$0xff]
        %v521 = vld [vmem:[%s199 + $0x108] sm:$0xff]
        %v522 = vld [vmem:[%s199 + $0x110] sm:$0xff]
        %v523 = vld [vmem:[%s199 + $0x118] sm:$0xff]
        %v524 = vld [vmem:[%s199 + $0x120] sm:$0xff]
        %v525 = vld [vmem:[%s199 + $0x128] sm:$0xf]
        %v526 = vld [vmem:[%s199 + $0x12c] sm:$0xff]
        %v527 = vld [vmem:[%s199 + $0x134] sm:$0xff]
        %v528 = vld [vmem:[%s199 + $0x13c] sm:$0xff]
        %v529 = vld [vmem:[%s199 + $0x144] sm:$0xff]
        %v530 = vld [vmem:[%s199 + $0x14c] sm:$0xff]
        %v531 = vld [vmem:[%s199 + $0x154] sm:$0xff]
        %v532 = vld [vmem:[%s199 + $0x15c] sm:$0xff]
        %v533 = vld [vmem:[%s199 + $0x164] sm:$0xf]
        %v534 = vld [vmem:[%s199 + $0x168] sm:$0xff]
        %v535 = vld [vmem:[%s199 + $0x170] sm:$0xff]
        %v536 = vld [vmem:[%s199 + $0x178] sm:$0xff]
        %v537 = vld [vmem:[%s199 + $0x180] sm:$0xff]
        %v538 = vld [vmem:[%s199 + $0x188] sm:$0xff]
        %v539 = vld [vmem:[%s199 + $0x190] sm:$0xff]
        %v540 = vld [vmem:[%s199 + $0x198] sm:$0xff]
        %v541 = vld [vmem:[%s199 + $0x1a0] sm:$0xf]
        %v542 = vld [vmem:[%s199 + $0x1a4] sm:$0xff]
        %v543 = vld [vmem:[%s199 + $0x1ac] sm:$0xff]
        %v544 = vld [vmem:[%s199 + $0x1b4] sm:$0xff]
        %v545 = vld [vmem:[%s199 + $0x1bc] sm:$0xff]
        %v546 = vld [vmem:[%s199 + $0x1c4] sm:$0xff]
        %v547 = vld [vmem:[%s199 + $0x1cc] sm:$0xff]
        %v548 = vld [vmem:[%s199 + $0x1d4] sm:$0xff]
        %v549 = vld [vmem:[%s199 + $0x1dc] sm:$0xf]
        %v550 = vld [vmem:[%s199 + $0x1e0] sm:$0xff]
        %v551 = vld [vmem:[%s199 + $0x1e8] sm:$0xff]
        %v552 = vld [vmem:[%s199 + $0x1f0] sm:$0xff]
        %v553 = vld [vmem:[%s199 + $0x1f8] sm:$0xff]
        %v554 = vld [vmem:[%s199 + $0x200] sm:$0xff]
        %v555 = vld [vmem:[%s199 + $0x208] sm:$0xff]
        %v556 = vld [vmem:[%s199 + $0x210] sm:$0xff]
        %v557 = vld [vmem:[%s199 + $0x218] sm:$0xf]
        %v558 = vld [vmem:[%s199 + $0x21c] sm:$0xff]
        %v559 = vld [vmem:[%s199 + $0x224] sm:$0xff]
        %v560 = vld [vmem:[%s199 + $0x22c] sm:$0xff]
        %v561 = vld [vmem:[%s199 + $0x234] sm:$0xff]
        %v562 = vld [vmem:[%s199 + $0x23c] sm:$0xff]
        %v563 = vld [vmem:[%s199 + $0x244] sm:$0xff]
        %v564 = vld [vmem:[%s199 + $0x24c] sm:$0xff]
        %v565 = vld [vmem:[%s199 + $0x254] sm:$0xf]
        %v566 = vld [vmem:[%s199 + $0x258] sm:$0xff]
        %v567 = vld [vmem:[%s199 + $0x260] sm:$0xff]
        %v568 = vld [vmem:[%s199 + $0x268] sm:$0xff]
        %v569 = vld [vmem:[%s199 + $0x270] sm:$0xff]
        %v570 = vld [vmem:[%s199 + $0x278] sm:$0xff]
        %v571 = vld [vmem:[%s199 + $0x280] sm:$0xff]
        %v572 = vld [vmem:[%s199 + $0x288] sm:$0xff]
        %v573 = vld [vmem:[%s199 + $0x290] sm:$0xf]
        %v574 = vld [vmem:[%s199 + $0x294] sm:$0xff]
        %v575 = vld [vmem:[%s199 + $0x29c] sm:$0xff]
        %v576 = vld [vmem:[%s199 + $0x2a4] sm:$0xff]
        %v577 = vld [vmem:[%s199 + $0x2ac] sm:$0xff]
        %v578 = vld [vmem:[%s199 + $0x2b4] sm:$0xff]
        %v579 = vld [vmem:[%s199 + $0x2bc] sm:$0xff]
        %v580 = vld [vmem:[%s199 + $0x2c4] sm:$0xff]
        %v581 = vld [vmem:[%s199 + $0x2cc] sm:$0xf]
        %v582 = vld [vmem:[%s199 + $0x2d0] sm:$0xff]
        %v583 = vld [vmem:[%s199 + $0x2d8] sm:$0xff]
        %v584 = vld [vmem:[%s199 + $0x2e0] sm:$0xff]
        %v585 = vld [vmem:[%s199 + $0x2e8] sm:$0xff]
        %v586 = vld [vmem:[%s199 + $0x2f0] sm:$0xff]
        %v587 = vld [vmem:[%s199 + $0x2f8] sm:$0xff]
        %v588 = vld [vmem:[%s199 + $0x300] sm:$0xff]
        %v589 = vld [vmem:[%s199 + $0x308] sm:$0xf]
        %v590 = vld [vmem:[%s199 + $0x30c] sm:$0xff]
        %v591 = vld [vmem:[%s199 + $0x314] sm:$0xff]
        %v592 = vld [vmem:[%s199 + $0x31c] sm:$0xff]
        %v593 = vld [vmem:[%s199 + $0x324] sm:$0xff]
        %v594 = vld [vmem:[%s199 + $0x32c] sm:$0xff]
        %v595 = vld [vmem:[%s199 + $0x334] sm:$0xff]
        %v596 = vld [vmem:[%s199 + $0x33c] sm:$0xff]
        %v597 = vld [vmem:[%s199 + $0x344] sm:$0xf]
        %v598 = vld [vmem:[%s199 + $0x348] sm:$0xff]
        %v599 = vld [vmem:[%s199 + $0x350] sm:$0xff]
        %v600 = vld [vmem:[%s199 + $0x358] sm:$0xff]
        %v601 = vld [vmem:[%s199 + $0x360] sm:$0xff]
        %v602 = vld [vmem:[%s199 + $0x368] sm:$0xff]
        %v603 = vld [vmem:[%s199 + $0x370] sm:$0xff]
        %v604 = vld [vmem:[%s199 + $0x378] sm:$0xff]
        %v605 = vld [vmem:[%s199 + $0x380] sm:$0xf]
        %v606 = vld [vmem:[%s199 + $0x384] sm:$0xff]
        %v607 = vld [vmem:[%s199 + $0x38c] sm:$0xff]
        %v608 = vld [vmem:[%s199 + $0x394] sm:$0xff]
        %v609 = vld [vmem:[%s199 + $0x39c] sm:$0xff]
        %v610 = vld [vmem:[%s199 + $0x3a4] sm:$0xff]
        %v611 = vld [vmem:[%s199 + $0x3ac] sm:$0xff]
        %v612 = vld [vmem:[%s199 + $0x3b4] sm:$0xff]
        %v613 = vld [vmem:[%s199 + $0x3bc] sm:$0xf]
        %v742 = vunpack.c.l.b16 %v486
        %v743 = vunpack.c.h.b16 %v486
        %v744 = vunpack.c.l.b16 %v487
        %v745 = vunpack.c.h.b16 %v487
        %v746 = vunpack.c.l.b16 %v488
        %v747 = vunpack.c.h.b16 %v488
        %v748 = vunpack.c.l.b16 %v489
        %v749 = vunpack.c.h.b16 %v489
        %v750 = vunpack.c.l.b16 %v490
        %v751 = vunpack.c.h.b16 %v490
        %v752 = vunpack.c.l.b16 %v491
        %v753 = vunpack.c.h.b16 %v491
        %v754 = vunpack.c.l.b16 %v492
        %v755 = vunpack.c.h.b16 %v492
        %v756 = vunpack.c.l.b16 %v493
        %v757 = vunpack.c.l.b16 %v494
        %v758 = vunpack.c.h.b16 %v494
        %v759 = vunpack.c.l.b16 %v495
        %v760 = vunpack.c.h.b16 %v495
        %v761 = vunpack.c.l.b16 %v496
        %v762 = vunpack.c.h.b16 %v496
        %v763 = vunpack.c.l.b16 %v497
        %v764 = vunpack.c.h.b16 %v497
        %v765 = vunpack.c.l.b16 %v498
        %v766 = vunpack.c.h.b16 %v498
        %v767 = vunpack.c.l.b16 %v499
        %v768 = vunpack.c.h.b16 %v499
        %v769 = vunpack.c.l.b16 %v500
        %v770 = vunpack.c.h.b16 %v500
        %v771 = vunpack.c.l.b16 %v501
        %v772 = vunpack.c.l.b16 %v502
        %v773 = vunpack.c.h.b16 %v502
        %v774 = vunpack.c.l.b16 %v503
        %v775 = vunpack.c.h.b16 %v503
        %v776 = vunpack.c.l.b16 %v504
        %v777 = vunpack.c.h.b16 %v504
        %v778 = vunpack.c.l.b16 %v505
        %v779 = vunpack.c.h.b16 %v505
        %v780 = vunpack.c.l.b16 %v506
        %v781 = vunpack.c.h.b16 %v506
        %v782 = vunpack.c.l.b16 %v507
        %v783 = vunpack.c.h.b16 %v507
        %v784 = vunpack.c.l.b16 %v508
        %v785 = vunpack.c.h.b16 %v508
        %v786 = vunpack.c.l.b16 %v509
        %v787 = vunpack.c.l.b16 %v510
        %v788 = vunpack.c.h.b16 %v510
        %v789 = vunpack.c.l.b16 %v511
        %v790 = vunpack.c.h.b16 %v511
        %v791 = vunpack.c.l.b16 %v512
        %v792 = vunpack.c.h.b16 %v512
        %v793 = vunpack.c.l.b16 %v513
        %v794 = vunpack.c.h.b16 %v513
        %v795 = vunpack.c.l.b16 %v514
        %v796 = vunpack.c.h.b16 %v514
        %v797 = vunpack.c.l.b16 %v515
        %v798 = vunpack.c.h.b16 %v515
        %v799 = vunpack.c.l.b16 %v516
        %v800 = vunpack.c.h.b16 %v516
        %v801 = vunpack.c.l.b16 %v517
        %v802 = vunpack.c.l.b16 %v518
        %v803 = vunpack.c.h.b16 %v518
        %v804 = vunpack.c.l.b16 %v519
        %v805 = vunpack.c.h.b16 %v519
        %v806 = vunpack.c.l.b16 %v520
        %v807 = vunpack.c.h.b16 %v520
        %v808 = vunpack.c.l.b16 %v521
        %v809 = vunpack.c.h.b16 %v521
        %v810 = vunpack.c.l.b16 %v522
        %v811 = vunpack.c.h.b16 %v522
        %v812 = vunpack.c.l.b16 %v523
        %v813 = vunpack.c.h.b16 %v523
        %v814 = vunpack.c.l.b16 %v524
        %v815 = vunpack.c.h.b16 %v524
        %v816 = vunpack.c.l.b16 %v525
        %v817 = vunpack.c.l.b16 %v526
        %v818 = vunpack.c.h.b16 %v526
        %v819 = vunpack.c.l.b16 %v527
        %v820 = vunpack.c.h.b16 %v527
        %v821 = vunpack.c.l.b16 %v528
        %v822 = vunpack.c.h.b16 %v528
        %v823 = vunpack.c.l.b16 %v529
        %v824 = vunpack.c.h.b16 %v529
        %v825 = vunpack.c.l.b16 %v530
        %v826 = vunpack.c.h.b16 %v530
        %v827 = vunpack.c.l.b16 %v531
        %v828 = vunpack.c.h.b16 %v531
        %v829 = vunpack.c.l.b16 %v532
        %v830 = vunpack.c.h.b16 %v532
        %v831 = vunpack.c.l.b16 %v533
        %v832 = vunpack.c.l.b16 %v534
        %v833 = vunpack.c.h.b16 %v534
        %v834 = vunpack.c.l.b16 %v535
        %v835 = vunpack.c.h.b16 %v535
        %v836 = vunpack.c.l.b16 %v536
        %v837 = vunpack.c.h.b16 %v536
        %v838 = vunpack.c.l.b16 %v537
        %v839 = vunpack.c.h.b16 %v537
        %v840 = vunpack.c.l.b16 %v538
        %v841 = vunpack.c.h.b16 %v538
        %v842 = vunpack.c.l.b16 %v539
        %v843 = vunpack.c.h.b16 %v539
        %v844 = vunpack.c.l.b16 %v540
        %v845 = vunpack.c.h.b16 %v540
        %v846 = vunpack.c.l.b16 %v541
        %v847 = vunpack.c.l.b16 %v542
        %v848 = vunpack.c.h.b16 %v542
        %v849 = vunpack.c.l.b16 %v543
        %v850 = vunpack.c.h.b16 %v543
        %v851 = vunpack.c.l.b16 %v544
        %v852 = vunpack.c.h.b16 %v544
        %v853 = vunpack.c.l.b16 %v545
        %v854 = vunpack.c.h.b16 %v545
        %v855 = vunpack.c.l.b16 %v546
        %v856 = vunpack.c.h.b16 %v546
        %v857 = vunpack.c.l.b16 %v547
        %v858 = vunpack.c.h.b16 %v547
        %v859 = vunpack.c.l.b16 %v548
        %v860 = vunpack.c.h.b16 %v548
        %v861 = vunpack.c.l.b16 %v549
        %v862 = vunpack.c.l.b16 %v550
        %v863 = vunpack.c.h.b16 %v550
        %v864 = vunpack.c.l.b16 %v551
        %v865 = vunpack.c.h.b16 %v551
        %v866 = vunpack.c.l.b16 %v552
        %v867 = vunpack.c.h.b16 %v552
        %v868 = vunpack.c.l.b16 %v553
        %v869 = vunpack.c.h.b16 %v553
        %v870 = vunpack.c.l.b16 %v554
        %v871 = vunpack.c.h.b16 %v554
        %v872 = vunpack.c.l.b16 %v555
        %v873 = vunpack.c.h.b16 %v555
        %v874 = vunpack.c.l.b16 %v556
        %v875 = vunpack.c.h.b16 %v556
        %v876 = vunpack.c.l.b16 %v557
        %v877 = vunpack.c.l.b16 %v558
        %v878 = vunpack.c.h.b16 %v558
        %v879 = vunpack.c.l.b16 %v559
        %v880 = vunpack.c.h.b16 %v559
        %v881 = vunpack.c.l.b16 %v560
        %v882 = vunpack.c.h.b16 %v560
        %v883 = vunpack.c.l.b16 %v561
        %v884 = vunpack.c.h.b16 %v561
        %v885 = vunpack.c.l.b16 %v562
        %v886 = vunpack.c.h.b16 %v562
        %v887 = vunpack.c.l.b16 %v563
        %v888 = vunpack.c.h.b16 %v563
        %v889 = vunpack.c.l.b16 %v564
        %v890 = vunpack.c.h.b16 %v564
        %v891 = vunpack.c.l.b16 %v565
        %v892 = vunpack.c.l.b16 %v566
        %v893 = vunpack.c.h.b16 %v566
        %v894 = vunpack.c.l.b16 %v567
        %v895 = vunpack.c.h.b16 %v567
        %v896 = vunpack.c.l.b16 %v568
        %v897 = vunpack.c.h.b16 %v568
        %v898 = vunpack.c.l.b16 %v569
        %v899 = vunpack.c.h.b16 %v569
        %v900 = vunpack.c.l.b16 %v570
        %v901 = vunpack.c.h.b16 %v570
        %v902 = vunpack.c.l.b16 %v571
        %v903 = vunpack.c.h.b16 %v571
        %v904 = vunpack.c.l.b16 %v572
        %v905 = vunpack.c.h.b16 %v572
        %v906 = vunpack.c.l.b16 %v573
        %v907 = vunpack.c.l.b16 %v574
        %v908 = vunpack.c.h.b16 %v574
        %v909 = vunpack.c.l.b16 %v575
        %v910 = vunpack.c.h.b16 %v575
        %v911 = vunpack.c.l.b16 %v576
        %v912 = vunpack.c.h.b16 %v576
        %v913 = vunpack.c.l.b16 %v577
        %v914 = vunpack.c.h.b16 %v577
        %v915 = vunpack.c.l.b16 %v578
        %v916 = vunpack.c.h.b16 %v578
        %v917 = vunpack.c.l.b16 %v579
        %v918 = vunpack.c.h.b16 %v579
        %v919 = vunpack.c.l.b16 %v580
        %v920 = vunpack.c.h.b16 %v580
        %v921 = vunpack.c.l.b16 %v581
        %v922 = vunpack.c.l.b16 %v582
        %v923 = vunpack.c.h.b16 %v582
        %v924 = vunpack.c.l.b16 %v583
        %v925 = vunpack.c.h.b16 %v583
        %v926 = vunpack.c.l.b16 %v584
        %v927 = vunpack.c.h.b16 %v584
        %v928 = vunpack.c.l.b16 %v585
        %v929 = vunpack.c.h.b16 %v585
        %v930 = vunpack.c.l.b16 %v586
        %v931 = vunpack.c.h.b16 %v586
        %v932 = vunpack.c.l.b16 %v587
        %v933 = vunpack.c.h.b16 %v587
        %v934 = vunpack.c.l.b16 %v588
        %v935 = vunpack.c.h.b16 %v588
        %v936 = vunpack.c.l.b16 %v589
        %v937 = vunpack.c.l.b16 %v590
        %v938 = vunpack.c.h.b16 %v590
        %v939 = vunpack.c.l.b16 %v591
        %v940 = vunpack.c.h.b16 %v591
        %v941 = vunpack.c.l.b16 %v592
        %v942 = vunpack.c.h.b16 %v592
        %v943 = vunpack.c.l.b16 %v593
        %v944 = vunpack.c.h.b16 %v593
        %v945 = vunpack.c.l.b16 %v594
        %v946 = vunpack.c.h.b16 %v594
        %v947 = vunpack.c.l.b16 %v595
        %v948 = vunpack.c.h.b16 %v595
        %v949 = vunpack.c.l.b16 %v596
        %v950 = vunpack.c.h.b16 %v596
        %v951 = vunpack.c.l.b16 %v597
        %v952 = vunpack.c.l.b16 %v598
        %v953 = vunpack.c.h.b16 %v598
        %v954 = vunpack.c.l.b16 %v599
        %v955 = vunpack.c.h.b16 %v599
        %v956 = vunpack.c.l.b16 %v600
        %v957 = vunpack.c.h.b16 %v600
        %v958 = vunpack.c.l.b16 %v601
        %v959 = vunpack.c.h.b16 %v601
        %v960 = vunpack.c.l.b16 %v602
        %v961 = vunpack.c.h.b16 %v602
        %v962 = vunpack.c.l.b16 %v603
        %v963 = vunpack.c.h.b16 %v603
        %v964 = vunpack.c.l.b16 %v604
        %v965 = vunpack.c.h.b16 %v604
        %v966 = vunpack.c.l.b16 %v605
        %v967 = vunpack.c.l.b16 %v606
        %v968 = vunpack.c.h.b16 %v606
        %v969 = vunpack.c.l.b16 %v607
        %v970 = vunpack.c.h.b16 %v607
        %v971 = vunpack.c.l.b16 %v608
        %v972 = vunpack.c.h.b16 %v608
        %v973 = vunpack.c.l.b16 %v609
        %v974 = vunpack.c.h.b16 %v609
        %v975 = vunpack.c.l.b16 %v610
        %v976 = vunpack.c.h.b16 %v610
        %v977 = vunpack.c.l.b16 %v611
        %v978 = vunpack.c.h.b16 %v611
        %v979 = vunpack.c.l.b16 %v612
        %v980 = vunpack.c.h.b16 %v612
        %v981 = vunpack.c.l.b16 %v613
        %v982 = vpack.c.b16 %v757, %v742
        %v983 = vpack.c.b16 %v758, %v743
        %v984 = vpack.c.b16 %v759, %v744
        %v985 = vpack.c.b16 %v760, %v745
        %v986 = vpack.c.b16 %v761, %v746
        %v987 = vpack.c.b16 %v762, %v747
        %v988 = vpack.c.b16 %v763, %v748
        %v989 = vpack.c.b16 %v764, %v749
        %v990 = vpack.c.b16 %v765, %v750
        %v991 = vpack.c.b16 %v766, %v751
        %v992 = vpack.c.b16 %v767, %v752
        %v993 = vpack.c.b16 %v768, %v753
        %v994 = vpack.c.b16 %v769, %v754
        %v995 = vpack.c.b16 %v770, %v755
        %v996 = vpack.c.b16 %v771, %v756
        %v997 = vpack.c.b16 %v787, %v772
        %v998 = vpack.c.b16 %v788, %v773
        %v999 = vpack.c.b16 %v789, %v774
        %v1000 = vpack.c.b16 %v790, %v775
        %v1001 = vpack.c.b16 %v791, %v776
        %v1002 = vpack.c.b16 %v792, %v777
        %v1003 = vpack.c.b16 %v793, %v778
        %v1004 = vpack.c.b16 %v794, %v779
        %v1005 = vpack.c.b16 %v795, %v780
        %v1006 = vpack.c.b16 %v796, %v781
        %v1007 = vpack.c.b16 %v797, %v782
        %v1008 = vpack.c.b16 %v798, %v783
        %v1009 = vpack.c.b16 %v799, %v784
        %v1010 = vpack.c.b16 %v800, %v785
        %v1011 = vpack.c.b16 %v801, %v786
        %v1012 = vpack.c.b16 %v817, %v802
        %v1013 = vpack.c.b16 %v818, %v803
        %v1014 = vpack.c.b16 %v819, %v804
        %v1015 = vpack.c.b16 %v820, %v805
        %v1016 = vpack.c.b16 %v821, %v806
        %v1017 = vpack.c.b16 %v822, %v807
        %v1018 = vpack.c.b16 %v823, %v808
        %v1019 = vpack.c.b16 %v824, %v809
        %v1020 = vpack.c.b16 %v825, %v810
        %v1021 = vpack.c.b16 %v826, %v811
        %v1022 = vpack.c.b16 %v827, %v812
        %v1023 = vpack.c.b16 %v828, %v813
        %v1024 = vpack.c.b16 %v829, %v814
        %v1025 = vpack.c.b16 %v830, %v815
        %v1026 = vpack.c.b16 %v831, %v816
        %v1027 = vpack.c.b16 %v847, %v832
        %v1028 = vpack.c.b16 %v848, %v833
        %v1029 = vpack.c.b16 %v849, %v834
        %v1030 = vpack.c.b16 %v850, %v835
        %v1031 = vpack.c.b16 %v851, %v836
        %v1032 = vpack.c.b16 %v852, %v837
        %v1033 = vpack.c.b16 %v853, %v838
        %v1034 = vpack.c.b16 %v854, %v839
        %v1035 = vpack.c.b16 %v855, %v840
        %v1036 = vpack.c.b16 %v856, %v841
        %v1037 = vpack.c.b16 %v857, %v842
        %v1038 = vpack.c.b16 %v858, %v843
        %v1039 = vpack.c.b16 %v859, %v844
        %v1040 = vpack.c.b16 %v860, %v845
        %v1041 = vpack.c.b16 %v861, %v846
        %v1042 = vpack.c.b16 %v877, %v862
        %v1043 = vpack.c.b16 %v878, %v863
        %v1044 = vpack.c.b16 %v879, %v864
        %v1045 = vpack.c.b16 %v880, %v865
        %v1046 = vpack.c.b16 %v881, %v866
        %v1047 = vpack.c.b16 %v882, %v867
        %v1048 = vpack.c.b16 %v883, %v868
        %v1049 = vpack.c.b16 %v884, %v869
        %v1050 = vpack.c.b16 %v885, %v870
        %v1051 = vpack.c.b16 %v886, %v871
        %v1052 = vpack.c.b16 %v887, %v872
        %v1053 = vpack.c.b16 %v888, %v873
        %v1054 = vpack.c.b16 %v889, %v874
        %v1055 = vpack.c.b16 %v890, %v875
        %v1056 = vpack.c.b16 %v891, %v876
        %v1057 = vpack.c.b16 %v907, %v892
        %v1058 = vpack.c.b16 %v908, %v893
        %v1059 = vpack.c.b16 %v909, %v894
        %v1060 = vpack.c.b16 %v910, %v895
        %v1061 = vpack.c.b16 %v911, %v896
        %v1062 = vpack.c.b16 %v912, %v897
        %v1063 = vpack.c.b16 %v913, %v898
        %v1064 = vpack.c.b16 %v914, %v899
        %v1065 = vpack.c.b16 %v915, %v900
        %v1066 = vpack.c.b16 %v916, %v901
        %v1067 = vpack.c.b16 %v917, %v902
        %v1068 = vpack.c.b16 %v918, %v903
        %v1069 = vpack.c.b16 %v919, %v904
        %v1070 = vpack.c.b16 %v920, %v905
        %v1071 = vpack.c.b16 %v921, %v906
        %v1072 = vpack.c.b16 %v937, %v922
        %v1073 = vpack.c.b16 %v938, %v923
        %v1074 = vpack.c.b16 %v939, %v924
        %v1075 = vpack.c.b16 %v940, %v925
        %v1076 = vpack.c.b16 %v941, %v926
        %v1077 = vpack.c.b16 %v942, %v927
        %v1078 = vpack.c.b16 %v943, %v928
        %v1079 = vpack.c.b16 %v944, %v929
        %v1080 = vpack.c.b16 %v945, %v930
        %v1081 = vpack.c.b16 %v946, %v931
        %v1082 = vpack.c.b16 %v947, %v932
        %v1083 = vpack.c.b16 %v948, %v933
        %v1084 = vpack.c.b16 %v949, %v934
        %v1085 = vpack.c.b16 %v950, %v935
        %v1086 = vpack.c.b16 %v951, %v936
        %v1087 = vpack.c.b16 %v967, %v952
        %v1088 = vpack.c.b16 %v968, %v953
        %v1089 = vpack.c.b16 %v969, %v954
        %v1090 = vpack.c.b16 %v970, %v955
        %v1091 = vpack.c.b16 %v971, %v956
        %v1092 = vpack.c.b16 %v972, %v957
        %v1093 = vpack.c.b16 %v973, %v958
        %v1094 = vpack.c.b16 %v974, %v959
        %v1095 = vpack.c.b16 %v975, %v960
        %v1096 = vpack.c.b16 %v976, %v961
        %v1097 = vpack.c.b16 %v977, %v962
        %v1098 = vpack.c.b16 %v978, %v963
        %v1099 = vpack.c.b16 %v979, %v964
        %v1100 = vpack.c.b16 %v980, %v965
        %v1101 = vpack.c.b16 %v981, %v966
        %v1462 = vunpack.c.l.b16 %v245
        %v1463 = vunpack.c.l.b16 %v246
        %v1464 = vunpack.c.l.b16 %v247
        %v1465 = vunpack.c.l.b16 %v248
        %v1466 = vunpack.c.l.b16 %v249
        %v1467 = vunpack.c.l.b16 %v250
        %v1468 = vunpack.c.l.b16 %v251
        %v1469 = vunpack.c.l.b16 %v252
        %v1470 = vunpack.c.l.b16 %v253
        %v1471 = vunpack.c.l.b16 %v254
        %v1472 = vunpack.c.l.b16 %v255
        %v1473 = vunpack.c.l.b16 %v256
        %v1474 = vunpack.c.l.b16 %v257
        %v1475 = vunpack.c.l.b16 %v258
        %v1476 = vunpack.c.l.b16 %v259
        %v1477 = vunpack.c.l.b16 %v260
        %v1478 = vunpack.c.l.b16 %v261
        %v1479 = vunpack.c.l.b16 %v262
        %v1480 = vunpack.c.l.b16 %v263
        %v1481 = vunpack.c.l.b16 %v264
        %v1482 = vunpack.c.l.b16 %v265
        %v1483 = vunpack.c.l.b16 %v266
        %v1484 = vunpack.c.l.b16 %v267
        %v1485 = vunpack.c.l.b16 %v268
        %v1486 = vunpack.c.l.b16 %v269
        %v1487 = vunpack.c.l.b16 %v270
        %v1488 = vunpack.c.l.b16 %v271
        %v1489 = vunpack.c.l.b16 %v272
        %v1490 = vunpack.c.l.b16 %v273
        %v1491 = vunpack.c.l.b16 %v274
        %v1492 = vunpack.c.l.b16 %v275
        %v1493 = vunpack.c.l.b16 %v276
        %v1494 = vunpack.c.l.b16 %v277
        %v1495 = vunpack.c.l.b16 %v278
        %v1496 = vunpack.c.l.b16 %v279
        %v1497 = vunpack.c.l.b16 %v280
        %v1498 = vunpack.c.l.b16 %v281
        %v1499 = vunpack.c.l.b16 %v282
        %v1500 = vunpack.c.l.b16 %v283
        %v1501 = vunpack.c.l.b16 %v284
        %v1502 = vunpack.c.l.b16 %v285
        %v1503 = vunpack.c.l.b16 %v286
        %v1504 = vunpack.c.l.b16 %v287
        %v1505 = vunpack.c.l.b16 %v288
        %v1506 = vunpack.c.l.b16 %v289
        %v1507 = vunpack.c.l.b16 %v290
        %v1508 = vunpack.c.l.b16 %v291
        %v1509 = vunpack.c.l.b16 %v292
        %v1510 = vunpack.c.l.b16 %v293
        %v1511 = vunpack.c.l.b16 %v294
        %v1512 = vunpack.c.l.b16 %v295
        %v1513 = vunpack.c.l.b16 %v296
        %v1514 = vunpack.c.l.b16 %v297
        %v1515 = vunpack.c.l.b16 %v298
        %v1516 = vunpack.c.l.b16 %v299
        %v1517 = vunpack.c.l.b16 %v300
        %v1518 = vunpack.c.l.b16 %v301
        %v1519 = vunpack.c.l.b16 %v302
        %v1520 = vunpack.c.l.b16 %v303
        %v1521 = vunpack.c.l.b16 %v304
        %v1522 = vunpack.c.l.b16 %v305
        %v1523 = vunpack.c.l.b16 %v306
        %v1524 = vunpack.c.l.b16 %v307
        %v1525 = vunpack.c.l.b16 %v308
        %v1526 = vunpack.c.l.b16 %v309
        %v1527 = vunpack.c.l.b16 %v310
        %v1528 = vunpack.c.l.b16 %v311
        %v1529 = vunpack.c.l.b16 %v312
        %v1530 = vunpack.c.l.b16 %v313
        %v1531 = vunpack.c.l.b16 %v314
        %v1532 = vunpack.c.l.b16 %v315
        %v1533 = vunpack.c.l.b16 %v316
        %v1534 = vunpack.c.l.b16 %v317
        %v1535 = vunpack.c.l.b16 %v318
        %v1536 = vunpack.c.l.b16 %v319
        %v1537 = vunpack.c.l.b16 %v320
        %v1538 = vunpack.c.l.b16 %v321
        %v1539 = vunpack.c.l.b16 %v322
        %v1540 = vunpack.c.l.b16 %v323
        %v1541 = vunpack.c.l.b16 %v324
        %v1542 = vunpack.c.l.b16 %v325
        %v1543 = vunpack.c.l.b16 %v326
        %v1544 = vunpack.c.l.b16 %v327
        %v1545 = vunpack.c.l.b16 %v328
        %v1546 = vunpack.c.l.b16 %v329
        %v1547 = vunpack.c.l.b16 %v330
        %v1548 = vunpack.c.l.b16 %v331
        %v1549 = vunpack.c.l.b16 %v332
        %v1550 = vunpack.c.l.b16 %v333
        %v1551 = vunpack.c.l.b16 %v334
        %v1552 = vunpack.c.l.b16 %v335
        %v1553 = vunpack.c.l.b16 %v336
        %v1554 = vunpack.c.l.b16 %v337
        %v1555 = vunpack.c.l.b16 %v338
        %v1556 = vunpack.c.l.b16 %v339
        %v1557 = vunpack.c.l.b16 %v340
        %v1558 = vunpack.c.l.b16 %v341
        %v1559 = vunpack.c.l.b16 %v342
        %v1560 = vunpack.c.l.b16 %v343
        %v1561 = vunpack.c.l.b16 %v344
        %v1562 = vunpack.c.l.b16 %v345
        %v1563 = vunpack.c.l.b16 %v346
        %v1564 = vunpack.c.l.b16 %v347
        %v1565 = vunpack.c.l.b16 %v348
        %v1566 = vunpack.c.l.b16 %v349
        %v1567 = vunpack.c.l.b16 %v350
        %v1568 = vunpack.c.l.b16 %v351
        %v1569 = vunpack.c.l.b16 %v352
        %v1570 = vunpack.c.l.b16 %v353
        %v1571 = vunpack.c.l.b16 %v354
        %v1572 = vunpack.c.l.b16 %v355
        %v1573 = vunpack.c.l.b16 %v356
        %v1574 = vunpack.c.l.b16 %v357
        %v1575 = vunpack.c.l.b16 %v358
        %v1576 = vunpack.c.l.b16 %v359
        %v1577 = vunpack.c.l.b16 %v360
        %v1578 = vunpack.c.l.b16 %v361
        %v1579 = vunpack.c.l.b16 %v362
        %v1580 = vunpack.c.l.b16 %v363
        %v1581 = vunpack.c.l.b16 %v364
        %v1582 = vunpack.c.l.b16 %v365
        %v1583 = vunpack.c.l.b16 %v366
        %v1584 = vunpack.c.l.b16 %v367
        %v1585 = vunpack.c.l.b16 %v368
        %v1586 = vunpack.c.l.b16 %v369
        %v1587 = vunpack.c.l.b16 %v370
        %v1588 = vunpack.c.l.b16 %v371
        %v1589 = vunpack.c.l.b16 %v372
        %v1590 = vunpack.c.l.b16 %v373
        %v1591 = vunpack.c.l.b16 %v374
        %v1592 = vunpack.c.l.b16 %v375
        %v1593 = vunpack.c.l.b16 %v376
        %v1594 = vunpack.c.l.b16 %v377
        %v1595 = vunpack.c.l.b16 %v378
        %v1596 = vunpack.c.l.b16 %v379
        %v1597 = vunpack.c.l.b16 %v380
        %v1598 = vunpack.c.l.b16 %v381
        %v1599 = vunpack.c.l.b16 %v382
        %v1600 = vunpack.c.l.b16 %v383
        %v1601 = vunpack.c.l.b16 %v384
        %v1602 = vunpack.c.l.b16 %v385
        %v1603 = vunpack.c.l.b16 %v386
        %v1604 = vunpack.c.l.b16 %v387
        %v1605 = vunpack.c.l.b16 %v388
        %v1606 = vunpack.c.l.b16 %v389
        %v1607 = vunpack.c.l.b16 %v390
        %v1608 = vunpack.c.l.b16 %v391
        %v1609 = vunpack.c.l.b16 %v392
        %v1610 = vunpack.c.l.b16 %v393
        %v1611 = vunpack.c.l.b16 %v394
        %v1612 = vunpack.c.l.b16 %v395
        %v1613 = vunpack.c.l.b16 %v396
        %v1614 = vunpack.c.l.b16 %v397
        %v1615 = vunpack.c.l.b16 %v398
        %v1616 = vunpack.c.l.b16 %v399
        %v1617 = vunpack.c.l.b16 %v400
        %v1618 = vunpack.c.l.b16 %v401
        %v1619 = vunpack.c.l.b16 %v402
        %v1620 = vunpack.c.l.b16 %v403
        %v1621 = vunpack.c.l.b16 %v404
        %v1622 = vunpack.c.l.b16 %v405
        %v1623 = vunpack.c.l.b16 %v406
        %v1624 = vunpack.c.l.b16 %v407
        %v1625 = vunpack.c.l.b16 %v408
        %v1626 = vunpack.c.l.b16 %v409
        %v1627 = vunpack.c.l.b16 %v410
        %v1628 = vunpack.c.l.b16 %v411
        %v1629 = vunpack.c.l.b16 %v412
        %v1630 = vunpack.c.l.b16 %v413
        %v1631 = vunpack.c.l.b16 %v414
        %v1632 = vunpack.c.l.b16 %v415
        %v1633 = vunpack.c.l.b16 %v416
        %v1634 = vunpack.c.l.b16 %v417
        %v1635 = vunpack.c.l.b16 %v418
        %v1636 = vunpack.c.l.b16 %v419
        %v1637 = vunpack.c.l.b16 %v420
        %v1638 = vunpack.c.l.b16 %v421
        %v1639 = vunpack.c.l.b16 %v422
        %v1640 = vunpack.c.l.b16 %v423
        %v1641 = vunpack.c.l.b16 %v424
        %v1642 = vunpack.c.l.b16 %v425
        %v1643 = vunpack.c.l.b16 %v426
        %v1644 = vunpack.c.l.b16 %v427
        %v1645 = vunpack.c.l.b16 %v428
        %v1646 = vunpack.c.l.b16 %v429
        %v1647 = vunpack.c.l.b16 %v430
        %v1648 = vunpack.c.l.b16 %v431
        %v1649 = vunpack.c.l.b16 %v432
        %v1650 = vunpack.c.l.b16 %v433
        %v1651 = vunpack.c.l.b16 %v434
        %v1652 = vunpack.c.l.b16 %v435
        %v1653 = vunpack.c.l.b16 %v436
        %v1654 = vunpack.c.l.b16 %v437
        %v1655 = vunpack.c.l.b16 %v438
        %v1656 = vunpack.c.l.b16 %v439
        %v1657 = vunpack.c.l.b16 %v440
        %v1658 = vunpack.c.l.b16 %v441
        %v1659 = vunpack.c.l.b16 %v442
        %v1660 = vunpack.c.l.b16 %v443
        %v1661 = vunpack.c.l.b16 %v444
        %v1662 = vunpack.c.l.b16 %v445
        %v1663 = vunpack.c.l.b16 %v446
        %v1664 = vunpack.c.l.b16 %v447
        %v1665 = vunpack.c.l.b16 %v448
        %v1666 = vunpack.c.l.b16 %v449
        %v1667 = vunpack.c.l.b16 %v450
        %v1668 = vunpack.c.l.b16 %v451
        %v1669 = vunpack.c.l.b16 %v452
        %v1670 = vunpack.c.l.b16 %v453
        %v1671 = vunpack.c.l.b16 %v454
        %v1672 = vunpack.c.l.b16 %v455
        %v1673 = vunpack.c.l.b16 %v456
        %v1674 = vunpack.c.l.b16 %v457
        %v1675 = vunpack.c.l.b16 %v458
        %v1676 = vunpack.c.l.b16 %v459
        %v1677 = vunpack.c.l.b16 %v460
        %v1678 = vunpack.c.l.b16 %v461
        %v1679 = vunpack.c.l.b16 %v462
        %v1680 = vunpack.c.l.b16 %v463
        %v1681 = vunpack.c.l.b16 %v464
        %v1682 = vunpack.c.l.b16 %v465
        %v1683 = vunpack.c.l.b16 %v466
        %v1684 = vunpack.c.l.b16 %v467
        %v1685 = vunpack.c.l.b16 %v468
        %v1686 = vunpack.c.l.b16 %v469
        %v1687 = vunpack.c.l.b16 %v470
        %v1688 = vunpack.c.l.b16 %v471
        %v1689 = vunpack.c.l.b16 %v472
        %v1690 = vunpack.c.l.b16 %v473
        %v1691 = vunpack.c.l.b16 %v474
        %v1692 = vunpack.c.l.b16 %v475
        %v1693 = vunpack.c.l.b16 %v476
        %v1694 = vunpack.c.l.b16 %v477
        %v1695 = vunpack.c.l.b16 %v478
        %v1696 = vunpack.c.l.b16 %v479
        %v1697 = vunpack.c.l.b16 %v480
        %v1698 = vunpack.c.l.b16 %v481
        %v1699 = vunpack.c.l.b16 %v482
        %v1700 = vunpack.c.l.b16 %v483
        %v1701 = vunpack.c.l.b16 %v484
        %v1702 = vpack.c.b16 %v1463, %v1462
        %v1703 = vpack.c.b16 %v1465, %v1464
        %v1704 = vpack.c.b16 %v1467, %v1466
        %v1705 = vpack.c.b16 %v1469, %v1468
        %v1706 = vpack.c.b16 %v1471, %v1470
        %v1707 = vpack.c.b16 %v1473, %v1472
        %v1708 = vpack.c.b16 %v1475, %v1474
        %v1709 = vpack.c.b16 %v1477, %v1476
        %v1710 = vpack.c.b16 %v1479, %v1478
        %v1711 = vpack.c.b16 %v1481, %v1480
        %v1712 = vpack.c.b16 %v1483, %v1482
        %v1713 = vpack.c.b16 %v1485, %v1484
        %v1714 = vpack.c.b16 %v1487, %v1486
        %v1715 = vpack.c.b16 %v1489, %v1488
        %v1716 = vpack.c.b16 %v1491, %v1490
        %v1717 = vpack.c.b16 %v1493, %v1492
        %v1718 = vpack.c.b16 %v1495, %v1494
        %v1719 = vpack.c.b16 %v1497, %v1496
        %v1720 = vpack.c.b16 %v1499, %v1498
        %v1721 = vpack.c.b16 %v1501, %v1500
        %v1722 = vpack.c.b16 %v1503, %v1502
        %v1723 = vpack.c.b16 %v1505, %v1504
        %v1724 = vpack.c.b16 %v1507, %v1506
        %v1725 = vpack.c.b16 %v1509, %v1508
        %v1726 = vpack.c.b16 %v1511, %v1510
        %v1727 = vpack.c.b16 %v1513, %v1512
        %v1728 = vpack.c.b16 %v1515, %v1514
        %v1729 = vpack.c.b16 %v1517, %v1516
        %v1730 = vpack.c.b16 %v1519, %v1518
        %v1731 = vpack.c.b16 %v1521, %v1520
        %v1732 = vpack.c.b16 %v1523, %v1522
        %v1733 = vpack.c.b16 %v1525, %v1524
        %v1734 = vpack.c.b16 %v1527, %v1526
        %v1735 = vpack.c.b16 %v1529, %v1528
        %v1736 = vpack.c.b16 %v1531, %v1530
        %v1737 = vpack.c.b16 %v1533, %v1532
        %v1738 = vpack.c.b16 %v1535, %v1534
        %v1739 = vpack.c.b16 %v1537, %v1536
        %v1740 = vpack.c.b16 %v1539, %v1538
        %v1741 = vpack.c.b16 %v1541, %v1540
        %v1742 = vpack.c.b16 %v1543, %v1542
        %v1743 = vpack.c.b16 %v1545, %v1544
        %v1744 = vpack.c.b16 %v1547, %v1546
        %v1745 = vpack.c.b16 %v1549, %v1548
        %v1746 = vpack.c.b16 %v1551, %v1550
        %v1747 = vpack.c.b16 %v1553, %v1552
        %v1748 = vpack.c.b16 %v1555, %v1554
        %v1749 = vpack.c.b16 %v1557, %v1556
        %v1750 = vpack.c.b16 %v1559, %v1558
        %v1751 = vpack.c.b16 %v1561, %v1560
        %v1752 = vpack.c.b16 %v1563, %v1562
        %v1753 = vpack.c.b16 %v1565, %v1564
        %v1754 = vpack.c.b16 %v1567, %v1566
        %v1755 = vpack.c.b16 %v1569, %v1568
        %v1756 = vpack.c.b16 %v1571, %v1570
        %v1757 = vpack.c.b16 %v1573, %v1572
        %v1758 = vpack.c.b16 %v1575, %v1574
        %v1759 = vpack.c.b16 %v1577, %v1576
        %v1760 = vpack.c.b16 %v1579, %v1578
        %v1761 = vpack.c.b16 %v1581, %v1580
        %v1762 = vpack.c.b16 %v1583, %v1582
        %v1763 = vpack.c.b16 %v1585, %v1584
        %v1764 = vpack.c.b16 %v1587, %v1586
        %v1765 = vpack.c.b16 %v1589, %v1588
        %v1766 = vpack.c.b16 %v1591, %v1590
        %v1767 = vpack.c.b16 %v1593, %v1592
        %v1768 = vpack.c.b16 %v1595, %v1594
        %v1769 = vpack.c.b16 %v1597, %v1596
        %v1770 = vpack.c.b16 %v1599, %v1598
        %v1771 = vpack.c.b16 %v1601, %v1600
        %v1772 = vpack.c.b16 %v1603, %v1602
        %v1773 = vpack.c.b16 %v1605, %v1604
        %v1774 = vpack.c.b16 %v1607, %v1606
        %v1775 = vpack.c.b16 %v1609, %v1608
        %v1776 = vpack.c.b16 %v1611, %v1610
        %v1777 = vpack.c.b16 %v1613, %v1612
        %v1778 = vpack.c.b16 %v1615, %v1614
        %v1779 = vpack.c.b16 %v1617, %v1616
        %v1780 = vpack.c.b16 %v1619, %v1618
        %v1781 = vpack.c.b16 %v1621, %v1620
        %v1782 = vpack.c.b16 %v1623, %v1622
        %v1783 = vpack.c.b16 %v1625, %v1624
        %v1784 = vpack.c.b16 %v1627, %v1626
        %v1785 = vpack.c.b16 %v1629, %v1628
        %v1786 = vpack.c.b16 %v1631, %v1630
        %v1787 = vpack.c.b16 %v1633, %v1632
        %v1788 = vpack.c.b16 %v1635, %v1634
        %v1789 = vpack.c.b16 %v1637, %v1636
        %v1790 = vpack.c.b16 %v1639, %v1638
        %v1791 = vpack.c.b16 %v1641, %v1640
        %v1792 = vpack.c.b16 %v1643, %v1642
        %v1793 = vpack.c.b16 %v1645, %v1644
        %v1794 = vpack.c.b16 %v1647, %v1646
        %v1795 = vpack.c.b16 %v1649, %v1648
        %v1796 = vpack.c.b16 %v1651, %v1650
        %v1797 = vpack.c.b16 %v1653, %v1652
        %v1798 = vpack.c.b16 %v1655, %v1654
        %v1799 = vpack.c.b16 %v1657, %v1656
        %v1800 = vpack.c.b16 %v1659, %v1658
        %v1801 = vpack.c.b16 %v1661, %v1660
        %v1802 = vpack.c.b16 %v1663, %v1662
        %v1803 = vpack.c.b16 %v1665, %v1664
        %v1804 = vpack.c.b16 %v1667, %v1666
        %v1805 = vpack.c.b16 %v1669, %v1668
        %v1806 = vpack.c.b16 %v1671, %v1670
        %v1807 = vpack.c.b16 %v1673, %v1672
        %v1808 = vpack.c.b16 %v1675, %v1674
        %v1809 = vpack.c.b16 %v1677, %v1676
        %v1810 = vpack.c.b16 %v1679, %v1678
        %v1811 = vpack.c.b16 %v1681, %v1680
        %v1812 = vpack.c.b16 %v1683, %v1682
        %v1813 = vpack.c.b16 %v1685, %v1684
        %v1814 = vpack.c.b16 %v1687, %v1686
        %v1815 = vpack.c.b16 %v1689, %v1688
        %v1816 = vpack.c.b16 %v1691, %v1690
        %v1817 = vpack.c.b16 %v1693, %v1692
        %v1818 = vpack.c.b16 %v1695, %v1694
        %v1819 = vpack.c.b16 %v1697, %v1696
        %v1820 = vpack.c.b16 %v1699, %v1698
        %v1821 = vpack.c.b16 %v1701, %v1700
        %1942 = vmatpush.bf16.msra.mxu0 %v1709
        %1943 = vmatpush.bf16.msra.mxu0 %v1708
        %1944 = vmatpush.bf16.msra.mxu0 %v1707
        %1945 = vmatpush.bf16.msra.mxu0 %v1706
        %1946 = vmatpush.bf16.msra.mxu0 %v1705
        %1947 = vmatpush.bf16.msra.mxu0 %v1704
        %1948 = vmatpush.bf16.msra.mxu0 %v1703
        %1949 = vmatpush.bf16.msra.mxu0 %v1702
        %1950 = vmatmul.bf16.gmra.mxu0 %v982
        %v1951 = vpop.f32.mrf.mxu0
        %v1952 = vadd.f32 0.0, %v1951
        %v1953 = vpop.f32.mrf.mxu0
        %v1954 = vadd.f32 0.0, %v1953
        %1955 = vmatmul.bf16.gmra.mxu0 %v997
        %v1956 = vpop.f32.mrf.mxu0
        %v1957 = vadd.f32 0.0, %v1956
        %v1958 = vpop.f32.mrf.mxu0
        %v1959 = vadd.f32 0.0, %v1958
        %1960 = vmatmul.bf16.gmra.mxu0 %v1012
        %v1961 = vpop.f32.mrf.mxu0
        %v1962 = vadd.f32 0.0, %v1961
        %v1963 = vpop.f32.mrf.mxu0
        %v1964 = vadd.f32 0.0, %v1963
        %1965 = vmatmul.bf16.gmra.mxu0 %v1027
        %v1966 = vpop.f32.mrf.mxu0
        %v1967 = vadd.f32 0.0, %v1966
        %v1968 = vpop.f32.mrf.mxu0
        %v1969 = vadd.f32 0.0, %v1968
        %1970 = vmatmul.bf16.gmra.mxu0 %v1042
        %v1971 = vpop.f32.mrf.mxu0
        %v1972 = vadd.f32 0.0, %v1971
        %v1973 = vpop.f32.mrf.mxu0
        %v1974 = vadd.f32 0.0, %v1973
        %1975 = vmatmul.bf16.gmra.mxu0 %v1057
        %v1976 = vpop.f32.mrf.mxu0
        %v1977 = vadd.f32 0.0, %v1976
        %v1978 = vpop.f32.mrf.mxu0
        %v1979 = vadd.f32 0.0, %v1978
        %1980 = vmatmul.bf16.gmra.mxu0 %v1072
        %v1981 = vpop.f32.mrf.mxu0
        %v1982 = vadd.f32 0.0, %v1981
        %v1983 = vpop.f32.mrf.mxu0
        %v1984 = vadd.f32 0.0, %v1983
        %1985 = vmatmul.bf16.gmra.mxu0 %v1087
        %v1986 = vpop.f32.mrf.mxu0
        %v1987 = vadd.f32 0.0, %v1986
        %v1988 = vpop.f32.mrf.mxu0
        %v1989 = vadd.f32 0.0, %v1988
        %1990 = vdwg.mxu0
        %1991 = vmatpush.bf16.msra.mxu0 %v1717
        %1992 = vmatpush.bf16.msra.mxu0 %v1716
        %1993 = vmatpush.bf16.msra.mxu0 %v1715
        %1994 = vmatpush.bf16.msra.mxu0 %v1714
        %1995 = vmatpush.bf16.msra.mxu0 %v1713
        %1996 = vmatpush.bf16.msra.mxu0 %v1712
        %1997 = vmatpush.bf16.msra.mxu0 %v1711
        %1998 = vmatpush.bf16.msra.mxu0 %v1710
        %1999 = vmatmul.bf16.gmra.mxu0 %v983
        %v2000 = vpop.f32.mrf.mxu0
        %v2001 = vadd.f32 %v1952, %v2000
        %v2002 = vpop.f32.mrf.mxu0
        %v2003 = vadd.f32 %v1954, %v2002
        %2004 = vmatmul.bf16.gmra.mxu0 %v998
        %v2005 = vpop.f32.mrf.mxu0
        %v2006 = vadd.f32 %v1957, %v2005
        %v2007 = vpop.f32.mrf.mxu0
        %v2008 = vadd.f32 %v1959, %v2007
        %2009 = vmatmul.bf16.gmra.mxu0 %v1013
        %v2010 = vpop.f32.mrf.mxu0
        %v2011 = vadd.f32 %v1962, %v2010
        %v2012 = vpop.f32.mrf.mxu0
        %v2013 = vadd.f32 %v1964, %v2012
        %2014 = vmatmul.bf16.gmra.mxu0 %v1028
        %v2015 = vpop.f32.mrf.mxu0
        %v2016 = vadd.f32 %v1967, %v2015
        %v2017 = vpop.f32.mrf.mxu0
        %v2018 = vadd.f32 %v1969, %v2017
        %2019 = vmatmul.bf16.gmra.mxu0 %v1043
        %v2020 = vpop.f32.mrf.mxu0
        %v2021 = vadd.f32 %v1972, %v2020
        %v2022 = vpop.f32.mrf.mxu0
        %v2023 = vadd.f32 %v1974, %v2022
        %2024 = vmatmul.bf16.gmra.mxu0 %v1058
        %v2025 = vpop.f32.mrf.mxu0
        %v2026 = vadd.f32 %v1977, %v2025
        %v2027 = vpop.f32.mrf.mxu0
        %v2028 = vadd.f32 %v1979, %v2027
        %2029 = vmatmul.bf16.gmra.mxu0 %v1073
        %v2030 = vpop.f32.mrf.mxu0
        %v2031 = vadd.f32 %v1982, %v2030
        %v2032 = vpop.f32.mrf.mxu0
        %v2033 = vadd.f32 %v1984, %v2032
        %2034 = vmatmul.bf16.gmra.mxu0 %v1088
        %v2035 = vpop.f32.mrf.mxu0
        %v2036 = vadd.f32 %v1987, %v2035
        %v2037 = vpop.f32.mrf.mxu0
        %v2038 = vadd.f32 %v1989, %v2037
        %2039 = vdwg.mxu0
        %2040 = vmatpush.bf16.msra.mxu0 %v1725
        %2041 = vmatpush.bf16.msra.mxu0 %v1724
        %2042 = vmatpush.bf16.msra.mxu0 %v1723
        %2043 = vmatpush.bf16.msra.mxu0 %v1722
        %2044 = vmatpush.bf16.msra.mxu0 %v1721
        %2045 = vmatpush.bf16.msra.mxu0 %v1720
        %2046 = vmatpush.bf16.msra.mxu0 %v1719
        %2047 = vmatpush.bf16.msra.mxu0 %v1718
        %2048 = vmatmul.bf16.gmra.mxu0 %v984
        %v2049 = vpop.f32.mrf.mxu0
        %v2050 = vadd.f32 %v2001, %v2049
        %v2051 = vpop.f32.mrf.mxu0
        %v2052 = vadd.f32 %v2003, %v2051
        %2053 = vmatmul.bf16.gmra.mxu0 %v999
        %v2054 = vpop.f32.mrf.mxu0
        %v2055 = vadd.f32 %v2006, %v2054
        %v2056 = vpop.f32.mrf.mxu0
        %v2057 = vadd.f32 %v2008, %v2056
        %2058 = vmatmul.bf16.gmra.mxu0 %v1014
        %v2059 = vpop.f32.mrf.mxu0
        %v2060 = vadd.f32 %v2011, %v2059
        %v2061 = vpop.f32.mrf.mxu0
        %v2062 = vadd.f32 %v2013, %v2061
        %2063 = vmatmul.bf16.gmra.mxu0 %v1029
        %v2064 = vpop.f32.mrf.mxu0
        %v2065 = vadd.f32 %v2016, %v2064
        %v2066 = vpop.f32.mrf.mxu0
        %v2067 = vadd.f32 %v2018, %v2066
        %2068 = vmatmul.bf16.gmra.mxu0 %v1044
        %v2069 = vpop.f32.mrf.mxu0
        %v2070 = vadd.f32 %v2021, %v2069
        %v2071 = vpop.f32.mrf.mxu0
        %v2072 = vadd.f32 %v2023, %v2071
        %2073 = vmatmul.bf16.gmra.mxu0 %v1059
        %v2074 = vpop.f32.mrf.mxu0
        %v2075 = vadd.f32 %v2026, %v2074
        %v2076 = vpop.f32.mrf.mxu0
        %v2077 = vadd.f32 %v2028, %v2076
        %2078 = vmatmul.bf16.gmra.mxu0 %v1074
        %v2079 = vpop.f32.mrf.mxu0
        %v2080 = vadd.f32 %v2031, %v2079
        %v2081 = vpop.f32.mrf.mxu0
        %v2082 = vadd.f32 %v2033, %v2081
        %2083 = vmatmul.bf16.gmra.mxu0 %v1089
        %v2084 = vpop.f32.mrf.mxu0
        %v2085 = vadd.f32 %v2036, %v2084
        %v2086 = vpop.f32.mrf.mxu0
        %v2087 = vadd.f32 %v2038, %v2086
        %2088 = vdwg.mxu0
        %2089 = vmatpush.bf16.msra.mxu0 %v1733
        %2090 = vmatpush.bf16.msra.mxu0 %v1732
        %2091 = vmatpush.bf16.msra.mxu0 %v1731
        %2092 = vmatpush.bf16.msra.mxu0 %v1730
        %2093 = vmatpush.bf16.msra.mxu0 %v1729
        %2094 = vmatpush.bf16.msra.mxu0 %v1728
        %2095 = vmatpush.bf16.msra.mxu0 %v1727
        %2096 = vmatpush.bf16.msra.mxu0 %v1726
        %2097 = vmatmul.bf16.gmra.mxu0 %v985
        %v2098 = vpop.f32.mrf.mxu0
        %v2099 = vadd.f32 %v2050, %v2098
        %v2100 = vpop.f32.mrf.mxu0
        %v2101 = vadd.f32 %v2052, %v2100
        %2102 = vmatmul.bf16.gmra.mxu0 %v1000
        %v2103 = vpop.f32.mrf.mxu0
        %v2104 = vadd.f32 %v2055, %v2103
        %v2105 = vpop.f32.mrf.mxu0
        %v2106 = vadd.f32 %v2057, %v2105
        %2107 = vmatmul.bf16.gmra.mxu0 %v1015
        %v2108 = vpop.f32.mrf.mxu0
        %v2109 = vadd.f32 %v2060, %v2108
        %v2110 = vpop.f32.mrf.mxu0
        %v2111 = vadd.f32 %v2062, %v2110
        %2112 = vmatmul.bf16.gmra.mxu0 %v1030
        %v2113 = vpop.f32.mrf.mxu0
        %v2114 = vadd.f32 %v2065, %v2113
        %v2115 = vpop.f32.mrf.mxu0
        %v2116 = vadd.f32 %v2067, %v2115
        %2117 = vmatmul.bf16.gmra.mxu0 %v1045
        %v2118 = vpop.f32.mrf.mxu0
        %v2119 = vadd.f32 %v2070, %v2118
        %v2120 = vpop.f32.mrf.mxu0
        %v2121 = vadd.f32 %v2072, %v2120
        %2122 = vmatmul.bf16.gmra.mxu0 %v1060
        %v2123 = vpop.f32.mrf.mxu0
        %v2124 = vadd.f32 %v2075, %v2123
        %v2125 = vpop.f32.mrf.mxu0
        %v2126 = vadd.f32 %v2077, %v2125
        %2127 = vmatmul.bf16.gmra.mxu0 %v1075
        %v2128 = vpop.f32.mrf.mxu0
        %v2129 = vadd.f32 %v2080, %v2128
        %v2130 = vpop.f32.mrf.mxu0
        %v2131 = vadd.f32 %v2082, %v2130
        %2132 = vmatmul.bf16.gmra.mxu0 %v1090
        %v2133 = vpop.f32.mrf.mxu0
        %v2134 = vadd.f32 %v2085, %v2133
        %v2135 = vpop.f32.mrf.mxu0
        %v2136 = vadd.f32 %v2087, %v2135
        %2137 = vdwg.mxu0
        %2138 = vmatpush.bf16.msra.mxu0 %v1741
        %2139 = vmatpush.bf16.msra.mxu0 %v1740
        %2140 = vmatpush.bf16.msra.mxu0 %v1739
        %2141 = vmatpush.bf16.msra.mxu0 %v1738
        %2142 = vmatpush.bf16.msra.mxu0 %v1737
        %2143 = vmatpush.bf16.msra.mxu0 %v1736
        %2144 = vmatpush.bf16.msra.mxu0 %v1735
        %2145 = vmatpush.bf16.msra.mxu0 %v1734
        %2146 = vmatmul.bf16.gmra.mxu0 %v986
        %v2147 = vpop.f32.mrf.mxu0
        %v2148 = vadd.f32 %v2099, %v2147
        %v2149 = vpop.f32.mrf.mxu0
        %v2150 = vadd.f32 %v2101, %v2149
        %2151 = vmatmul.bf16.gmra.mxu0 %v1001
        %v2152 = vpop.f32.mrf.mxu0
        %v2153 = vadd.f32 %v2104, %v2152
        %v2154 = vpop.f32.mrf.mxu0
        %v2155 = vadd.f32 %v2106, %v2154
        %2156 = vmatmul.bf16.gmra.mxu0 %v1016
        %v2157 = vpop.f32.mrf.mxu0
        %v2158 = vadd.f32 %v2109, %v2157
        %v2159 = vpop.f32.mrf.mxu0
        %v2160 = vadd.f32 %v2111, %v2159
        %2161 = vmatmul.bf16.gmra.mxu0 %v1031
        %v2162 = vpop.f32.mrf.mxu0
        %v2163 = vadd.f32 %v2114, %v2162
        %v2164 = vpop.f32.mrf.mxu0
        %v2165 = vadd.f32 %v2116, %v2164
        %2166 = vmatmul.bf16.gmra.mxu0 %v1046
        %v2167 = vpop.f32.mrf.mxu0
        %v2168 = vadd.f32 %v2119, %v2167
        %v2169 = vpop.f32.mrf.mxu0
        %v2170 = vadd.f32 %v2121, %v2169
        %2171 = vmatmul.bf16.gmra.mxu0 %v1061
        %v2172 = vpop.f32.mrf.mxu0
        %v2173 = vadd.f32 %v2124, %v2172
        %v2174 = vpop.f32.mrf.mxu0
        %v2175 = vadd.f32 %v2126, %v2174
        %2176 = vmatmul.bf16.gmra.mxu0 %v1076
        %v2177 = vpop.f32.mrf.mxu0
        %v2178 = vadd.f32 %v2129, %v2177
        %v2179 = vpop.f32.mrf.mxu0
        %v2180 = vadd.f32 %v2131, %v2179
        %2181 = vmatmul.bf16.gmra.mxu0 %v1091
        %v2182 = vpop.f32.mrf.mxu0
        %v2183 = vadd.f32 %v2134, %v2182
        %v2184 = vpop.f32.mrf.mxu0
        %v2185 = vadd.f32 %v2136, %v2184
        %2186 = vdwg.mxu0
        %2187 = vmatpush.bf16.msra.mxu0 %v1749
        %2188 = vmatpush.bf16.msra.mxu0 %v1748
        %2189 = vmatpush.bf16.msra.mxu0 %v1747
        %2190 = vmatpush.bf16.msra.mxu0 %v1746
        %2191 = vmatpush.bf16.msra.mxu0 %v1745
        %2192 = vmatpush.bf16.msra.mxu0 %v1744
        %2193 = vmatpush.bf16.msra.mxu0 %v1743
        %2194 = vmatpush.bf16.msra.mxu0 %v1742
        %2195 = vmatmul.bf16.gmra.mxu0 %v987
        %v2196 = vpop.f32.mrf.mxu0
        %v2197 = vadd.f32 %v2148, %v2196
        %v2198 = vpop.f32.mrf.mxu0
        %v2199 = vadd.f32 %v2150, %v2198
        %2200 = vmatmul.bf16.gmra.mxu0 %v1002
        %v2201 = vpop.f32.mrf.mxu0
        %v2202 = vadd.f32 %v2153, %v2201
        %v2203 = vpop.f32.mrf.mxu0
        %v2204 = vadd.f32 %v2155, %v2203
        %2205 = vmatmul.bf16.gmra.mxu0 %v1017
        %v2206 = vpop.f32.mrf.mxu0
        %v2207 = vadd.f32 %v2158, %v2206
        %v2208 = vpop.f32.mrf.mxu0
        %v2209 = vadd.f32 %v2160, %v2208
        %2210 = vmatmul.bf16.gmra.mxu0 %v1032
        %v2211 = vpop.f32.mrf.mxu0
        %v2212 = vadd.f32 %v2163, %v2211
        %v2213 = vpop.f32.mrf.mxu0
        %v2214 = vadd.f32 %v2165, %v2213
        %2215 = vmatmul.bf16.gmra.mxu0 %v1047
        %v2216 = vpop.f32.mrf.mxu0
        %v2217 = vadd.f32 %v2168, %v2216
        %v2218 = vpop.f32.mrf.mxu0
        %v2219 = vadd.f32 %v2170, %v2218
        %2220 = vmatmul.bf16.gmra.mxu0 %v1062
        %v2221 = vpop.f32.mrf.mxu0
        %v2222 = vadd.f32 %v2173, %v2221
        %v2223 = vpop.f32.mrf.mxu0
        %v2224 = vadd.f32 %v2175, %v2223
        %2225 = vmatmul.bf16.gmra.mxu0 %v1077
        %v2226 = vpop.f32.mrf.mxu0
        %v2227 = vadd.f32 %v2178, %v2226
        %v2228 = vpop.f32.mrf.mxu0
        %v2229 = vadd.f32 %v2180, %v2228
        %2230 = vmatmul.bf16.gmra.mxu0 %v1092
        %v2231 = vpop.f32.mrf.mxu0
        %v2232 = vadd.f32 %v2183, %v2231
        %v2233 = vpop.f32.mrf.mxu0
        %v2234 = vadd.f32 %v2185, %v2233
        %2235 = vdwg.mxu0
        %2236 = vmatpush.bf16.msra.mxu0 %v1757
        %2237 = vmatpush.bf16.msra.mxu0 %v1756
        %2238 = vmatpush.bf16.msra.mxu0 %v1755
        %2239 = vmatpush.bf16.msra.mxu0 %v1754
        %2240 = vmatpush.bf16.msra.mxu0 %v1753
        %2241 = vmatpush.bf16.msra.mxu0 %v1752
        %2242 = vmatpush.bf16.msra.mxu0 %v1751
        %2243 = vmatpush.bf16.msra.mxu0 %v1750
        %2244 = vmatmul.bf16.gmra.mxu0 %v988
        %v2245 = vpop.f32.mrf.mxu0
        %v2246 = vadd.f32 %v2197, %v2245
        %v2247 = vpop.f32.mrf.mxu0
        %v2248 = vadd.f32 %v2199, %v2247
        %2249 = vmatmul.bf16.gmra.mxu0 %v1003
        %v2250 = vpop.f32.mrf.mxu0
        %v2251 = vadd.f32 %v2202, %v2250
        %v2252 = vpop.f32.mrf.mxu0
        %v2253 = vadd.f32 %v2204, %v2252
        %2254 = vmatmul.bf16.gmra.mxu0 %v1018
        %v2255 = vpop.f32.mrf.mxu0
        %v2256 = vadd.f32 %v2207, %v2255
        %v2257 = vpop.f32.mrf.mxu0
        %v2258 = vadd.f32 %v2209, %v2257
        %2259 = vmatmul.bf16.gmra.mxu0 %v1033
        %v2260 = vpop.f32.mrf.mxu0
        %v2261 = vadd.f32 %v2212, %v2260
        %v2262 = vpop.f32.mrf.mxu0
        %v2263 = vadd.f32 %v2214, %v2262
        %2264 = vmatmul.bf16.gmra.mxu0 %v1048
        %v2265 = vpop.f32.mrf.mxu0
        %v2266 = vadd.f32 %v2217, %v2265
        %v2267 = vpop.f32.mrf.mxu0
        %v2268 = vadd.f32 %v2219, %v2267
        %2269 = vmatmul.bf16.gmra.mxu0 %v1063
        %v2270 = vpop.f32.mrf.mxu0
        %v2271 = vadd.f32 %v2222, %v2270
        %v2272 = vpop.f32.mrf.mxu0
        %v2273 = vadd.f32 %v2224, %v2272
        %2274 = vmatmul.bf16.gmra.mxu0 %v1078
        %v2275 = vpop.f32.mrf.mxu0
        %v2276 = vadd.f32 %v2227, %v2275
        %v2277 = vpop.f32.mrf.mxu0
        %v2278 = vadd.f32 %v2229, %v2277
        %2279 = vmatmul.bf16.gmra.mxu0 %v1093
        %v2280 = vpop.f32.mrf.mxu0
        %v2281 = vadd.f32 %v2232, %v2280
        %v2282 = vpop.f32.mrf.mxu0
        %v2283 = vadd.f32 %v2234, %v2282
        %2284 = vdwg.mxu0
        %2285 = vmatpush.bf16.msra.mxu0 %v1765
        %2286 = vmatpush.bf16.msra.mxu0 %v1764
        %2287 = vmatpush.bf16.msra.mxu0 %v1763
        %2288 = vmatpush.bf16.msra.mxu0 %v1762
        %2289 = vmatpush.bf16.msra.mxu0 %v1761
        %2290 = vmatpush.bf16.msra.mxu0 %v1760
        %2291 = vmatpush.bf16.msra.mxu0 %v1759
        %2292 = vmatpush.bf16.msra.mxu0 %v1758
        %2293 = vmatmul.bf16.gmra.mxu0 %v989
        %v2294 = vpop.f32.mrf.mxu0
        %v2295 = vadd.f32 %v2246, %v2294
        %v2296 = vpop.f32.mrf.mxu0
        %v2297 = vadd.f32 %v2248, %v2296
        %2298 = vmatmul.bf16.gmra.mxu0 %v1004
        %v2299 = vpop.f32.mrf.mxu0
        %v2300 = vadd.f32 %v2251, %v2299
        %v2301 = vpop.f32.mrf.mxu0
        %v2302 = vadd.f32 %v2253, %v2301
        %2303 = vmatmul.bf16.gmra.mxu0 %v1019
        %v2304 = vpop.f32.mrf.mxu0
        %v2305 = vadd.f32 %v2256, %v2304
        %v2306 = vpop.f32.mrf.mxu0
        %v2307 = vadd.f32 %v2258, %v2306
        %2308 = vmatmul.bf16.gmra.mxu0 %v1034
        %v2309 = vpop.f32.mrf.mxu0
        %v2310 = vadd.f32 %v2261, %v2309
        %v2311 = vpop.f32.mrf.mxu0
        %v2312 = vadd.f32 %v2263, %v2311
        %2313 = vmatmul.bf16.gmra.mxu0 %v1049
        %v2314 = vpop.f32.mrf.mxu0
        %v2315 = vadd.f32 %v2266, %v2314
        %v2316 = vpop.f32.mrf.mxu0
        %v2317 = vadd.f32 %v2268, %v2316
        %2318 = vmatmul.bf16.gmra.mxu0 %v1064
        %v2319 = vpop.f32.mrf.mxu0
        %v2320 = vadd.f32 %v2271, %v2319
        %v2321 = vpop.f32.mrf.mxu0
        %v2322 = vadd.f32 %v2273, %v2321
        %2323 = vmatmul.bf16.gmra.mxu0 %v1079
        %v2324 = vpop.f32.mrf.mxu0
        %v2325 = vadd.f32 %v2276, %v2324
        %v2326 = vpop.f32.mrf.mxu0
        %v2327 = vadd.f32 %v2278, %v2326
        %2328 = vmatmul.bf16.gmra.mxu0 %v1094
        %v2329 = vpop.f32.mrf.mxu0
        %v2330 = vadd.f32 %v2281, %v2329
        %v2331 = vpop.f32.mrf.mxu0
        %v2332 = vadd.f32 %v2283, %v2331
        %2333 = vdwg.mxu0
        %2334 = vmatpush.bf16.msra.mxu0 %v1773
        %2335 = vmatpush.bf16.msra.mxu0 %v1772
        %2336 = vmatpush.bf16.msra.mxu0 %v1771
        %2337 = vmatpush.bf16.msra.mxu0 %v1770
        %2338 = vmatpush.bf16.msra.mxu0 %v1769
        %2339 = vmatpush.bf16.msra.mxu0 %v1768
        %2340 = vmatpush.bf16.msra.mxu0 %v1767
        %2341 = vmatpush.bf16.msra.mxu0 %v1766
        %2342 = vmatmul.bf16.gmra.mxu0 %v990
        %v2343 = vpop.f32.mrf.mxu0
        %v2344 = vadd.f32 %v2295, %v2343
        %v2345 = vpop.f32.mrf.mxu0
        %v2346 = vadd.f32 %v2297, %v2345
        %2347 = vmatmul.bf16.gmra.mxu0 %v1005
        %v2348 = vpop.f32.mrf.mxu0
        %v2349 = vadd.f32 %v2300, %v2348
        %v2350 = vpop.f32.mrf.mxu0
        %v2351 = vadd.f32 %v2302, %v2350
        %2352 = vmatmul.bf16.gmra.mxu0 %v1020
        %v2353 = vpop.f32.mrf.mxu0
        %v2354 = vadd.f32 %v2305, %v2353
        %v2355 = vpop.f32.mrf.mxu0
        %v2356 = vadd.f32 %v2307, %v2355
        %2357 = vmatmul.bf16.gmra.mxu0 %v1035
        %v2358 = vpop.f32.mrf.mxu0
        %v2359 = vadd.f32 %v2310, %v2358
        %v2360 = vpop.f32.mrf.mxu0
        %v2361 = vadd.f32 %v2312, %v2360
        %2362 = vmatmul.bf16.gmra.mxu0 %v1050
        %v2363 = vpop.f32.mrf.mxu0
        %v2364 = vadd.f32 %v2315, %v2363
        %v2365 = vpop.f32.mrf.mxu0
        %v2366 = vadd.f32 %v2317, %v2365
        %2367 = vmatmul.bf16.gmra.mxu0 %v1065
        %v2368 = vpop.f32.mrf.mxu0
        %v2369 = vadd.f32 %v2320, %v2368
        %v2370 = vpop.f32.mrf.mxu0
        %v2371 = vadd.f32 %v2322, %v2370
        %2372 = vmatmul.bf16.gmra.mxu0 %v1080
        %v2373 = vpop.f32.mrf.mxu0
        %v2374 = vadd.f32 %v2325, %v2373
        %v2375 = vpop.f32.mrf.mxu0
        %v2376 = vadd.f32 %v2327, %v2375
        %2377 = vmatmul.bf16.gmra.mxu0 %v1095
        %v2378 = vpop.f32.mrf.mxu0
        %v2379 = vadd.f32 %v2330, %v2378
        %v2380 = vpop.f32.mrf.mxu0
        %v2381 = vadd.f32 %v2332, %v2380
        %2382 = vdwg.mxu0
        %2383 = vmatpush.bf16.msra.mxu0 %v1781
        %2384 = vmatpush.bf16.msra.mxu0 %v1780
        %2385 = vmatpush.bf16.msra.mxu0 %v1779
        %2386 = vmatpush.bf16.msra.mxu0 %v1778
        %2387 = vmatpush.bf16.msra.mxu0 %v1777
        %2388 = vmatpush.bf16.msra.mxu0 %v1776
        %2389 = vmatpush.bf16.msra.mxu0 %v1775
        %2390 = vmatpush.bf16.msra.mxu0 %v1774
        %2391 = vmatmul.bf16.gmra.mxu0 %v991
        %v2392 = vpop.f32.mrf.mxu0
        %v2393 = vadd.f32 %v2344, %v2392
        %v2394 = vpop.f32.mrf.mxu0
        %v2395 = vadd.f32 %v2346, %v2394
        %2396 = vmatmul.bf16.gmra.mxu0 %v1006
        %v2397 = vpop.f32.mrf.mxu0
        %v2398 = vadd.f32 %v2349, %v2397
        %v2399 = vpop.f32.mrf.mxu0
        %v2400 = vadd.f32 %v2351, %v2399
        %2401 = vmatmul.bf16.gmra.mxu0 %v1021
        %v2402 = vpop.f32.mrf.mxu0
        %v2403 = vadd.f32 %v2354, %v2402
        %v2404 = vpop.f32.mrf.mxu0
        %v2405 = vadd.f32 %v2356, %v2404
        %2406 = vmatmul.bf16.gmra.mxu0 %v1036
        %v2407 = vpop.f32.mrf.mxu0
        %v2408 = vadd.f32 %v2359, %v2407
        %v2409 = vpop.f32.mrf.mxu0
        %v2410 = vadd.f32 %v2361, %v2409
        %2411 = vmatmul.bf16.gmra.mxu0 %v1051
        %v2412 = vpop.f32.mrf.mxu0
        %v2413 = vadd.f32 %v2364, %v2412
        %v2414 = vpop.f32.mrf.mxu0
        %v2415 = vadd.f32 %v2366, %v2414
        %2416 = vmatmul.bf16.gmra.mxu0 %v1066
        %v2417 = vpop.f32.mrf.mxu0
        %v2418 = vadd.f32 %v2369, %v2417
        %v2419 = vpop.f32.mrf.mxu0
        %v2420 = vadd.f32 %v2371, %v2419
        %2421 = vmatmul.bf16.gmra.mxu0 %v1081
        %v2422 = vpop.f32.mrf.mxu0
        %v2423 = vadd.f32 %v2374, %v2422
        %v2424 = vpop.f32.mrf.mxu0
        %v2425 = vadd.f32 %v2376, %v2424
        %2426 = vmatmul.bf16.gmra.mxu0 %v1096
        %v2427 = vpop.f32.mrf.mxu0
        %v2428 = vadd.f32 %v2379, %v2427
        %v2429 = vpop.f32.mrf.mxu0
        %v2430 = vadd.f32 %v2381, %v2429
        %2431 = vdwg.mxu0
        %2432 = vmatpush.bf16.msra.mxu0 %v1789
        %2433 = vmatpush.bf16.msra.mxu0 %v1788
        %2434 = vmatpush.bf16.msra.mxu0 %v1787
        %2435 = vmatpush.bf16.msra.mxu0 %v1786
        %2436 = vmatpush.bf16.msra.mxu0 %v1785
        %2437 = vmatpush.bf16.msra.mxu0 %v1784
        %2438 = vmatpush.bf16.msra.mxu0 %v1783
        %2439 = vmatpush.bf16.msra.mxu0 %v1782
        %2440 = vmatmul.bf16.gmra.mxu0 %v992
        %v2441 = vpop.f32.mrf.mxu0
        %v2442 = vadd.f32 %v2393, %v2441
        %v2443 = vpop.f32.mrf.mxu0
        %v2444 = vadd.f32 %v2395, %v2443
        %2445 = vmatmul.bf16.gmra.mxu0 %v1007
        %v2446 = vpop.f32.mrf.mxu0
        %v2447 = vadd.f32 %v2398, %v2446
        %v2448 = vpop.f32.mrf.mxu0
        %v2449 = vadd.f32 %v2400, %v2448
        %2450 = vmatmul.bf16.gmra.mxu0 %v1022
        %v2451 = vpop.f32.mrf.mxu0
        %v2452 = vadd.f32 %v2403, %v2451
        %v2453 = vpop.f32.mrf.mxu0
        %v2454 = vadd.f32 %v2405, %v2453
        %2455 = vmatmul.bf16.gmra.mxu0 %v1037
        %v2456 = vpop.f32.mrf.mxu0
        %v2457 = vadd.f32 %v2408, %v2456
        %v2458 = vpop.f32.mrf.mxu0
        %v2459 = vadd.f32 %v2410, %v2458
        %2460 = vmatmul.bf16.gmra.mxu0 %v1052
        %v2461 = vpop.f32.mrf.mxu0
        %v2462 = vadd.f32 %v2413, %v2461
        %v2463 = vpop.f32.mrf.mxu0
        %v2464 = vadd.f32 %v2415, %v2463
        %2465 = vmatmul.bf16.gmra.mxu0 %v1067
        %v2466 = vpop.f32.mrf.mxu0
        %v2467 = vadd.f32 %v2418, %v2466
        %v2468 = vpop.f32.mrf.mxu0
        %v2469 = vadd.f32 %v2420, %v2468
        %2470 = vmatmul.bf16.gmra.mxu0 %v1082
        %v2471 = vpop.f32.mrf.mxu0
        %v2472 = vadd.f32 %v2423, %v2471
        %v2473 = vpop.f32.mrf.mxu0
        %v2474 = vadd.f32 %v2425, %v2473
        %2475 = vmatmul.bf16.gmra.mxu0 %v1097
        %v2476 = vpop.f32.mrf.mxu0
        %v2477 = vadd.f32 %v2428, %v2476
        %v2478 = vpop.f32.mrf.mxu0
        %v2479 = vadd.f32 %v2430, %v2478
        %2480 = vdwg.mxu0
        %2481 = vmatpush.bf16.msra.mxu0 %v1797
        %2482 = vmatpush.bf16.msra.mxu0 %v1796
        %2483 = vmatpush.bf16.msra.mxu0 %v1795
        %2484 = vmatpush.bf16.msra.mxu0 %v1794
        %2485 = vmatpush.bf16.msra.mxu0 %v1793
        %2486 = vmatpush.bf16.msra.mxu0 %v1792
        %2487 = vmatpush.bf16.msra.mxu0 %v1791
        %2488 = vmatpush.bf16.msra.mxu0 %v1790
        %2489 = vmatmul.bf16.gmra.mxu0 %v993
        %v2490 = vpop.f32.mrf.mxu0
        %v2491 = vadd.f32 %v2442, %v2490
        %v2492 = vpop.f32.mrf.mxu0
        %v2493 = vadd.f32 %v2444, %v2492
        %2494 = vmatmul.bf16.gmra.mxu0 %v1008
        %v2495 = vpop.f32.mrf.mxu0
        %v2496 = vadd.f32 %v2447, %v2495
        %v2497 = vpop.f32.mrf.mxu0
        %v2498 = vadd.f32 %v2449, %v2497
        %2499 = vmatmul.bf16.gmra.mxu0 %v1023
        %v2500 = vpop.f32.mrf.mxu0
        %v2501 = vadd.f32 %v2452, %v2500
        %v2502 = vpop.f32.mrf.mxu0
        %v2503 = vadd.f32 %v2454, %v2502
        %2504 = vmatmul.bf16.gmra.mxu0 %v1038
        %v2505 = vpop.f32.mrf.mxu0
        %v2506 = vadd.f32 %v2457, %v2505
        %v2507 = vpop.f32.mrf.mxu0
        %v2508 = vadd.f32 %v2459, %v2507
        %2509 = vmatmul.bf16.gmra.mxu0 %v1053
        %v2510 = vpop.f32.mrf.mxu0
        %v2511 = vadd.f32 %v2462, %v2510
        %v2512 = vpop.f32.mrf.mxu0
        %v2513 = vadd.f32 %v2464, %v2512
        %2514 = vmatmul.bf16.gmra.mxu0 %v1068
        %v2515 = vpop.f32.mrf.mxu0
        %v2516 = vadd.f32 %v2467, %v2515
        %v2517 = vpop.f32.mrf.mxu0
        %v2518 = vadd.f32 %v2469, %v2517
        %2519 = vmatmul.bf16.gmra.mxu0 %v1083
        %v2520 = vpop.f32.mrf.mxu0
        %v2521 = vadd.f32 %v2472, %v2520
        %v2522 = vpop.f32.mrf.mxu0
        %v2523 = vadd.f32 %v2474, %v2522
        %2524 = vmatmul.bf16.gmra.mxu0 %v1098
        %v2525 = vpop.f32.mrf.mxu0
        %v2526 = vadd.f32 %v2477, %v2525
        %v2527 = vpop.f32.mrf.mxu0
        %v2528 = vadd.f32 %v2479, %v2527
        %2529 = vdwg.mxu0
        %2530 = vmatpush.bf16.msra.mxu0 %v1805
        %2531 = vmatpush.bf16.msra.mxu0 %v1804
        %2532 = vmatpush.bf16.msra.mxu0 %v1803
        %2533 = vmatpush.bf16.msra.mxu0 %v1802
        %2534 = vmatpush.bf16.msra.mxu0 %v1801
        %2535 = vmatpush.bf16.msra.mxu0 %v1800
        %2536 = vmatpush.bf16.msra.mxu0 %v1799
        %2537 = vmatpush.bf16.msra.mxu0 %v1798
        %2538 = vmatmul.bf16.gmra.mxu0 %v994
        %v2539 = vpop.f32.mrf.mxu0
        %v2540 = vadd.f32 %v2491, %v2539
        %v2541 = vpop.f32.mrf.mxu0
        %v2542 = vadd.f32 %v2493, %v2541
        %2543 = vmatmul.bf16.gmra.mxu0 %v1009
        %v2544 = vpop.f32.mrf.mxu0
        %v2545 = vadd.f32 %v2496, %v2544
        %v2546 = vpop.f32.mrf.mxu0
        %v2547 = vadd.f32 %v2498, %v2546
        %2548 = vmatmul.bf16.gmra.mxu0 %v1024
        %v2549 = vpop.f32.mrf.mxu0
        %v2550 = vadd.f32 %v2501, %v2549
        %v2551 = vpop.f32.mrf.mxu0
        %v2552 = vadd.f32 %v2503, %v2551
        %2553 = vmatmul.bf16.gmra.mxu0 %v1039
        %v2554 = vpop.f32.mrf.mxu0
        %v2555 = vadd.f32 %v2506, %v2554
        %v2556 = vpop.f32.mrf.mxu0
        %v2557 = vadd.f32 %v2508, %v2556
        %2558 = vmatmul.bf16.gmra.mxu0 %v1054
        %v2559 = vpop.f32.mrf.mxu0
        %v2560 = vadd.f32 %v2511, %v2559
        %v2561 = vpop.f32.mrf.mxu0
        %v2562 = vadd.f32 %v2513, %v2561
        %2563 = vmatmul.bf16.gmra.mxu0 %v1069
        %v2564 = vpop.f32.mrf.mxu0
        %v2565 = vadd.f32 %v2516, %v2564
        %v2566 = vpop.f32.mrf.mxu0
        %v2567 = vadd.f32 %v2518, %v2566
        %2568 = vmatmul.bf16.gmra.mxu0 %v1084
        %v2569 = vpop.f32.mrf.mxu0
        %v2570 = vadd.f32 %v2521, %v2569
        %v2571 = vpop.f32.mrf.mxu0
        %v2572 = vadd.f32 %v2523, %v2571
        %2573 = vmatmul.bf16.gmra.mxu0 %v1099
        %v2574 = vpop.f32.mrf.mxu0
        %v2575 = vadd.f32 %v2526, %v2574
        %v2576 = vpop.f32.mrf.mxu0
        %v2577 = vadd.f32 %v2528, %v2576
        %2578 = vdwg.mxu0
        %2579 = vmatpush.bf16.msra.mxu0 %v1813
        %2580 = vmatpush.bf16.msra.mxu0 %v1812
        %2581 = vmatpush.bf16.msra.mxu0 %v1811
        %2582 = vmatpush.bf16.msra.mxu0 %v1810
        %2583 = vmatpush.bf16.msra.mxu0 %v1809
        %2584 = vmatpush.bf16.msra.mxu0 %v1808
        %2585 = vmatpush.bf16.msra.mxu0 %v1807
        %2586 = vmatpush.bf16.msra.mxu0 %v1806
        %2587 = vmatmul.bf16.gmra.mxu0 %v995
        %v2588 = vpop.f32.mrf.mxu0
        %v2589 = vadd.f32 %v2540, %v2588
        %v2590 = vpop.f32.mrf.mxu0
        %v2591 = vadd.f32 %v2542, %v2590
        %2592 = vmatmul.bf16.gmra.mxu0 %v1010
        %v2593 = vpop.f32.mrf.mxu0
        %v2594 = vadd.f32 %v2545, %v2593
        %v2595 = vpop.f32.mrf.mxu0
        %v2596 = vadd.f32 %v2547, %v2595
        %2597 = vmatmul.bf16.gmra.mxu0 %v1025
        %v2598 = vpop.f32.mrf.mxu0
        %v2599 = vadd.f32 %v2550, %v2598
        %v2600 = vpop.f32.mrf.mxu0
        %v2601 = vadd.f32 %v2552, %v2600
        %2602 = vmatmul.bf16.gmra.mxu0 %v1040
        %v2603 = vpop.f32.mrf.mxu0
        %v2604 = vadd.f32 %v2555, %v2603
        %v2605 = vpop.f32.mrf.mxu0
        %v2606 = vadd.f32 %v2557, %v2605
        %2607 = vmatmul.bf16.gmra.mxu0 %v1055
        %v2608 = vpop.f32.mrf.mxu0
        %v2609 = vadd.f32 %v2560, %v2608
        %v2610 = vpop.f32.mrf.mxu0
        %v2611 = vadd.f32 %v2562, %v2610
        %2612 = vmatmul.bf16.gmra.mxu0 %v1070
        %v2613 = vpop.f32.mrf.mxu0
        %v2614 = vadd.f32 %v2565, %v2613
        %v2615 = vpop.f32.mrf.mxu0
        %v2616 = vadd.f32 %v2567, %v2615
        %2617 = vmatmul.bf16.gmra.mxu0 %v1085
        %v2618 = vpop.f32.mrf.mxu0
        %v2619 = vadd.f32 %v2570, %v2618
        %v2620 = vpop.f32.mrf.mxu0
        %v2621 = vadd.f32 %v2572, %v2620
        %2622 = vmatmul.bf16.gmra.mxu0 %v1100
        %v2623 = vpop.f32.mrf.mxu0
        %v2624 = vadd.f32 %v2575, %v2623
        %v2625 = vpop.f32.mrf.mxu0
        %v2626 = vadd.f32 %v2577, %v2625
        %2627 = vdwg.mxu0
        %2628 = vmatpush.bf16.msra.mxu0 %v1821
        %2629 = vmatpush.bf16.msra.mxu0 %v1820
        %2630 = vmatpush.bf16.msra.mxu0 %v1819
        %2631 = vmatpush.bf16.msra.mxu0 %v1818
        %2632 = vmatpush.bf16.msra.mxu0 %v1817
        %2633 = vmatpush.bf16.msra.mxu0 %v1816
        %2634 = vmatpush.bf16.msra.mxu0 %v1815
        %2635 = vmatpush.bf16.msra.mxu0 %v1814
        %2636 = vmatmul.bf16.gmra.mxu0 %v996
        %v2637 = vpop.f32.mrf.mxu0
        %v2638 = vadd.f32 %v2589, %v2637
        %v2639 = vpop.f32.mrf.mxu0
        %v2640 = vadd.f32 %v2591, %v2639
        %2641 = vmatmul.bf16.gmra.mxu0 %v1011
        %v2642 = vpop.f32.mrf.mxu0
        %v2643 = vadd.f32 %v2594, %v2642
        %v2644 = vpop.f32.mrf.mxu0
        %v2645 = vadd.f32 %v2596, %v2644
        %2646 = vmatmul.bf16.gmra.mxu0 %v1026
        %v2647 = vpop.f32.mrf.mxu0
        %v2648 = vadd.f32 %v2599, %v2647
        %v2649 = vpop.f32.mrf.mxu0
        %v2650 = vadd.f32 %v2601, %v2649
        %2651 = vmatmul.bf16.gmra.mxu0 %v1041
        %v2652 = vpop.f32.mrf.mxu0
        %v2653 = vadd.f32 %v2604, %v2652
        %v2654 = vpop.f32.mrf.mxu0
        %v2655 = vadd.f32 %v2606, %v2654
        %2656 = vmatmul.bf16.gmra.mxu0 %v1056
        %v2657 = vpop.f32.mrf.mxu0
        %v2658 = vadd.f32 %v2609, %v2657
        %v2659 = vpop.f32.mrf.mxu0
        %v2660 = vadd.f32 %v2611, %v2659
        %2661 = vmatmul.bf16.gmra.mxu0 %v1071
        %v2662 = vpop.f32.mrf.mxu0
        %v2663 = vadd.f32 %v2614, %v2662
        %v2664 = vpop.f32.mrf.mxu0
        %v2665 = vadd.f32 %v2616, %v2664
        %2666 = vmatmul.bf16.gmra.mxu0 %v1086
        %v2667 = vpop.f32.mrf.mxu0
        %v2668 = vadd.f32 %v2619, %v2667
        %v2669 = vpop.f32.mrf.mxu0
        %v2670 = vadd.f32 %v2621, %v2669
        %2671 = vmatmul.bf16.gmra.mxu0 %v1101
        %v2672 = vpop.f32.mrf.mxu0
        %v2673 = vadd.f32 %v2624, %v2672
        %v2674 = vpop.f32.mrf.mxu0
        %v2675 = vadd.f32 %v2626, %v2674
        %2676 = vdwg.mxu0
        %v2677 = vadd.f32 %v2638, %v2640
        %v2678 = vrot.slane %v2677, 4
        %v2679 = vadd.f32 %v2677, %v2678
        %v2680 = vrot.slane %v2679, 2
        %v2681 = vadd.f32 %v2679, %v2680
        %v2682 = vrot.slane %v2681, 1
        %v2683 = vadd.f32 %v2681, %v2682
        %v2684 = vadd.f32 %v2643, %v2645
        %v2685 = vrot.slane %v2684, 4
        %v2686 = vadd.f32 %v2684, %v2685
        %v2687 = vrot.slane %v2686, 2
        %v2688 = vadd.f32 %v2686, %v2687
        %v2689 = vrot.slane %v2688, 1
        %v2690 = vadd.f32 %v2688, %v2689
        %v2691 = vadd.f32 %v2648, %v2650
        %v2692 = vrot.slane %v2691, 4
        %v2693 = vadd.f32 %v2691, %v2692
        %v2694 = vrot.slane %v2693, 2
        %v2695 = vadd.f32 %v2693, %v2694
        %v2696 = vrot.slane %v2695, 1
        %v2697 = vadd.f32 %v2695, %v2696
        %v2698 = vadd.f32 %v2653, %v2655
        %v2699 = vrot.slane %v2698, 4
        %v2700 = vadd.f32 %v2698, %v2699
        %v2701 = vrot.slane %v2700, 2
        %v2702 = vadd.f32 %v2700, %v2701
        %v2703 = vrot.slane %v2702, 1
        %v2704 = vadd.f32 %v2702, %v2703
        %v2705 = vadd.f32 %v2658, %v2660
        %v2706 = vrot.slane %v2705, 4
        %v2707 = vadd.f32 %v2705, %v2706
        %v2708 = vrot.slane %v2707, 2
        %v2709 = vadd.f32 %v2707, %v2708
        %v2710 = vrot.slane %v2709, 1
        %v2711 = vadd.f32 %v2709, %v2710
        %v2712 = vadd.f32 %v2663, %v2665
        %v2713 = vrot.slane %v2712, 4
        %v2714 = vadd.f32 %v2712, %v2713
        %v2715 = vrot.slane %v2714, 2
        %v2716 = vadd.f32 %v2714, %v2715
        %v2717 = vrot.slane %v2716, 1
        %v2718 = vadd.f32 %v2716, %v2717
        %v2719 = vadd.f32 %v2668, %v2670
        %v2720 = vrot.slane %v2719, 4
        %v2721 = vadd.f32 %v2719, %v2720
        %v2722 = vrot.slane %v2721, 2
        %v2723 = vadd.f32 %v2721, %v2722
        %v2724 = vrot.slane %v2723, 1
        %v2725 = vadd.f32 %v2723, %v2724
        %v2726 = vadd.f32 %v2673, %v2675
        %v2727 = vrot.slane %v2726, 4
        %v2728 = vadd.f32 %v2726, %v2727
        %v2729 = vrot.slane %v2728, 2
        %v2730 = vadd.f32 %v2728, %v2729
        %v2731 = vrot.slane %v2730, 1
        %v2732 = vadd.f32 %v2730, %v2731
        %v2733 = vmul.f32 %v2683, 0.0625
        %v2734 = vmul.f32 %v2690, 0.0625
        %v2735 = vmul.f32 %v2697, 0.0625
        %v2736 = vmul.f32 %v2704, 0.0625
        %v2737 = vmul.f32 %v2711, 0.0625
        %v2738 = vmul.f32 %v2718, 0.0625
        %v2739 = vmul.f32 %v2725, 0.0625
        %v2740 = vmul.f32 %v2732, 0.0625
        %v2742 = vperm.slane %v485, 0
        %v2744 = vadd.f32 %v2733, %v2742
        %v2745 = vadd.f32 %v2734, %v2742
        %v2746 = vadd.f32 %v2735, %v2742
        %v2747 = vadd.f32 %v2736, %v2742
        %v2748 = vadd.f32 %v2737, %v2742
        %v2749 = vadd.f32 %v2738, %v2742
        %v2750 = vadd.f32 %v2739, %v2742
        %v2751 = vadd.f32 %v2740, %v2742
        %v2760 = vrot.slane %v2745, 7
        %vm2761 = vcmask 1041409
        %v2762 = vsel %vm2761, %v2760, %v2744
        %v2763 = vrot.slane %v2746, 6
        %vm2764 = vcmask 1042434
        %v2765 = vsel %vm2764, %v2763, %v2762
        %v2766 = vrot.slane %v2747, 5
        %vm2767 = vcmask 1043459
        %v2768 = vsel %vm2767, %v2766, %v2765
        %v2769 = vrot.slane %v2748, 4
        %vm2770 = vcmask 1044484
        %v2771 = vsel %vm2770, %v2769, %v2768
        %v2772 = vrot.slane %v2749, 3
        %vm2773 = vcmask 1045509
        %v2774 = vsel %vm2773, %v2772, %v2771
        %v2775 = vrot.slane %v2750, 2
        %vm2776 = vcmask 1046534
        %v2777 = vsel %vm2776, %v2775, %v2774
        %v2778 = vrot.slane %v2751, 1
        %vm2779 = vcmask 1047559
        %v2780 = vsel %vm2779, %v2778, %v2777
        %2782 = vst [vmem:[%s232] sm:$0xff] %v2780
        %s2783 = scalar_lea.vmem %s199, 960 [#allocation2]
        %v2784 = vld [vmem:[%s2783] sm:$0xff]
        %v2785 = vld [vmem:[%s2783 + $0x8] sm:$0xff]
        %v2786 = vld [vmem:[%s2783 + $0x10] sm:$0xff]
        %v2787 = vld [vmem:[%s2783 + $0x18] sm:$0xff]
        %v2788 = vld [vmem:[%s2783 + $0x20] sm:$0xff]
        %v2789 = vld [vmem:[%s2783 + $0x28] sm:$0xff]
        %v2790 = vld [vmem:[%s2783 + $0x30] sm:$0xff]
        %v2791 = vld [vmem:[%s2783 + $0x38] sm:$0xf]
        %v2792 = vld [vmem:[%s2783 + $0x3c] sm:$0xff]
        %v2793 = vld [vmem:[%s2783 + $0x44] sm:$0xff]
        %v2794 = vld [vmem:[%s2783 + $0x4c] sm:$0xff]
        %v2795 = vld [vmem:[%s2783 + $0x54] sm:$0xff]
        %v2796 = vld [vmem:[%s2783 + $0x5c] sm:$0xff]
        %v2797 = vld [vmem:[%s2783 + $0x64] sm:$0xff]
        %v2798 = vld [vmem:[%s2783 + $0x6c] sm:$0xff]
        %v2799 = vld [vmem:[%s2783 + $0x74] sm:$0xf]
        %v2800 = vld [vmem:[%s2783 + $0x78] sm:$0xff]
        %v2801 = vld [vmem:[%s2783 + $0x80] sm:$0xff]
        %v2802 = vld [vmem:[%s2783 + $0x88] sm:$0xff]
        %v2803 = vld [vmem:[%s2783 + $0x90] sm:$0xff]
        %v2804 = vld [vmem:[%s2783 + $0x98] sm:$0xff]
        %v2805 = vld [vmem:[%s2783 + $0xa0] sm:$0xff]
        %v2806 = vld [vmem:[%s2783 + $0xa8] sm:$0xff]
        %v2807 = vld [vmem:[%s2783 + $0xb0] sm:$0xf]
        %v2808 = vld [vmem:[%s2783 + $0xb4] sm:$0xff]
        %v2809 = vld [vmem:[%s2783 + $0xbc] sm:$0xff]
        %v2810 = vld [vmem:[%s2783 + $0xc4] sm:$0xff]
        %v2811 = vld [vmem:[%s2783 + $0xcc] sm:$0xff]
        %v2812 = vld [vmem:[%s2783 + $0xd4] sm:$0xff]
        %v2813 = vld [vmem:[%s2783 + $0xdc] sm:$0xff]
        %v2814 = vld [vmem:[%s2783 + $0xe4] sm:$0xff]
        %v2815 = vld [vmem:[%s2783 + $0xec] sm:$0xf]
        %v2816 = vld [vmem:[%s2783 + $0xf0] sm:$0xff]
        %v2817 = vld [vmem:[%s2783 + $0xf8] sm:$0xff]
        %v2818 = vld [vmem:[%s2783 + $0x100] sm:$0xff]
        %v2819 = vld [vmem:[%s2783 + $0x108] sm:$0xff]
        %v2820 = vld [vmem:[%s2783 + $0x110] sm:$0xff]
        %v2821 = vld [vmem:[%s2783 + $0x118] sm:$0xff]
        %v2822 = vld [vmem:[%s2783 + $0x120] sm:$0xff]
        %v2823 = vld [vmem:[%s2783 + $0x128] sm:$0xf]
        %v2824 = vld [vmem:[%s2783 + $0x12c] sm:$0xff]
        %v2825 = vld [vmem:[%s2783 + $0x134] sm:$0xff]
        %v2826 = vld [vmem:[%s2783 + $0x13c] sm:$0xff]
        %v2827 = vld [vmem:[%s2783 + $0x144] sm:$0xff]
        %v2828 = vld [vmem:[%s2783 + $0x14c] sm:$0xff]
        %v2829 = vld [vmem:[%s2783 + $0x154] sm:$0xff]
        %v2830 = vld [vmem:[%s2783 + $0x15c] sm:$0xff]
        %v2831 = vld [vmem:[%s2783 + $0x164] sm:$0xf]
        %v2832 = vld [vmem:[%s2783 + $0x168] sm:$0xff]
        %v2833 = vld [vmem:[%s2783 + $0x170] sm:$0xff]
        %v2834 = vld [vmem:[%s2783 + $0x178] sm:$0xff]
        %v2835 = vld [vmem:[%s2783 + $0x180] sm:$0xff]
        %v2836 = vld [vmem:[%s2783 + $0x188] sm:$0xff]
        %v2837 = vld [vmem:[%s2783 + $0x190] sm:$0xff]
        %v2838 = vld [vmem:[%s2783 + $0x198] sm:$0xff]
        %v2839 = vld [vmem:[%s2783 + $0x1a0] sm:$0xf]
        %v2840 = vld [vmem:[%s2783 + $0x1a4] sm:$0xff]
        %v2841 = vld [vmem:[%s2783 + $0x1ac] sm:$0xff]
        %v2842 = vld [vmem:[%s2783 + $0x1b4] sm:$0xff]
        %v2843 = vld [vmem:[%s2783 + $0x1bc] sm:$0xff]
        %v2844 = vld [vmem:[%s2783 + $0x1c4] sm:$0xff]
        %v2845 = vld [vmem:[%s2783 + $0x1cc] sm:$0xff]
        %v2846 = vld [vmem:[%s2783 + $0x1d4] sm:$0xff]
        %v2847 = vld [vmem:[%s2783 + $0x1dc] sm:$0xf]
        %v2848 = vld [vmem:[%s2783 + $0x1e0] sm:$0xff]
        %v2849 = vld [vmem:[%s2783 + $0x1e8] sm:$0xff]
        %v2850 = vld [vmem:[%s2783 + $0x1f0] sm:$0xff]
        %v2851 = vld [vmem:[%s2783 + $0x1f8] sm:$0xff]
        %v2852 = vld [vmem:[%s2783 + $0x200] sm:$0xff]
        %v2853 = vld [vmem:[%s2783 + $0x208] sm:$0xff]
        %v2854 = vld [vmem:[%s2783 + $0x210] sm:$0xff]
        %v2855 = vld [vmem:[%s2783 + $0x218] sm:$0xf]
        %v2856 = vld [vmem:[%s2783 + $0x21c] sm:$0xff]
        %v2857 = vld [vmem:[%s2783 + $0x224] sm:$0xff]
        %v2858 = vld [vmem:[%s2783 + $0x22c] sm:$0xff]
        %v2859 = vld [vmem:[%s2783 + $0x234] sm:$0xff]
        %v2860 = vld [vmem:[%s2783 + $0x23c] sm:$0xff]
        %v2861 = vld [vmem:[%s2783 + $0x244] sm:$0xff]
        %v2862 = vld [vmem:[%s2783 + $0x24c] sm:$0xff]
        %v2863 = vld [vmem:[%s2783 + $0x254] sm:$0xf]
        %v2864 = vld [vmem:[%s2783 + $0x258] sm:$0xff]
        %v2865 = vld [vmem:[%s2783 + $0x260] sm:$0xff]
        %v2866 = vld [vmem:[%s2783 + $0x268] sm:$0xff]
        %v2867 = vld [vmem:[%s2783 + $0x270] sm:$0xff]
        %v2868 = vld [vmem:[%s2783 + $0x278] sm:$0xff]
        %v2869 = vld [vmem:[%s2783 + $0x280] sm:$0xff]
        %v2870 = vld [vmem:[%s2783 + $0x288] sm:$0xff]
        %v2871 = vld [vmem:[%s2783 + $0x290] sm:$0xf]
        %v2872 = vld [vmem:[%s2783 + $0x294] sm:$0xff]
        %v2873 = vld [vmem:[%s2783 + $0x29c] sm:$0xff]
        %v2874 = vld [vmem:[%s2783 + $0x2a4] sm:$0xff]
        %v2875 = vld [vmem:[%s2783 + $0x2ac] sm:$0xff]
        %v2876 = vld [vmem:[%s2783 + $0x2b4] sm:$0xff]
        %v2877 = vld [vmem:[%s2783 + $0x2bc] sm:$0xff]
        %v2878 = vld [vmem:[%s2783 + $0x2c4] sm:$0xff]
        %v2879 = vld [vmem:[%s2783 + $0x2cc] sm:$0xf]
        %v2880 = vld [vmem:[%s2783 + $0x2d0] sm:$0xff]
        %v2881 = vld [vmem:[%s2783 + $0x2d8] sm:$0xff]
        %v2882 = vld [vmem:[%s2783 + $0x2e0] sm:$0xff]
        %v2883 = vld [vmem:[%s2783 + $0x2e8] sm:$0xff]
        %v2884 = vld [vmem:[%s2783 + $0x2f0] sm:$0xff]
        %v2885 = vld [vmem:[%s2783 + $0x2f8] sm:$0xff]
        %v2886 = vld [vmem:[%s2783 + $0x300] sm:$0xff]
        %v2887 = vld [vmem:[%s2783 + $0x308] sm:$0xf]
        %v2888 = vld [vmem:[%s2783 + $0x30c] sm:$0xff]
        %v2889 = vld [vmem:[%s2783 + $0x314] sm:$0xff]
        %v2890 = vld [vmem:[%s2783 + $0x31c] sm:$0xff]
        %v2891 = vld [vmem:[%s2783 + $0x324] sm:$0xff]
        %v2892 = vld [vmem:[%s2783 + $0x32c] sm:$0xff]
        %v2893 = vld [vmem:[%s2783 + $0x334] sm:$0xff]
        %v2894 = vld [vmem:[%s2783 + $0x33c] sm:$0xff]
        %v2895 = vld [vmem:[%s2783 + $0x344] sm:$0xf]
        %v2896 = vld [vmem:[%s2783 + $0x348] sm:$0xff]
        %v2897 = vld [vmem:[%s2783 + $0x350] sm:$0xff]
        %v2898 = vld [vmem:[%s2783 + $0x358] sm:$0xff]
        %v2899 = vld [vmem:[%s2783 + $0x360] sm:$0xff]
        %v2900 = vld [vmem:[%s2783 + $0x368] sm:$0xff]
        %v2901 = vld [vmem:[%s2783 + $0x370] sm:$0xff]
        %v2902 = vld [vmem:[%s2783 + $0x378] sm:$0xff]
        %v2903 = vld [vmem:[%s2783 + $0x380] sm:$0xf]
        %v2904 = vld [vmem:[%s2783 + $0x384] sm:$0xff]
        %v2905 = vld [vmem:[%s2783 + $0x38c] sm:$0xff]
        %v2906 = vld [vmem:[%s2783 + $0x394] sm:$0xff]
        %v2907 = vld [vmem:[%s2783 + $0x39c] sm:$0xff]
        %v2908 = vld [vmem:[%s2783 + $0x3a4] sm:$0xff]
        %v2909 = vld [vmem:[%s2783 + $0x3ac] sm:$0xff]
        %v2910 = vld [vmem:[%s2783 + $0x3b4] sm:$0xff]
        %v2911 = vld [vmem:[%s2783 + $0x3bc] sm:$0xf]
        %v3040 = vunpack.c.l.b16 %v2784
        %v3041 = vunpack.c.h.b16 %v2784
        %v3042 = vunpack.c.l.b16 %v2785
        %v3043 = vunpack.c.h.b16 %v2785
        %v3044 = vunpack.c.l.b16 %v2786
        %v3045 = vunpack.c.h.b16 %v2786
        %v3046 = vunpack.c.l.b16 %v2787
        %v3047 = vunpack.c.h.b16 %v2787
        %v3048 = vunpack.c.l.b16 %v2788
        %v3049 = vunpack.c.h.b16 %v2788
        %v3050 = vunpack.c.l.b16 %v2789
        %v3051 = vunpack.c.h.b16 %v2789
        %v3052 = vunpack.c.l.b16 %v2790
        %v3053 = vunpack.c.h.b16 %v2790
        %v3054 = vunpack.c.l.b16 %v2791
        %v3055 = vunpack.c.l.b16 %v2792
        %v3056 = vunpack.c.h.b16 %v2792
        %v3057 = vunpack.c.l.b16 %v2793
        %v3058 = vunpack.c.h.b16 %v2793
        %v3059 = vunpack.c.l.b16 %v2794
        %v3060 = vunpack.c.h.b16 %v2794
        %v3061 = vunpack.c.l.b16 %v2795
        %v3062 = vunpack.c.h.b16 %v2795
        %v3063 = vunpack.c.l.b16 %v2796
        %v3064 = vunpack.c.h.b16 %v2796
        %v3065 = vunpack.c.l.b16 %v2797
        %v3066 = vunpack.c.h.b16 %v2797
        %v3067 = vunpack.c.l.b16 %v2798
        %v3068 = vunpack.c.h.b16 %v2798
        %v3069 = vunpack.c.l.b16 %v2799
        %v3070 = vunpack.c.l.b16 %v2800
        %v3071 = vunpack.c.h.b16 %v2800
        %v3072 = vunpack.c.l.b16 %v2801
        %v3073 = vunpack.c.h.b16 %v2801
        %v3074 = vunpack.c.l.b16 %v2802
        %v3075 = vunpack.c.h.b16 %v2802
        %v3076 = vunpack.c.l.b16 %v2803
        %v3077 = vunpack.c.h.b16 %v2803
        %v3078 = vunpack.c.l.b16 %v2804
        %v3079 = vunpack.c.h.b16 %v2804
        %v3080 = vunpack.c.l.b16 %v2805
        %v3081 = vunpack.c.h.b16 %v2805
        %v3082 = vunpack.c.l.b16 %v2806
        %v3083 = vunpack.c.h.b16 %v2806
        %v3084 = vunpack.c.l.b16 %v2807
        %v3085 = vunpack.c.l.b16 %v2808
        %v3086 = vunpack.c.h.b16 %v2808
        %v3087 = vunpack.c.l.b16 %v2809
        %v3088 = vunpack.c.h.b16 %v2809
        %v3089 = vunpack.c.l.b16 %v2810
        %v3090 = vunpack.c.h.b16 %v2810
        %v3091 = vunpack.c.l.b16 %v2811
        %v3092 = vunpack.c.h.b16 %v2811
        %v3093 = vunpack.c.l.b16 %v2812
        %v3094 = vunpack.c.h.b16 %v2812
        %v3095 = vunpack.c.l.b16 %v2813
        %v3096 = vunpack.c.h.b16 %v2813
        %v3097 = vunpack.c.l.b16 %v2814
        %v3098 = vunpack.c.h.b16 %v2814
        %v3099 = vunpack.c.l.b16 %v2815
        %v3100 = vunpack.c.l.b16 %v2816
        %v3101 = vunpack.c.h.b16 %v2816
        %v3102 = vunpack.c.l.b16 %v2817
        %v3103 = vunpack.c.h.b16 %v2817
        %v3104 = vunpack.c.l.b16 %v2818
        %v3105 = vunpack.c.h.b16 %v2818
        %v3106 = vunpack.c.l.b16 %v2819
        %v3107 = vunpack.c.h.b16 %v2819
        %v3108 = vunpack.c.l.b16 %v2820
        %v3109 = vunpack.c.h.b16 %v2820
        %v3110 = vunpack.c.l.b16 %v2821
        %v3111 = vunpack.c.h.b16 %v2821
        %v3112 = vunpack.c.l.b16 %v2822
        %v3113 = vunpack.c.h.b16 %v2822
        %v3114 = vunpack.c.l.b16 %v2823
        %v3115 = vunpack.c.l.b16 %v2824
        %v3116 = vunpack.c.h.b16 %v2824
        %v3117 = vunpack.c.l.b16 %v2825
        %v3118 = vunpack.c.h.b16 %v2825
        %v3119 = vunpack.c.l.b16 %v2826
        %v3120 = vunpack.c.h.b16 %v2826
        %v3121 = vunpack.c.l.b16 %v2827
        %v3122 = vunpack.c.h.b16 %v2827
        %v3123 = vunpack.c.l.b16 %v2828
        %v3124 = vunpack.c.h.b16 %v2828
        %v3125 = vunpack.c.l.b16 %v2829
        %v3126 = vunpack.c.h.b16 %v2829
        %v3127 = vunpack.c.l.b16 %v2830
        %v3128 = vunpack.c.h.b16 %v2830
        %v3129 = vunpack.c.l.b16 %v2831
        %v3130 = vunpack.c.l.b16 %v2832
        %v3131 = vunpack.c.h.b16 %v2832
        %v3132 = vunpack.c.l.b16 %v2833
        %v3133 = vunpack.c.h.b16 %v2833
        %v3134 = vunpack.c.l.b16 %v2834
        %v3135 = vunpack.c.h.b16 %v2834
        %v3136 = vunpack.c.l.b16 %v2835
        %v3137 = vunpack.c.h.b16 %v2835
        %v3138 = vunpack.c.l.b16 %v2836
        %v3139 = vunpack.c.h.b16 %v2836
        %v3140 = vunpack.c.l.b16 %v2837
        %v3141 = vunpack.c.h.b16 %v2837
        %v3142 = vunpack.c.l.b16 %v2838
        %v3143 = vunpack.c.h.b16 %v2838
        %v3144 = vunpack.c.l.b16 %v2839
        %v3145 = vunpack.c.l.b16 %v2840
        %v3146 = vunpack.c.h.b16 %v2840
        %v3147 = vunpack.c.l.b16 %v2841
        %v3148 = vunpack.c.h.b16 %v2841
        %v3149 = vunpack.c.l.b16 %v2842
        %v3150 = vunpack.c.h.b16 %v2842
        %v3151 = vunpack.c.l.b16 %v2843
        %v3152 = vunpack.c.h.b16 %v2843
        %v3153 = vunpack.c.l.b16 %v2844
        %v3154 = vunpack.c.h.b16 %v2844
        %v3155 = vunpack.c.l.b16 %v2845
        %v3156 = vunpack.c.h.b16 %v2845
        %v3157 = vunpack.c.l.b16 %v2846
        %v3158 = vunpack.c.h.b16 %v2846
        %v3159 = vunpack.c.l.b16 %v2847
        %v3160 = vunpack.c.l.b16 %v2848
        %v3161 = vunpack.c.h.b16 %v2848
        %v3162 = vunpack.c.l.b16 %v2849
        %v3163 = vunpack.c.h.b16 %v2849
        %v3164 = vunpack.c.l.b16 %v2850
        %v3165 = vunpack.c.h.b16 %v2850
        %v3166 = vunpack.c.l.b16 %v2851
        %v3167 = vunpack.c.h.b16 %v2851
        %v3168 = vunpack.c.l.b16 %v2852
        %v3169 = vunpack.c.h.b16 %v2852
        %v3170 = vunpack.c.l.b16 %v2853
        %v3171 = vunpack.c.h.b16 %v2853
        %v3172 = vunpack.c.l.b16 %v2854
        %v3173 = vunpack.c.h.b16 %v2854
        %v3174 = vunpack.c.l.b16 %v2855
        %v3175 = vunpack.c.l.b16 %v2856
        %v3176 = vunpack.c.h.b16 %v2856
        %v3177 = vunpack.c.l.b16 %v2857
        %v3178 = vunpack.c.h.b16 %v2857
        %v3179 = vunpack.c.l.b16 %v2858
        %v3180 = vunpack.c.h.b16 %v2858
        %v3181 = vunpack.c.l.b16 %v2859
        %v3182 = vunpack.c.h.b16 %v2859
        %v3183 = vunpack.c.l.b16 %v2860
        %v3184 = vunpack.c.h.b16 %v2860
        %v3185 = vunpack.c.l.b16 %v2861
        %v3186 = vunpack.c.h.b16 %v2861
        %v3187 = vunpack.c.l.b16 %v2862
        %v3188 = vunpack.c.h.b16 %v2862
        %v3189 = vunpack.c.l.b16 %v2863
        %v3190 = vunpack.c.l.b16 %v2864
        %v3191 = vunpack.c.h.b16 %v2864
        %v3192 = vunpack.c.l.b16 %v2865
        %v3193 = vunpack.c.h.b16 %v2865
        %v3194 = vunpack.c.l.b16 %v2866
        %v3195 = vunpack.c.h.b16 %v2866
        %v3196 = vunpack.c.l.b16 %v2867
        %v3197 = vunpack.c.h.b16 %v2867
        %v3198 = vunpack.c.l.b16 %v2868
        %v3199 = vunpack.c.h.b16 %v2868
        %v3200 = vunpack.c.l.b16 %v2869
        %v3201 = vunpack.c.h.b16 %v2869
        %v3202 = vunpack.c.l.b16 %v2870
        %v3203 = vunpack.c.h.b16 %v2870
        %v3204 = vunpack.c.l.b16 %v2871
        %v3205 = vunpack.c.l.b16 %v2872
        %v3206 = vunpack.c.h.b16 %v2872
        %v3207 = vunpack.c.l.b16 %v2873
        %v3208 = vunpack.c.h.b16 %v2873
        %v3209 = vunpack.c.l.b16 %v2874
        %v3210 = vunpack.c.h.b16 %v2874
        %v3211 = vunpack.c.l.b16 %v2875
        %v3212 = vunpack.c.h.b16 %v2875
        %v3213 = vunpack.c.l.b16 %v2876
        %v3214 = vunpack.c.h.b16 %v2876
        %v3215 = vunpack.c.l.b16 %v2877
        %v3216 = vunpack.c.h.b16 %v2877
        %v3217 = vunpack.c.l.b16 %v2878
        %v3218 = vunpack.c.h.b16 %v2878
        %v3219 = vunpack.c.l.b16 %v2879
        %v3220 = vunpack.c.l.b16 %v2880
        %v3221 = vunpack.c.h.b16 %v2880
        %v3222 = vunpack.c.l.b16 %v2881
        %v3223 = vunpack.c.h.b16 %v2881
        %v3224 = vunpack.c.l.b16 %v2882
        %v3225 = vunpack.c.h.b16 %v2882
        %v3226 = vunpack.c.l.b16 %v2883
        %v3227 = vunpack.c.h.b16 %v2883
        %v3228 = vunpack.c.l.b16 %v2884
        %v3229 = vunpack.c.h.b16 %v2884
        %v3230 = vunpack.c.l.b16 %v2885
        %v3231 = vunpack.c.h.b16 %v2885
        %v3232 = vunpack.c.l.b16 %v2886
        %v3233 = vunpack.c.h.b16 %v2886
        %v3234 = vunpack.c.l.b16 %v2887
        %v3235 = vunpack.c.l.b16 %v2888
        %v3236 = vunpack.c.h.b16 %v2888
        %v3237 = vunpack.c.l.b16 %v2889
        %v3238 = vunpack.c.h.b16 %v2889
        %v3239 = vunpack.c.l.b16 %v2890
        %v3240 = vunpack.c.h.b16 %v2890
        %v3241 = vunpack.c.l.b16 %v2891
        %v3242 = vunpack.c.h.b16 %v2891
        %v3243 = vunpack.c.l.b16 %v2892
        %v3244 = vunpack.c.h.b16 %v2892
        %v3245 = vunpack.c.l.b16 %v2893
        %v3246 = vunpack.c.h.b16 %v2893
        %v3247 = vunpack.c.l.b16 %v2894
        %v3248 = vunpack.c.h.b16 %v2894
        %v3249 = vunpack.c.l.b16 %v2895
        %v3250 = vunpack.c.l.b16 %v2896
        %v3251 = vunpack.c.h.b16 %v2896
        %v3252 = vunpack.c.l.b16 %v2897
        %v3253 = vunpack.c.h.b16 %v2897
        %v3254 = vunpack.c.l.b16 %v2898
        %v3255 = vunpack.c.h.b16 %v2898
        %v3256 = vunpack.c.l.b16 %v2899
        %v3257 = vunpack.c.h.b16 %v2899
        %v3258 = vunpack.c.l.b16 %v2900
        %v3259 = vunpack.c.h.b16 %v2900
        %v3260 = vunpack.c.l.b16 %v2901
        %v3261 = vunpack.c.h.b16 %v2901
        %v3262 = vunpack.c.l.b16 %v2902
        %v3263 = vunpack.c.h.b16 %v2902
        %v3264 = vunpack.c.l.b16 %v2903
        %v3265 = vunpack.c.l.b16 %v2904
        %v3266 = vunpack.c.h.b16 %v2904
        %v3267 = vunpack.c.l.b16 %v2905
        %v3268 = vunpack.c.h.b16 %v2905
        %v3269 = vunpack.c.l.b16 %v2906
        %v3270 = vunpack.c.h.b16 %v2906
        %v3271 = vunpack.c.l.b16 %v2907
        %v3272 = vunpack.c.h.b16 %v2907
        %v3273 = vunpack.c.l.b16 %v2908
        %v3274 = vunpack.c.h.b16 %v2908
        %v3275 = vunpack.c.l.b16 %v2909
        %v3276 = vunpack.c.h.b16 %v2909
        %v3277 = vunpack.c.l.b16 %v2910
        %v3278 = vunpack.c.h.b16 %v2910
        %v3279 = vunpack.c.l.b16 %v2911
        %v3280 = vpack.c.b16 %v3055, %v3040
        %v3281 = vpack.c.b16 %v3056, %v3041
        %v3282 = vpack.c.b16 %v3057, %v3042
        %v3283 = vpack.c.b16 %v3058, %v3043
        %v3284 = vpack.c.b16 %v3059, %v3044
        %v3285 = vpack.c.b16 %v3060, %v3045
        %v3286 = vpack.c.b16 %v3061, %v3046
        %v3287 = vpack.c.b16 %v3062, %v3047
        %v3288 = vpack.c.b16 %v3063, %v3048
        %v3289 = vpack.c.b16 %v3064, %v3049
        %v3290 = vpack.c.b16 %v3065, %v3050
        %v3291 = vpack.c.b16 %v3066, %v3051
        %v3292 = vpack.c.b16 %v3067, %v3052
        %v3293 = vpack.c.b16 %v3068, %v3053
        %v3294 = vpack.c.b16 %v3069, %v3054
        %v3295 = vpack.c.b16 %v3085, %v3070
        %v3296 = vpack.c.b16 %v3086, %v3071
        %v3297 = vpack.c.b16 %v3087, %v3072
        %v3298 = vpack.c.b16 %v3088, %v3073
        %v3299 = vpack.c.b16 %v3089, %v3074
        %v3300 = vpack.c.b16 %v3090, %v3075
        %v3301 = vpack.c.b16 %v3091, %v3076
        %v3302 = vpack.c.b16 %v3092, %v3077
        %v3303 = vpack.c.b16 %v3093, %v3078
        %v3304 = vpack.c.b16 %v3094, %v3079
        %v3305 = vpack.c.b16 %v3095, %v3080
        %v3306 = vpack.c.b16 %v3096, %v3081
        %v3307 = vpack.c.b16 %v3097, %v3082
        %v3308 = vpack.c.b16 %v3098, %v3083
        %v3309 = vpack.c.b16 %v3099, %v3084
        %v3310 = vpack.c.b16 %v3115, %v3100
        %v3311 = vpack.c.b16 %v3116, %v3101
        %v3312 = vpack.c.b16 %v3117, %v3102
        %v3313 = vpack.c.b16 %v3118, %v3103
        %v3314 = vpack.c.b16 %v3119, %v3104
        %v3315 = vpack.c.b16 %v3120, %v3105
        %v3316 = vpack.c.b16 %v3121, %v3106
        %v3317 = vpack.c.b16 %v3122, %v3107
        %v3318 = vpack.c.b16 %v3123, %v3108
        %v3319 = vpack.c.b16 %v3124, %v3109
        %v3320 = vpack.c.b16 %v3125, %v3110
        %v3321 = vpack.c.b16 %v3126, %v3111
        %v3322 = vpack.c.b16 %v3127, %v3112
        %v3323 = vpack.c.b16 %v3128, %v3113
        %v3324 = vpack.c.b16 %v3129, %v3114
        %v3325 = vpack.c.b16 %v3145, %v3130
        %v3326 = vpack.c.b16 %v3146, %v3131
        %v3327 = vpack.c.b16 %v3147, %v3132
        %v3328 = vpack.c.b16 %v3148, %v3133
        %v3329 = vpack.c.b16 %v3149, %v3134
        %v3330 = vpack.c.b16 %v3150, %v3135
        %v3331 = vpack.c.b16 %v3151, %v3136
        %v3332 = vpack.c.b16 %v3152, %v3137
        %v3333 = vpack.c.b16 %v3153, %v3138
        %v3334 = vpack.c.b16 %v3154, %v3139
        %v3335 = vpack.c.b16 %v3155, %v3140
        %v3336 = vpack.c.b16 %v3156, %v3141
        %v3337 = vpack.c.b16 %v3157, %v3142
        %v3338 = vpack.c.b16 %v3158, %v3143
        %v3339 = vpack.c.b16 %v3159, %v3144
        %v3340 = vpack.c.b16 %v3175, %v3160
        %v3341 = vpack.c.b16 %v3176, %v3161
        %v3342 = vpack.c.b16 %v3177, %v3162
        %v3343 = vpack.c.b16 %v3178, %v3163
        %v3344 = vpack.c.b16 %v3179, %v3164
        %v3345 = vpack.c.b16 %v3180, %v3165
        %v3346 = vpack.c.b16 %v3181, %v3166
        %v3347 = vpack.c.b16 %v3182, %v3167
        %v3348 = vpack.c.b16 %v3183, %v3168
        %v3349 = vpack.c.b16 %v3184, %v3169
        %v3350 = vpack.c.b16 %v3185, %v3170
        %v3351 = vpack.c.b16 %v3186, %v3171
        %v3352 = vpack.c.b16 %v3187, %v3172
        %v3353 = vpack.c.b16 %v3188, %v3173
        %v3354 = vpack.c.b16 %v3189, %v3174
        %v3355 = vpack.c.b16 %v3205, %v3190
        %v3356 = vpack.c.b16 %v3206, %v3191
        %v3357 = vpack.c.b16 %v3207, %v3192
        %v3358 = vpack.c.b16 %v3208, %v3193
        %v3359 = vpack.c.b16 %v3209, %v3194
        %v3360 = vpack.c.b16 %v3210, %v3195
        %v3361 = vpack.c.b16 %v3211, %v3196
        %v3362 = vpack.c.b16 %v3212, %v3197
        %v3363 = vpack.c.b16 %v3213, %v3198
        %v3364 = vpack.c.b16 %v3214, %v3199
        %v3365 = vpack.c.b16 %v3215, %v3200
        %v3366 = vpack.c.b16 %v3216, %v3201
        %v3367 = vpack.c.b16 %v3217, %v3202
        %v3368 = vpack.c.b16 %v3218, %v3203
        %v3369 = vpack.c.b16 %v3219, %v3204
        %v3370 = vpack.c.b16 %v3235, %v3220
        %v3371 = vpack.c.b16 %v3236, %v3221
        %v3372 = vpack.c.b16 %v3237, %v3222
        %v3373 = vpack.c.b16 %v3238, %v3223
        %v3374 = vpack.c.b16 %v3239, %v3224
        %v3375 = vpack.c.b16 %v3240, %v3225
        %v3376 = vpack.c.b16 %v3241, %v3226
        %v3377 = vpack.c.b16 %v3242, %v3227
        %v3378 = vpack.c.b16 %v3243, %v3228
        %v3379 = vpack.c.b16 %v3244, %v3229
        %v3380 = vpack.c.b16 %v3245, %v3230
        %v3381 = vpack.c.b16 %v3246, %v3231
        %v3382 = vpack.c.b16 %v3247, %v3232
        %v3383 = vpack.c.b16 %v3248, %v3233
        %v3384 = vpack.c.b16 %v3249, %v3234
        %v3385 = vpack.c.b16 %v3265, %v3250
        %v3386 = vpack.c.b16 %v3266, %v3251
        %v3387 = vpack.c.b16 %v3267, %v3252
        %v3388 = vpack.c.b16 %v3268, %v3253
        %v3389 = vpack.c.b16 %v3269, %v3254
        %v3390 = vpack.c.b16 %v3270, %v3255
        %v3391 = vpack.c.b16 %v3271, %v3256
        %v3392 = vpack.c.b16 %v3272, %v3257
        %v3393 = vpack.c.b16 %v3273, %v3258
        %v3394 = vpack.c.b16 %v3274, %v3259
        %v3395 = vpack.c.b16 %v3275, %v3260
        %v3396 = vpack.c.b16 %v3276, %v3261
        %v3397 = vpack.c.b16 %v3277, %v3262
        %v3398 = vpack.c.b16 %v3278, %v3263
        %v3399 = vpack.c.b16 %v3279, %v3264
        %3520 = vmatpush.bf16.msra.mxu0 %v1709
        %3521 = vmatpush.bf16.msra.mxu0 %v1708
        %3522 = vmatpush.bf16.msra.mxu0 %v1707
        %3523 = vmatpush.bf16.msra.mxu0 %v1706
        %3524 = vmatpush.bf16.msra.mxu0 %v1705
        %3525 = vmatpush.bf16.msra.mxu0 %v1704
        %3526 = vmatpush.bf16.msra.mxu0 %v1703
        %3527 = vmatpush.bf16.msra.mxu0 %v1702
        %3528 = vmatmul.bf16.gmra.mxu0 %v3280
        %v3529 = vpop.f32.mrf.mxu0
        %v3530 = vadd.f32 0.0, %v3529
        %v3531 = vpop.f32.mrf.mxu0
        %v3532 = vadd.f32 0.0, %v3531
        %3533 = vmatmul.bf16.gmra.mxu0 %v3295
        %v3534 = vpop.f32.mrf.mxu0
        %v3535 = vadd.f32 0.0, %v3534
        %v3536 = vpop.f32.mrf.mxu0
        %v3537 = vadd.f32 0.0, %v3536
        %3538 = vmatmul.bf16.gmra.mxu0 %v3310
        %v3539 = vpop.f32.mrf.mxu0
        %v3540 = vadd.f32 0.0, %v3539
        %v3541 = vpop.f32.mrf.mxu0
        %v3542 = vadd.f32 0.0, %v3541
        %3543 = vmatmul.bf16.gmra.mxu0 %v3325
        %v3544 = vpop.f32.mrf.mxu0
        %v3545 = vadd.f32 0.0, %v3544
        %v3546 = vpop.f32.mrf.mxu0
        %v3547 = vadd.f32 0.0, %v3546
        %3548 = vmatmul.bf16.gmra.mxu0 %v3340
        %v3549 = vpop.f32.mrf.mxu0
        %v3550 = vadd.f32 0.0, %v3549
        %v3551 = vpop.f32.mrf.mxu0
        %v3552 = vadd.f32 0.0, %v3551
        %3553 = vmatmul.bf16.gmra.mxu0 %v3355
        %v3554 = vpop.f32.mrf.mxu0
        %v3555 = vadd.f32 0.0, %v3554
        %v3556 = vpop.f32.mrf.mxu0
        %v3557 = vadd.f32 0.0, %v3556
        %3558 = vmatmul.bf16.gmra.mxu0 %v3370
        %v3559 = vpop.f32.mrf.mxu0
        %v3560 = vadd.f32 0.0, %v3559
        %v3561 = vpop.f32.mrf.mxu0
        %v3562 = vadd.f32 0.0, %v3561
        %3563 = vmatmul.bf16.gmra.mxu0 %v3385
        %v3564 = vpop.f32.mrf.mxu0
        %v3565 = vadd.f32 0.0, %v3564
        %v3566 = vpop.f32.mrf.mxu0
        %v3567 = vadd.f32 0.0, %v3566
        %3568 = vdwg.mxu0
        %3569 = vmatpush.bf16.msra.mxu0 %v1717
        %3570 = vmatpush.bf16.msra.mxu0 %v1716
        %3571 = vmatpush.bf16.msra.mxu0 %v1715
        %3572 = vmatpush.bf16.msra.mxu0 %v1714
        %3573 = vmatpush.bf16.msra.mxu0 %v1713
        %3574 = vmatpush.bf16.msra.mxu0 %v1712
        %3575 = vmatpush.bf16.msra.mxu0 %v1711
        %3576 = vmatpush.bf16.msra.mxu0 %v1710
        %3577 = vmatmul.bf16.gmra.mxu0 %v3281
        %v3578 = vpop.f32.mrf.mxu0
        %v3579 = vadd.f32 %v3530, %v3578
        %v3580 = vpop.f32.mrf.mxu0
        %v3581 = vadd.f32 %v3532, %v3580
        %3582 = vmatmul.bf16.gmra.mxu0 %v3296
        %v3583 = vpop.f32.mrf.mxu0
        %v3584 = vadd.f32 %v3535, %v3583
        %v3585 = vpop.f32.mrf.mxu0
        %v3586 = vadd.f32 %v3537, %v3585
        %3587 = vmatmul.bf16.gmra.mxu0 %v3311
        %v3588 = vpop.f32.mrf.mxu0
        %v3589 = vadd.f32 %v3540, %v3588
        %v3590 = vpop.f32.mrf.mxu0
        %v3591 = vadd.f32 %v3542, %v3590
        %3592 = vmatmul.bf16.gmra.mxu0 %v3326
        %v3593 = vpop.f32.mrf.mxu0
        %v3594 = vadd.f32 %v3545, %v3593
        %v3595 = vpop.f32.mrf.mxu0
        %v3596 = vadd.f32 %v3547, %v3595
        %3597 = vmatmul.bf16.gmra.mxu0 %v3341
        %v3598 = vpop.f32.mrf.mxu0
        %v3599 = vadd.f32 %v3550, %v3598
        %v3600 = vpop.f32.mrf.mxu0
        %v3601 = vadd.f32 %v3552, %v3600
        %3602 = vmatmul.bf16.gmra.mxu0 %v3356
        %v3603 = vpop.f32.mrf.mxu0
        %v3604 = vadd.f32 %v3555, %v3603
        %v3605 = vpop.f32.mrf.mxu0
        %v3606 = vadd.f32 %v3557, %v3605
        %3607 = vmatmul.bf16.gmra.mxu0 %v3371
        %v3608 = vpop.f32.mrf.mxu0
        %v3609 = vadd.f32 %v3560, %v3608
        %v3610 = vpop.f32.mrf.mxu0
        %v3611 = vadd.f32 %v3562, %v3610
        %3612 = vmatmul.bf16.gmra.mxu0 %v3386
        %v3613 = vpop.f32.mrf.mxu0
        %v3614 = vadd.f32 %v3565, %v3613
        %v3615 = vpop.f32.mrf.mxu0
        %v3616 = vadd.f32 %v3567, %v3615
        %3617 = vdwg.mxu0
        %3618 = vmatpush.bf16.msra.mxu0 %v1725
        %3619 = vmatpush.bf16.msra.mxu0 %v1724
        %3620 = vmatpush.bf16.msra.mxu0 %v1723
        %3621 = vmatpush.bf16.msra.mxu0 %v1722
        %3622 = vmatpush.bf16.msra.mxu0 %v1721
        %3623 = vmatpush.bf16.msra.mxu0 %v1720
        %3624 = vmatpush.bf16.msra.mxu0 %v1719
        %3625 = vmatpush.bf16.msra.mxu0 %v1718
        %3626 = vmatmul.bf16.gmra.mxu0 %v3282
        %v3627 = vpop.f32.mrf.mxu0
        %v3628 = vadd.f32 %v3579, %v3627
        %v3629 = vpop.f32.mrf.mxu0
        %v3630 = vadd.f32 %v3581, %v3629
        %3631 = vmatmul.bf16.gmra.mxu0 %v3297
        %v3632 = vpop.f32.mrf.mxu0
        %v3633 = vadd.f32 %v3584, %v3632
        %v3634 = vpop.f32.mrf.mxu0
        %v3635 = vadd.f32 %v3586, %v3634
        %3636 = vmatmul.bf16.gmra.mxu0 %v3312
        %v3637 = vpop.f32.mrf.mxu0
        %v3638 = vadd.f32 %v3589, %v3637
        %v3639 = vpop.f32.mrf.mxu0
        %v3640 = vadd.f32 %v3591, %v3639
        %3641 = vmatmul.bf16.gmra.mxu0 %v3327
        %v3642 = vpop.f32.mrf.mxu0
        %v3643 = vadd.f32 %v3594, %v3642
        %v3644 = vpop.f32.mrf.mxu0
        %v3645 = vadd.f32 %v3596, %v3644
        %3646 = vmatmul.bf16.gmra.mxu0 %v3342
        %v3647 = vpop.f32.mrf.mxu0
        %v3648 = vadd.f32 %v3599, %v3647
        %v3649 = vpop.f32.mrf.mxu0
        %v3650 = vadd.f32 %v3601, %v3649
        %3651 = vmatmul.bf16.gmra.mxu0 %v3357
        %v3652 = vpop.f32.mrf.mxu0
        %v3653 = vadd.f32 %v3604, %v3652
        %v3654 = vpop.f32.mrf.mxu0
        %v3655 = vadd.f32 %v3606, %v3654
        %3656 = vmatmul.bf16.gmra.mxu0 %v3372
        %v3657 = vpop.f32.mrf.mxu0
        %v3658 = vadd.f32 %v3609, %v3657
        %v3659 = vpop.f32.mrf.mxu0
        %v3660 = vadd.f32 %v3611, %v3659
        %3661 = vmatmul.bf16.gmra.mxu0 %v3387
        %v3662 = vpop.f32.mrf.mxu0
        %v3663 = vadd.f32 %v3614, %v3662
        %v3664 = vpop.f32.mrf.mxu0
        %v3665 = vadd.f32 %v3616, %v3664
        %3666 = vdwg.mxu0
        %3667 = vmatpush.bf16.msra.mxu0 %v1733
        %3668 = vmatpush.bf16.msra.mxu0 %v1732
        %3669 = vmatpush.bf16.msra.mxu0 %v1731
        %3670 = vmatpush.bf16.msra.mxu0 %v1730
        %3671 = vmatpush.bf16.msra.mxu0 %v1729
        %3672 = vmatpush.bf16.msra.mxu0 %v1728
        %3673 = vmatpush.bf16.msra.mxu0 %v1727
        %3674 = vmatpush.bf16.msra.mxu0 %v1726
        %3675 = vmatmul.bf16.gmra.mxu0 %v3283
        %v3676 = vpop.f32.mrf.mxu0
        %v3677 = vadd.f32 %v3628, %v3676
        %v3678 = vpop.f32.mrf.mxu0
        %v3679 = vadd.f32 %v3630, %v3678
        %3680 = vmatmul.bf16.gmra.mxu0 %v3298
        %v3681 = vpop.f32.mrf.mxu0
        %v3682 = vadd.f32 %v3633, %v3681
        %v3683 = vpop.f32.mrf.mxu0
        %v3684 = vadd.f32 %v3635, %v3683
        %3685 = vmatmul.bf16.gmra.mxu0 %v3313
        %v3686 = vpop.f32.mrf.mxu0
        %v3687 = vadd.f32 %v3638, %v3686
        %v3688 = vpop.f32.mrf.mxu0
        %v3689 = vadd.f32 %v3640, %v3688
        %3690 = vmatmul.bf16.gmra.mxu0 %v3328
        %v3691 = vpop.f32.mrf.mxu0
        %v3692 = vadd.f32 %v3643, %v3691
        %v3693 = vpop.f32.mrf.mxu0
        %v3694 = vadd.f32 %v3645, %v3693
        %3695 = vmatmul.bf16.gmra.mxu0 %v3343
        %v3696 = vpop.f32.mrf.mxu0
        %v3697 = vadd.f32 %v3648, %v3696
        %v3698 = vpop.f32.mrf.mxu0
        %v3699 = vadd.f32 %v3650, %v3698
        %3700 = vmatmul.bf16.gmra.mxu0 %v3358
        %v3701 = vpop.f32.mrf.mxu0
        %v3702 = vadd.f32 %v3653, %v3701
        %v3703 = vpop.f32.mrf.mxu0
        %v3704 = vadd.f32 %v3655, %v3703
        %3705 = vmatmul.bf16.gmra.mxu0 %v3373
        %v3706 = vpop.f32.mrf.mxu0
        %v3707 = vadd.f32 %v3658, %v3706
        %v3708 = vpop.f32.mrf.mxu0
        %v3709 = vadd.f32 %v3660, %v3708
        %3710 = vmatmul.bf16.gmra.mxu0 %v3388
        %v3711 = vpop.f32.mrf.mxu0
        %v3712 = vadd.f32 %v3663, %v3711
        %v3713 = vpop.f32.mrf.mxu0
        %v3714 = vadd.f32 %v3665, %v3713
        %3715 = vdwg.mxu0
        %3716 = vmatpush.bf16.msra.mxu0 %v1741
        %3717 = vmatpush.bf16.msra.mxu0 %v1740
        %3718 = vmatpush.bf16.msra.mxu0 %v1739
        %3719 = vmatpush.bf16.msra.mxu0 %v1738
        %3720 = vmatpush.bf16.msra.mxu0 %v1737
        %3721 = vmatpush.bf16.msra.mxu0 %v1736
        %3722 = vmatpush.bf16.msra.mxu0 %v1735
        %3723 = vmatpush.bf16.msra.mxu0 %v1734
        %3724 = vmatmul.bf16.gmra.mxu0 %v3284
        %v3725 = vpop.f32.mrf.mxu0
        %v3726 = vadd.f32 %v3677, %v3725
        %v3727 = vpop.f32.mrf.mxu0
        %v3728 = vadd.f32 %v3679, %v3727
        %3729 = vmatmul.bf16.gmra.mxu0 %v3299
        %v3730 = vpop.f32.mrf.mxu0
        %v3731 = vadd.f32 %v3682, %v3730
        %v3732 = vpop.f32.mrf.mxu0
        %v3733 = vadd.f32 %v3684, %v3732
        %3734 = vmatmul.bf16.gmra.mxu0 %v3314
        %v3735 = vpop.f32.mrf.mxu0
        %v3736 = vadd.f32 %v3687, %v3735
        %v3737 = vpop.f32.mrf.mxu0
        %v3738 = vadd.f32 %v3689, %v3737
        %3739 = vmatmul.bf16.gmra.mxu0 %v3329
        %v3740 = vpop.f32.mrf.mxu0
        %v3741 = vadd.f32 %v3692, %v3740
        %v3742 = vpop.f32.mrf.mxu0
        %v3743 = vadd.f32 %v3694, %v3742
        %3744 = vmatmul.bf16.gmra.mxu0 %v3344
        %v3745 = vpop.f32.mrf.mxu0
        %v3746 = vadd.f32 %v3697, %v3745
        %v3747 = vpop.f32.mrf.mxu0
        %v3748 = vadd.f32 %v3699, %v3747
        %3749 = vmatmul.bf16.gmra.mxu0 %v3359
        %v3750 = vpop.f32.mrf.mxu0
        %v3751 = vadd.f32 %v3702, %v3750
        %v3752 = vpop.f32.mrf.mxu0
        %v3753 = vadd.f32 %v3704, %v3752
        %3754 = vmatmul.bf16.gmra.mxu0 %v3374
        %v3755 = vpop.f32.mrf.mxu0
        %v3756 = vadd.f32 %v3707, %v3755
        %v3757 = vpop.f32.mrf.mxu0
        %v3758 = vadd.f32 %v3709, %v3757
        %3759 = vmatmul.bf16.gmra.mxu0 %v3389
        %v3760 = vpop.f32.mrf.mxu0
        %v3761 = vadd.f32 %v3712, %v3760
        %v3762 = vpop.f32.mrf.mxu0
        %v3763 = vadd.f32 %v3714, %v3762
        %3764 = vdwg.mxu0
        %3765 = vmatpush.bf16.msra.mxu0 %v1749
        %3766 = vmatpush.bf16.msra.mxu0 %v1748
        %3767 = vmatpush.bf16.msra.mxu0 %v1747
        %3768 = vmatpush.bf16.msra.mxu0 %v1746
        %3769 = vmatpush.bf16.msra.mxu0 %v1745
        %3770 = vmatpush.bf16.msra.mxu0 %v1744
        %3771 = vmatpush.bf16.msra.mxu0 %v1743
        %3772 = vmatpush.bf16.msra.mxu0 %v1742
        %3773 = vmatmul.bf16.gmra.mxu0 %v3285
        %v3774 = vpop.f32.mrf.mxu0
        %v3775 = vadd.f32 %v3726, %v3774
        %v3776 = vpop.f32.mrf.mxu0
        %v3777 = vadd.f32 %v3728, %v3776
        %3778 = vmatmul.bf16.gmra.mxu0 %v3300
        %v3779 = vpop.f32.mrf.mxu0
        %v3780 = vadd.f32 %v3731, %v3779
        %v3781 = vpop.f32.mrf.mxu0
        %v3782 = vadd.f32 %v3733, %v3781
        %3783 = vmatmul.bf16.gmra.mxu0 %v3315
        %v3784 = vpop.f32.mrf.mxu0
        %v3785 = vadd.f32 %v3736, %v3784
        %v3786 = vpop.f32.mrf.mxu0
        %v3787 = vadd.f32 %v3738, %v3786
        %3788 = vmatmul.bf16.gmra.mxu0 %v3330
        %v3789 = vpop.f32.mrf.mxu0
        %v3790 = vadd.f32 %v3741, %v3789
        %v3791 = vpop.f32.mrf.mxu0
        %v3792 = vadd.f32 %v3743, %v3791
        %3793 = vmatmul.bf16.gmra.mxu0 %v3345
        %v3794 = vpop.f32.mrf.mxu0
        %v3795 = vadd.f32 %v3746, %v3794
        %v3796 = vpop.f32.mrf.mxu0
        %v3797 = vadd.f32 %v3748, %v3796
        %3798 = vmatmul.bf16.gmra.mxu0 %v3360
        %v3799 = vpop.f32.mrf.mxu0
        %v3800 = vadd.f32 %v3751, %v3799
        %v3801 = vpop.f32.mrf.mxu0
        %v3802 = vadd.f32 %v3753, %v3801
        %3803 = vmatmul.bf16.gmra.mxu0 %v3375
        %v3804 = vpop.f32.mrf.mxu0
        %v3805 = vadd.f32 %v3756, %v3804
        %v3806 = vpop.f32.mrf.mxu0
        %v3807 = vadd.f32 %v3758, %v3806
        %3808 = vmatmul.bf16.gmra.mxu0 %v3390
        %v3809 = vpop.f32.mrf.mxu0
        %v3810 = vadd.f32 %v3761, %v3809
        %v3811 = vpop.f32.mrf.mxu0
        %v3812 = vadd.f32 %v3763, %v3811
        %3813 = vdwg.mxu0
        %3814 = vmatpush.bf16.msra.mxu0 %v1757
        %3815 = vmatpush.bf16.msra.mxu0 %v1756
        %3816 = vmatpush.bf16.msra.mxu0 %v1755
        %3817 = vmatpush.bf16.msra.mxu0 %v1754
        %3818 = vmatpush.bf16.msra.mxu0 %v1753
        %3819 = vmatpush.bf16.msra.mxu0 %v1752
        %3820 = vmatpush.bf16.msra.mxu0 %v1751
        %3821 = vmatpush.bf16.msra.mxu0 %v1750
        %3822 = vmatmul.bf16.gmra.mxu0 %v3286
        %v3823 = vpop.f32.mrf.mxu0
        %v3824 = vadd.f32 %v3775, %v3823
        %v3825 = vpop.f32.mrf.mxu0
        %v3826 = vadd.f32 %v3777, %v3825
        %3827 = vmatmul.bf16.gmra.mxu0 %v3301
        %v3828 = vpop.f32.mrf.mxu0
        %v3829 = vadd.f32 %v3780, %v3828
        %v3830 = vpop.f32.mrf.mxu0
        %v3831 = vadd.f32 %v3782, %v3830
        %3832 = vmatmul.bf16.gmra.mxu0 %v3316
        %v3833 = vpop.f32.mrf.mxu0
        %v3834 = vadd.f32 %v3785, %v3833
        %v3835 = vpop.f32.mrf.mxu0
        %v3836 = vadd.f32 %v3787, %v3835
        %3837 = vmatmul.bf16.gmra.mxu0 %v3331
        %v3838 = vpop.f32.mrf.mxu0
        %v3839 = vadd.f32 %v3790, %v3838
        %v3840 = vpop.f32.mrf.mxu0
        %v3841 = vadd.f32 %v3792, %v3840
        %3842 = vmatmul.bf16.gmra.mxu0 %v3346
        %v3843 = vpop.f32.mrf.mxu0
        %v3844 = vadd.f32 %v3795, %v3843
        %v3845 = vpop.f32.mrf.mxu0
        %v3846 = vadd.f32 %v3797, %v3845
        %3847 = vmatmul.bf16.gmra.mxu0 %v3361
        %v3848 = vpop.f32.mrf.mxu0
        %v3849 = vadd.f32 %v3800, %v3848
        %v3850 = vpop.f32.mrf.mxu0
        %v3851 = vadd.f32 %v3802, %v3850
        %3852 = vmatmul.bf16.gmra.mxu0 %v3376
        %v3853 = vpop.f32.mrf.mxu0
        %v3854 = vadd.f32 %v3805, %v3853
        %v3855 = vpop.f32.mrf.mxu0
        %v3856 = vadd.f32 %v3807, %v3855
        %3857 = vmatmul.bf16.gmra.mxu0 %v3391
        %v3858 = vpop.f32.mrf.mxu0
        %v3859 = vadd.f32 %v3810, %v3858
        %v3860 = vpop.f32.mrf.mxu0
        %v3861 = vadd.f32 %v3812, %v3860
        %3862 = vdwg.mxu0
        %3863 = vmatpush.bf16.msra.mxu0 %v1765
        %3864 = vmatpush.bf16.msra.mxu0 %v1764
        %3865 = vmatpush.bf16.msra.mxu0 %v1763
        %3866 = vmatpush.bf16.msra.mxu0 %v1762
        %3867 = vmatpush.bf16.msra.mxu0 %v1761
        %3868 = vmatpush.bf16.msra.mxu0 %v1760
        %3869 = vmatpush.bf16.msra.mxu0 %v1759
        %3870 = vmatpush.bf16.msra.mxu0 %v1758
        %3871 = vmatmul.bf16.gmra.mxu0 %v3287
        %v3872 = vpop.f32.mrf.mxu0
        %v3873 = vadd.f32 %v3824, %v3872
        %v3874 = vpop.f32.mrf.mxu0
        %v3875 = vadd.f32 %v3826, %v3874
        %3876 = vmatmul.bf16.gmra.mxu0 %v3302
        %v3877 = vpop.f32.mrf.mxu0
        %v3878 = vadd.f32 %v3829, %v3877
        %v3879 = vpop.f32.mrf.mxu0
        %v3880 = vadd.f32 %v3831, %v3879
        %3881 = vmatmul.bf16.gmra.mxu0 %v3317
        %v3882 = vpop.f32.mrf.mxu0
        %v3883 = vadd.f32 %v3834, %v3882
        %v3884 = vpop.f32.mrf.mxu0
        %v3885 = vadd.f32 %v3836, %v3884
        %3886 = vmatmul.bf16.gmra.mxu0 %v3332
        %v3887 = vpop.f32.mrf.mxu0
        %v3888 = vadd.f32 %v3839, %v3887
        %v3889 = vpop.f32.mrf.mxu0
        %v3890 = vadd.f32 %v3841, %v3889
        %3891 = vmatmul.bf16.gmra.mxu0 %v3347
        %v3892 = vpop.f32.mrf.mxu0
        %v3893 = vadd.f32 %v3844, %v3892
        %v3894 = vpop.f32.mrf.mxu0
        %v3895 = vadd.f32 %v3846, %v3894
        %3896 = vmatmul.bf16.gmra.mxu0 %v3362
        %v3897 = vpop.f32.mrf.mxu0
        %v3898 = vadd.f32 %v3849, %v3897
        %v3899 = vpop.f32.mrf.mxu0
        %v3900 = vadd.f32 %v3851, %v3899
        %3901 = vmatmul.bf16.gmra.mxu0 %v3377
        %v3902 = vpop.f32.mrf.mxu0
        %v3903 = vadd.f32 %v3854, %v3902
        %v3904 = vpop.f32.mrf.mxu0
        %v3905 = vadd.f32 %v3856, %v3904
        %3906 = vmatmul.bf16.gmra.mxu0 %v3392
        %v3907 = vpop.f32.mrf.mxu0
        %v3908 = vadd.f32 %v3859, %v3907
        %v3909 = vpop.f32.mrf.mxu0
        %v3910 = vadd.f32 %v3861, %v3909
        %3911 = vdwg.mxu0
        %3912 = vmatpush.bf16.msra.mxu0 %v1773
        %3913 = vmatpush.bf16.msra.mxu0 %v1772
        %3914 = vmatpush.bf16.msra.mxu0 %v1771
        %3915 = vmatpush.bf16.msra.mxu0 %v1770
        %3916 = vmatpush.bf16.msra.mxu0 %v1769
        %3917 = vmatpush.bf16.msra.mxu0 %v1768
        %3918 = vmatpush.bf16.msra.mxu0 %v1767
        %3919 = vmatpush.bf16.msra.mxu0 %v1766
        %3920 = vmatmul.bf16.gmra.mxu0 %v3288
        %v3921 = vpop.f32.mrf.mxu0
        %v3922 = vadd.f32 %v3873, %v3921
        %v3923 = vpop.f32.mrf.mxu0
        %v3924 = vadd.f32 %v3875, %v3923
        %3925 = vmatmul.bf16.gmra.mxu0 %v3303
        %v3926 = vpop.f32.mrf.mxu0
        %v3927 = vadd.f32 %v3878, %v3926
        %v3928 = vpop.f32.mrf.mxu0
        %v3929 = vadd.f32 %v3880, %v3928
        %3930 = vmatmul.bf16.gmra.mxu0 %v3318
        %v3931 = vpop.f32.mrf.mxu0
        %v3932 = vadd.f32 %v3883, %v3931
        %v3933 = vpop.f32.mrf.mxu0
        %v3934 = vadd.f32 %v3885, %v3933
        %3935 = vmatmul.bf16.gmra.mxu0 %v3333
        %v3936 = vpop.f32.mrf.mxu0
        %v3937 = vadd.f32 %v3888, %v3936
        %v3938 = vpop.f32.mrf.mxu0
        %v3939 = vadd.f32 %v3890, %v3938
        %3940 = vmatmul.bf16.gmra.mxu0 %v3348
        %v3941 = vpop.f32.mrf.mxu0
        %v3942 = vadd.f32 %v3893, %v3941
        %v3943 = vpop.f32.mrf.mxu0
        %v3944 = vadd.f32 %v3895, %v3943
        %3945 = vmatmul.bf16.gmra.mxu0 %v3363
        %v3946 = vpop.f32.mrf.mxu0
        %v3947 = vadd.f32 %v3898, %v3946
        %v3948 = vpop.f32.mrf.mxu0
        %v3949 = vadd.f32 %v3900, %v3948
        %3950 = vmatmul.bf16.gmra.mxu0 %v3378
        %v3951 = vpop.f32.mrf.mxu0
        %v3952 = vadd.f32 %v3903, %v3951
        %v3953 = vpop.f32.mrf.mxu0
        %v3954 = vadd.f32 %v3905, %v3953
        %3955 = vmatmul.bf16.gmra.mxu0 %v3393
        %v3956 = vpop.f32.mrf.mxu0
        %v3957 = vadd.f32 %v3908, %v3956
        %v3958 = vpop.f32.mrf.mxu0
        %v3959 = vadd.f32 %v3910, %v3958
        %3960 = vdwg.mxu0
        %3961 = vmatpush.bf16.msra.mxu0 %v1781
        %3962 = vmatpush.bf16.msra.mxu0 %v1780
        %3963 = vmatpush.bf16.msra.mxu0 %v1779
        %3964 = vmatpush.bf16.msra.mxu0 %v1778
        %3965 = vmatpush.bf16.msra.mxu0 %v1777
        %3966 = vmatpush.bf16.msra.mxu0 %v1776
        %3967 = vmatpush.bf16.msra.mxu0 %v1775
        %3968 = vmatpush.bf16.msra.mxu0 %v1774
        %3969 = vmatmul.bf16.gmra.mxu0 %v3289
        %v3970 = vpop.f32.mrf.mxu0
        %v3971 = vadd.f32 %v3922, %v3970
        %v3972 = vpop.f32.mrf.mxu0
        %v3973 = vadd.f32 %v3924, %v3972
        %3974 = vmatmul.bf16.gmra.mxu0 %v3304
        %v3975 = vpop.f32.mrf.mxu0
        %v3976 = vadd.f32 %v3927, %v3975
        %v3977 = vpop.f32.mrf.mxu0
        %v3978 = vadd.f32 %v3929, %v3977
        %3979 = vmatmul.bf16.gmra.mxu0 %v3319
        %v3980 = vpop.f32.mrf.mxu0
        %v3981 = vadd.f32 %v3932, %v3980
        %v3982 = vpop.f32.mrf.mxu0
        %v3983 = vadd.f32 %v3934, %v3982
        %3984 = vmatmul.bf16.gmra.mxu0 %v3334
        %v3985 = vpop.f32.mrf.mxu0
        %v3986 = vadd.f32 %v3937, %v3985
        %v3987 = vpop.f32.mrf.mxu0
        %v3988 = vadd.f32 %v3939, %v3987
        %3989 = vmatmul.bf16.gmra.mxu0 %v3349
        %v3990 = vpop.f32.mrf.mxu0
        %v3991 = vadd.f32 %v3942, %v3990
        %v3992 = vpop.f32.mrf.mxu0
        %v3993 = vadd.f32 %v3944, %v3992
        %3994 = vmatmul.bf16.gmra.mxu0 %v3364
        %v3995 = vpop.f32.mrf.mxu0
        %v3996 = vadd.f32 %v3947, %v3995
        %v3997 = vpop.f32.mrf.mxu0
        %v3998 = vadd.f32 %v3949, %v3997
        %3999 = vmatmul.bf16.gmra.mxu0 %v3379
        %v4000 = vpop.f32.mrf.mxu0
        %v4001 = vadd.f32 %v3952, %v4000
        %v4002 = vpop.f32.mrf.mxu0
        %v4003 = vadd.f32 %v3954, %v4002
        %4004 = vmatmul.bf16.gmra.mxu0 %v3394
        %v4005 = vpop.f32.mrf.mxu0
        %v4006 = vadd.f32 %v3957, %v4005
        %v4007 = vpop.f32.mrf.mxu0
        %v4008 = vadd.f32 %v3959, %v4007
        %4009 = vdwg.mxu0
        %4010 = vmatpush.bf16.msra.mxu0 %v1789
        %4011 = vmatpush.bf16.msra.mxu0 %v1788
        %4012 = vmatpush.bf16.msra.mxu0 %v1787
        %4013 = vmatpush.bf16.msra.mxu0 %v1786
        %4014 = vmatpush.bf16.msra.mxu0 %v1785
        %4015 = vmatpush.bf16.msra.mxu0 %v1784
        %4016 = vmatpush.bf16.msra.mxu0 %v1783
        %4017 = vmatpush.bf16.msra.mxu0 %v1782
        %4018 = vmatmul.bf16.gmra.mxu0 %v3290
        %v4019 = vpop.f32.mrf.mxu0
        %v4020 = vadd.f32 %v3971, %v4019
        %v4021 = vpop.f32.mrf.mxu0
        %v4022 = vadd.f32 %v3973, %v4021
        %4023 = vmatmul.bf16.gmra.mxu0 %v3305
        %v4024 = vpop.f32.mrf.mxu0
        %v4025 = vadd.f32 %v3976, %v4024
        %v4026 = vpop.f32.mrf.mxu0
        %v4027 = vadd.f32 %v3978, %v4026
        %4028 = vmatmul.bf16.gmra.mxu0 %v3320
        %v4029 = vpop.f32.mrf.mxu0
        %v4030 = vadd.f32 %v3981, %v4029
        %v4031 = vpop.f32.mrf.mxu0
        %v4032 = vadd.f32 %v3983, %v4031
        %4033 = vmatmul.bf16.gmra.mxu0 %v3335
        %v4034 = vpop.f32.mrf.mxu0
        %v4035 = vadd.f32 %v3986, %v4034
        %v4036 = vpop.f32.mrf.mxu0
        %v4037 = vadd.f32 %v3988, %v4036
        %4038 = vmatmul.bf16.gmra.mxu0 %v3350
        %v4039 = vpop.f32.mrf.mxu0
        %v4040 = vadd.f32 %v3991, %v4039
        %v4041 = vpop.f32.mrf.mxu0
        %v4042 = vadd.f32 %v3993, %v4041
        %4043 = vmatmul.bf16.gmra.mxu0 %v3365
        %v4044 = vpop.f32.mrf.mxu0
        %v4045 = vadd.f32 %v3996, %v4044
        %v4046 = vpop.f32.mrf.mxu0
        %v4047 = vadd.f32 %v3998, %v4046
        %4048 = vmatmul.bf16.gmra.mxu0 %v3380
        %v4049 = vpop.f32.mrf.mxu0
        %v4050 = vadd.f32 %v4001, %v4049
        %v4051 = vpop.f32.mrf.mxu0
        %v4052 = vadd.f32 %v4003, %v4051
        %4053 = vmatmul.bf16.gmra.mxu0 %v3395
        %v4054 = vpop.f32.mrf.mxu0
        %v4055 = vadd.f32 %v4006, %v4054
        %v4056 = vpop.f32.mrf.mxu0
        %v4057 = vadd.f32 %v4008, %v4056
        %4058 = vdwg.mxu0
        %4059 = vmatpush.bf16.msra.mxu0 %v1797
        %4060 = vmatpush.bf16.msra.mxu0 %v1796
        %4061 = vmatpush.bf16.msra.mxu0 %v1795
        %4062 = vmatpush.bf16.msra.mxu0 %v1794
        %4063 = vmatpush.bf16.msra.mxu0 %v1793
        %4064 = vmatpush.bf16.msra.mxu0 %v1792
        %4065 = vmatpush.bf16.msra.mxu0 %v1791
        %4066 = vmatpush.bf16.msra.mxu0 %v1790
        %4067 = vmatmul.bf16.gmra.mxu0 %v3291
        %v4068 = vpop.f32.mrf.mxu0
        %v4069 = vadd.f32 %v4020, %v4068
        %v4070 = vpop.f32.mrf.mxu0
        %v4071 = vadd.f32 %v4022, %v4070
        %4072 = vmatmul.bf16.gmra.mxu0 %v3306
        %v4073 = vpop.f32.mrf.mxu0
        %v4074 = vadd.f32 %v4025, %v4073
        %v4075 = vpop.f32.mrf.mxu0
        %v4076 = vadd.f32 %v4027, %v4075
        %4077 = vmatmul.bf16.gmra.mxu0 %v3321
        %v4078 = vpop.f32.mrf.mxu0
        %v4079 = vadd.f32 %v4030, %v4078
        %v4080 = vpop.f32.mrf.mxu0
        %v4081 = vadd.f32 %v4032, %v4080
        %4082 = vmatmul.bf16.gmra.mxu0 %v3336
        %v4083 = vpop.f32.mrf.mxu0
        %v4084 = vadd.f32 %v4035, %v4083
        %v4085 = vpop.f32.mrf.mxu0
        %v4086 = vadd.f32 %v4037, %v4085
        %4087 = vmatmul.bf16.gmra.mxu0 %v3351
        %v4088 = vpop.f32.mrf.mxu0
        %v4089 = vadd.f32 %v4040, %v4088
        %v4090 = vpop.f32.mrf.mxu0
        %v4091 = vadd.f32 %v4042, %v4090
        %4092 = vmatmul.bf16.gmra.mxu0 %v3366
        %v4093 = vpop.f32.mrf.mxu0
        %v4094 = vadd.f32 %v4045, %v4093
        %v4095 = vpop.f32.mrf.mxu0
        %v4096 = vadd.f32 %v4047, %v4095
        %4097 = vmatmul.bf16.gmra.mxu0 %v3381
        %v4098 = vpop.f32.mrf.mxu0
        %v4099 = vadd.f32 %v4050, %v4098
        %v4100 = vpop.f32.mrf.mxu0
        %v4101 = vadd.f32 %v4052, %v4100
        %4102 = vmatmul.bf16.gmra.mxu0 %v3396
        %v4103 = vpop.f32.mrf.mxu0
        %v4104 = vadd.f32 %v4055, %v4103
        %v4105 = vpop.f32.mrf.mxu0
        %v4106 = vadd.f32 %v4057, %v4105
        %4107 = vdwg.mxu0
        %4108 = vmatpush.bf16.msra.mxu0 %v1805
        %4109 = vmatpush.bf16.msra.mxu0 %v1804
        %4110 = vmatpush.bf16.msra.mxu0 %v1803
        %4111 = vmatpush.bf16.msra.mxu0 %v1802
        %4112 = vmatpush.bf16.msra.mxu0 %v1801
        %4113 = vmatpush.bf16.msra.mxu0 %v1800
        %4114 = vmatpush.bf16.msra.mxu0 %v1799
        %4115 = vmatpush.bf16.msra.mxu0 %v1798
        %4116 = vmatmul.bf16.gmra.mxu0 %v3292
        %v4117 = vpop.f32.mrf.mxu0
        %v4118 = vadd.f32 %v4069, %v4117
        %v4119 = vpop.f32.mrf.mxu0
        %v4120 = vadd.f32 %v4071, %v4119
        %4121 = vmatmul.bf16.gmra.mxu0 %v3307
        %v4122 = vpop.f32.mrf.mxu0
        %v4123 = vadd.f32 %v4074, %v4122
        %v4124 = vpop.f32.mrf.mxu0
        %v4125 = vadd.f32 %v4076, %v4124
        %4126 = vmatmul.bf16.gmra.mxu0 %v3322
        %v4127 = vpop.f32.mrf.mxu0
        %v4128 = vadd.f32 %v4079, %v4127
        %v4129 = vpop.f32.mrf.mxu0
        %v4130 = vadd.f32 %v4081, %v4129
        %4131 = vmatmul.bf16.gmra.mxu0 %v3337
        %v4132 = vpop.f32.mrf.mxu0
        %v4133 = vadd.f32 %v4084, %v4132
        %v4134 = vpop.f32.mrf.mxu0
        %v4135 = vadd.f32 %v4086, %v4134
        %4136 = vmatmul.bf16.gmra.mxu0 %v3352
        %v4137 = vpop.f32.mrf.mxu0
        %v4138 = vadd.f32 %v4089, %v4137
        %v4139 = vpop.f32.mrf.mxu0
        %v4140 = vadd.f32 %v4091, %v4139
        %4141 = vmatmul.bf16.gmra.mxu0 %v3367
        %v4142 = vpop.f32.mrf.mxu0
        %v4143 = vadd.f32 %v4094, %v4142
        %v4144 = vpop.f32.mrf.mxu0
        %v4145 = vadd.f32 %v4096, %v4144
        %4146 = vmatmul.bf16.gmra.mxu0 %v3382
        %v4147 = vpop.f32.mrf.mxu0
        %v4148 = vadd.f32 %v4099, %v4147
        %v4149 = vpop.f32.mrf.mxu0
        %v4150 = vadd.f32 %v4101, %v4149
        %4151 = vmatmul.bf16.gmra.mxu0 %v3397
        %v4152 = vpop.f32.mrf.mxu0
        %v4153 = vadd.f32 %v4104, %v4152
        %v4154 = vpop.f32.mrf.mxu0
        %v4155 = vadd.f32 %v4106, %v4154
        %4156 = vdwg.mxu0
        %4157 = vmatpush.bf16.msra.mxu0 %v1813
        %4158 = vmatpush.bf16.msra.mxu0 %v1812
        %4159 = vmatpush.bf16.msra.mxu0 %v1811
        %4160 = vmatpush.bf16.msra.mxu0 %v1810
        %4161 = vmatpush.bf16.msra.mxu0 %v1809
        %4162 = vmatpush.bf16.msra.mxu0 %v1808
        %4163 = vmatpush.bf16.msra.mxu0 %v1807
        %4164 = vmatpush.bf16.msra.mxu0 %v1806
        %4165 = vmatmul.bf16.gmra.mxu0 %v3293
        %v4166 = vpop.f32.mrf.mxu0
        %v4167 = vadd.f32 %v4118, %v4166
        %v4168 = vpop.f32.mrf.mxu0
        %v4169 = vadd.f32 %v4120, %v4168
        %4170 = vmatmul.bf16.gmra.mxu0 %v3308
        %v4171 = vpop.f32.mrf.mxu0
        %v4172 = vadd.f32 %v4123, %v4171
        %v4173 = vpop.f32.mrf.mxu0
        %v4174 = vadd.f32 %v4125, %v4173
        %4175 = vmatmul.bf16.gmra.mxu0 %v3323
        %v4176 = vpop.f32.mrf.mxu0
        %v4177 = vadd.f32 %v4128, %v4176
        %v4178 = vpop.f32.mrf.mxu0
        %v4179 = vadd.f32 %v4130, %v4178
        %4180 = vmatmul.bf16.gmra.mxu0 %v3338
        %v4181 = vpop.f32.mrf.mxu0
        %v4182 = vadd.f32 %v4133, %v4181
        %v4183 = vpop.f32.mrf.mxu0
        %v4184 = vadd.f32 %v4135, %v4183
        %4185 = vmatmul.bf16.gmra.mxu0 %v3353
        %v4186 = vpop.f32.mrf.mxu0
        %v4187 = vadd.f32 %v4138, %v4186
        %v4188 = vpop.f32.mrf.mxu0
        %v4189 = vadd.f32 %v4140, %v4188
        %4190 = vmatmul.bf16.gmra.mxu0 %v3368
        %v4191 = vpop.f32.mrf.mxu0
        %v4192 = vadd.f32 %v4143, %v4191
        %v4193 = vpop.f32.mrf.mxu0
        %v4194 = vadd.f32 %v4145, %v4193
        %4195 = vmatmul.bf16.gmra.mxu0 %v3383
        %v4196 = vpop.f32.mrf.mxu0
        %v4197 = vadd.f32 %v4148, %v4196
        %v4198 = vpop.f32.mrf.mxu0
        %v4199 = vadd.f32 %v4150, %v4198
        %4200 = vmatmul.bf16.gmra.mxu0 %v3398
        %v4201 = vpop.f32.mrf.mxu0
        %v4202 = vadd.f32 %v4153, %v4201
        %v4203 = vpop.f32.mrf.mxu0
        %v4204 = vadd.f32 %v4155, %v4203
        %4205 = vdwg.mxu0
        %4206 = vmatpush.bf16.msra.mxu0 %v1821
        %4207 = vmatpush.bf16.msra.mxu0 %v1820
        %4208 = vmatpush.bf16.msra.mxu0 %v1819
        %4209 = vmatpush.bf16.msra.mxu0 %v1818
        %4210 = vmatpush.bf16.msra.mxu0 %v1817
        %4211 = vmatpush.bf16.msra.mxu0 %v1816
        %4212 = vmatpush.bf16.msra.mxu0 %v1815
        %4213 = vmatpush.bf16.msra.mxu0 %v1814
        %4214 = vmatmul.bf16.gmra.mxu0 %v3294
        %v4215 = vpop.f32.mrf.mxu0
        %v4216 = vadd.f32 %v4167, %v4215
        %v4217 = vpop.f32.mrf.mxu0
        %v4218 = vadd.f32 %v4169, %v4217
        %4219 = vmatmul.bf16.gmra.mxu0 %v3309
        %v4220 = vpop.f32.mrf.mxu0
        %v4221 = vadd.f32 %v4172, %v4220
        %v4222 = vpop.f32.mrf.mxu0
        %v4223 = vadd.f32 %v4174, %v4222
        %4224 = vmatmul.bf16.gmra.mxu0 %v3324
        %v4225 = vpop.f32.mrf.mxu0
        %v4226 = vadd.f32 %v4177, %v4225
        %v4227 = vpop.f32.mrf.mxu0
        %v4228 = vadd.f32 %v4179, %v4227
        %4229 = vmatmul.bf16.gmra.mxu0 %v3339
        %v4230 = vpop.f32.mrf.mxu0
        %v4231 = vadd.f32 %v4182, %v4230
        %v4232 = vpop.f32.mrf.mxu0
        %v4233 = vadd.f32 %v4184, %v4232
        %4234 = vmatmul.bf16.gmra.mxu0 %v3354
        %v4235 = vpop.f32.mrf.mxu0
        %v4236 = vadd.f32 %v4187, %v4235
        %v4237 = vpop.f32.mrf.mxu0
        %v4238 = vadd.f32 %v4189, %v4237
        %4239 = vmatmul.bf16.gmra.mxu0 %v3369
        %v4240 = vpop.f32.mrf.mxu0
        %v4241 = vadd.f32 %v4192, %v4240
        %v4242 = vpop.f32.mrf.mxu0
        %v4243 = vadd.f32 %v4194, %v4242
        %4244 = vmatmul.bf16.gmra.mxu0 %v3384
        %v4245 = vpop.f32.mrf.mxu0
        %v4246 = vadd.f32 %v4197, %v4245
        %v4247 = vpop.f32.mrf.mxu0
        %v4248 = vadd.f32 %v4199, %v4247
        %4249 = vmatmul.bf16.gmra.mxu0 %v3399
        %v4250 = vpop.f32.mrf.mxu0
        %v4251 = vadd.f32 %v4202, %v4250
        %v4252 = vpop.f32.mrf.mxu0
        %v4253 = vadd.f32 %v4204, %v4252
        %4254 = vdwg.mxu0
        %v4255 = vadd.f32 %v4216, %v4218
        %v4256 = vrot.slane %v4255, 4
        %v4257 = vadd.f32 %v4255, %v4256
        %v4258 = vrot.slane %v4257, 2
        %v4259 = vadd.f32 %v4257, %v4258
        %v4260 = vrot.slane %v4259, 1
        %v4261 = vadd.f32 %v4259, %v4260
        %v4262 = vadd.f32 %v4221, %v4223
        %v4263 = vrot.slane %v4262, 4
        %v4264 = vadd.f32 %v4262, %v4263
        %v4265 = vrot.slane %v4264, 2
        %v4266 = vadd.f32 %v4264, %v4265
        %v4267 = vrot.slane %v4266, 1
        %v4268 = vadd.f32 %v4266, %v4267
        %v4269 = vadd.f32 %v4226, %v4228
        %v4270 = vrot.slane %v4269, 4
        %v4271 = vadd.f32 %v4269, %v4270
        %v4272 = vrot.slane %v4271, 2
        %v4273 = vadd.f32 %v4271, %v4272
        %v4274 = vrot.slane %v4273, 1
        %v4275 = vadd.f32 %v4273, %v4274
        %v4276 = vadd.f32 %v4231, %v4233
        %v4277 = vrot.slane %v4276, 4
        %v4278 = vadd.f32 %v4276, %v4277
        %v4279 = vrot.slane %v4278, 2
        %v4280 = vadd.f32 %v4278, %v4279
        %v4281 = vrot.slane %v4280, 1
        %v4282 = vadd.f32 %v4280, %v4281
        %v4283 = vadd.f32 %v4236, %v4238
        %v4284 = vrot.slane %v4283, 4
        %v4285 = vadd.f32 %v4283, %v4284
        %v4286 = vrot.slane %v4285, 2
        %v4287 = vadd.f32 %v4285, %v4286
        %v4288 = vrot.slane %v4287, 1
        %v4289 = vadd.f32 %v4287, %v4288
        %v4290 = vadd.f32 %v4241, %v4243
        %v4291 = vrot.slane %v4290, 4
        %v4292 = vadd.f32 %v4290, %v4291
        %v4293 = vrot.slane %v4292, 2
        %v4294 = vadd.f32 %v4292, %v4293
        %v4295 = vrot.slane %v4294, 1
        %v4296 = vadd.f32 %v4294, %v4295
        %v4297 = vadd.f32 %v4246, %v4248
        %v4298 = vrot.slane %v4297, 4
        %v4299 = vadd.f32 %v4297, %v4298
        %v4300 = vrot.slane %v4299, 2
        %v4301 = vadd.f32 %v4299, %v4300
        %v4302 = vrot.slane %v4301, 1
        %v4303 = vadd.f32 %v4301, %v4302
        %v4304 = vadd.f32 %v4251, %v4253
        %v4305 = vrot.slane %v4304, 4
        %v4306 = vadd.f32 %v4304, %v4305
        %v4307 = vrot.slane %v4306, 2
        %v4308 = vadd.f32 %v4306, %v4307
        %v4309 = vrot.slane %v4308, 1
        %v4310 = vadd.f32 %v4308, %v4309
        %v4311 = vmul.f32 %v4261, 0.0625
        %v4312 = vmul.f32 %v4268, 0.0625
        %v4313 = vmul.f32 %v4275, 0.0625
        %v4314 = vmul.f32 %v4282, 0.0625
        %v4315 = vmul.f32 %v4289, 0.0625
        %v4316 = vmul.f32 %v4296, 0.0625
        %v4317 = vmul.f32 %v4303, 0.0625
        %v4318 = vmul.f32 %v4310, 0.0625
        %v4319 = vadd.f32 %v4311, %v2742
        %v4320 = vadd.f32 %v4312, %v2742
        %v4321 = vadd.f32 %v4313, %v2742
        %v4322 = vadd.f32 %v4314, %v2742
        %v4323 = vadd.f32 %v4315, %v2742
        %v4324 = vadd.f32 %v4316, %v2742
        %v4325 = vadd.f32 %v4317, %v2742
        %v4326 = vadd.f32 %v4318, %v2742
        %v4335 = vrot.slane %v4320, 7
        %v4336 = vsel %vm2761, %v4335, %v4319
        %v4337 = vrot.slane %v4321, 6
        %v4338 = vsel %vm2764, %v4337, %v4336
        %v4339 = vrot.slane %v4322, 5
        %v4340 = vsel %vm2767, %v4339, %v4338
        %v4341 = vrot.slane %v4323, 4
        %v4342 = vsel %vm2770, %v4341, %v4340
        %v4343 = vrot.slane %v4324, 3
        %v4344 = vsel %vm2773, %v4343, %v4342
        %v4345 = vrot.slane %v4325, 2
        %v4346 = vsel %vm2776, %v4345, %v4344
        %v4347 = vrot.slane %v4326, 1
        %v4348 = vsel %vm2779, %v4347, %v4346
        %4350 = vst [vmem:[%s232 + $0x8] sm:$0xff] %v4348
        %s4351 = sand.u32 %s97, 1
        %s4352 = scalar_lea.sflag [#allocation4], %s4351
        %s4353 = sand.u32 %s97, 1
        %s4354 = smul.addr %s4353, 16
        %s4355 = scalar_lea.vmem [#allocation8], %s4354
        // Predicated region
        $region45: #{tpu_custom_call.1} parent=31 // pred_check
          %p4356 = pneg %p107
        $region46: #{tpu_custom_call.1} parent=31 // pred_check_branch
          %4358 = sbr.rel (%p4356) target = $region48
        $region47: #{tpu_custom_call.1} parent=31 // pred_region
          %s4359 = smul.u32 2, %s21
          %s4360 = ssub.s32 5, %s4359
          %p4361 = scmp.lt.s32.totalorder %s4360, 2
          %s4362 = scalar_select %p4361, %s4360, 2
          %s4363 = smul.u32 8, %s4362
          %s4364 = ssub.s32 16, %s4363
          %s4365 = sshll.u32 %s4364, 4
          %4366 = vsyncadd %s4352, %s4365
          %p4367 = scmp.ne.s32.totalorder 0, %s4363
          %s4368 = smul.addr %s4359, 8
          %s4369 = scalar_lea.hbm %s3, %s4368
          %s4370 = smul.u32 8, %s4362
          %s4371 = sshll.u32 %s4355, 4
          %s4372 = int_to_ptr.vmem [resolvable:$true] %s4371
          %s4373 = sshll.u32 %s4369, 4
          %s4374 = int_to_ptr.hbm [resolvable:$true] %s4373
          %s4375 = sshll.u32 %s4370, 4
          %4379 = dma.vmem_to_hbm [thread:$0]  (%p4367), %s4372, %s4375, %s4374, %s4352, 128, 128, 8
        $region48: #{tpu_custom_call.1} parent=31 // pred_fallthru
          _
      $region32: #{tpu_custom_call.1} parent=5 // pred_fallthru
        _
      %p4380 = scmp.le.s32.totalorder 2, %s16
      // Predicated region
      $region49: #{tpu_custom_call.1} parent=5 // pred_check
        %p4381 = pneg %p4380
      $region50: #{tpu_custom_call.1} parent=5 // pred_check_branch
        %4383 = sbr.rel (%p4381) target = $region52
      $region51: #{tpu_custom_call.1} parent=5 // pred_region
        %s4384 = ssub.s32 %s16, 2
        // Predicated region
        $region53: #{tpu_custom_call.1} parent=51 // pred_check
          %p4385 = pneg %p113
        $region54: #{tpu_custom_call.1} parent=51 // pred_check_branch
          %4387 = sbr.rel (%p4385) target = $region56
        $region55: #{tpu_custom_call.1} parent=51 // pred_region
          %s4388 = sand.u32 %s98, 1
          %s4389 = scalar_lea.sflag [#allocation4], %s4388
          %s4390 = sand.u32 %s98, 1
          %s4391 = smul.addr %s4390, 16
          %s4392 = scalar_lea.vmem [#allocation8], %s4391
          %4394 = dma.done %s4389, 256
        $region56: #{tpu_custom_call.1} parent=51 // pred_fallthru
          _
      $region52: #{tpu_custom_call.1} parent=5 // pred_fallthru
        _
    $region6: #{tpu_custom_call.1} parent=1 // loop_footer
      %s20 = sadd.s32 1, %s16
    $region7: #{tpu_custom_call.1} parent=1 // loop_footer_branch
      %15 = sbr.rel target = $region3
    $region8: #{tpu_custom_call.1} parent=1 // loop_exit
      _
    %4395 = vsyncpa [#allocation3], 1
    %s4396 = scalar_lea.sflag [#allocation3], 1
    %4397 = vsyncpa %s4396, 1
    %4398 = vsyncpa [#allocation6], 1
    %4399 = vsyncpa [#allocation4], 1
    %s4400 = scalar_lea.sflag [#allocation4], 1
    %4401 = vsyncpa %s4400, 1

</llo_original>
